<compile_context>
chip_gen: v7x
topology: tpu7x:2x2x1
jax: 0.10.0
libtpu: 0.0.40
codegen_flags: <defaults>
</compile_context>

<pallas_src>
import functools

import jax
import jax.numpy as jnp
from jax.experimental import pallas as pl
from jax.experimental.pallas import tpu as pltpu


def _round_up(x, m):
    return ((x + m - 1) // m) * m


# --------------------------------------------------------------------------
# Kernel
# --------------------------------------------------------------------------
def _vae_kernel(
    x_ref, eps_ref,
    e1w_ref, e1b_ref, e2w_ref, e2b_ref,
    hw_ref, hb_ref,                       # fused mean|logvar head
    d1w_ref, d1b_ref, d2w_ref, d2b_ref, d3w_ref, d3b_ref, d4w_ref, d4b_ref,
    xout_ref, stats_ref,
    *, latent_pad,
):
    f32 = jnp.float32
    bf16 = jnp.bfloat16

    def dense(x_bf16, w_ref, b_ref):
        # bf16 x bf16 on the MXU, f32 accumulate, f32 bias add.
        y = jnp.dot(x_bf16, w_ref[...], preferred_element_type=f32)
        return y + b_ref[...]

    def dense_relu_bf16(x_bf16, w_ref, b_ref):
        # Round to bf16 *before* the ReLU (bit-identical to ReLU-then-round,
        # since rounding preserves sign); keeps the elementwise work and the
        # live inter-layer activation in bf16.
        return jnp.maximum(dense(x_bf16, w_ref, b_ref).astype(bf16), 0)

    # ---- encoder: Linear -> ReLU -> Linear -> ReLU -------------------------
    h = dense_relu_bf16(x_ref[...], e1w_ref, e1b_ref)
    h = dense_relu_bf16(h, e2w_ref, e2b_ref)

    # ---- fused latent heads: one (hidden, 2*latent_pad) matmul, f32 out -----
    stats = dense(h, hw_ref, hb_ref)      # [:, :latent_pad]=mean, rest=logvar
    stats_ref[...] = stats
    mean = stats[:, :latent_pad]
    logvar = stats[:, latent_pad:]

    # ---- reparameterization (f32): z = eps * exp(0.5 * logvar) + mean ------
    z = eps_ref[...] * jnp.exp(logvar * 0.5) + mean

    # ---- decoder: 3 x (Linear -> ReLU) -> Linear -> Sigmoid -----------------
    d = dense_relu_bf16(z.astype(bf16), d1w_ref, d1b_ref)
    d = dense_relu_bf16(d, d2w_ref, d2b_ref)
    d = dense_relu_bf16(d, d3w_ref, d3b_ref)
    y = dense(d, d4w_ref, d4b_ref)
    # sigmoid = 1 / (1 + exp(-y)); exp and reciprocal both on the EUP slot.
    xout_ref[...] = pl.reciprocal(1.0 + jnp.exp(-y), approx=True)


# --------------------------------------------------------------------------
# Parameters (torch-default init, zero-padded to TPU-friendly dims)
# --------------------------------------------------------------------------
def init_vae_params(key, input_dim, latent_dim=3, hidden_dim=500,
                    hidden_pad=512, latent_pad=8):
    """Returns padded params in kernel order.

    Weights (in, out) stored in bf16, biases (1, out) in f32.  mean/logvar
    heads fused into one (hidden_pad, 2*latent_pad) weight/bias.  Zero padding
    keeps the padded math exactly equal to the unpadded math.  input_dim is
    padded up to a multiple of 128 so x / x_out stay lane-dense.
    """
    f32 = jnp.float32
    input_pad = _round_up(input_dim, 128)

    def linear(k, din, dout, din_pad, dout_pad):
        kw, kb = jax.random.split(k)
        bound = 1.0 / float(din) ** 0.5          # torch nn.Linear default range
        w = jax.random.uniform(kw, (din, dout), f32, -bound, bound)
        b = jax.random.uniform(kb, (1, dout), f32, -bound, bound)
        wp = jnp.zeros((din_pad, dout_pad), f32).at[:din, :dout].set(w)
        bp = jnp.zeros((1, dout_pad), f32).at[:, :dout].set(b)
        return wp, bp

    ks = jax.random.split(key, 8)
    # encoder
    e1w, e1b = linear(ks[0], input_dim, hidden_dim, input_pad, hidden_pad)
    e2w, e2b = linear(ks[1], hidden_dim, hidden_dim, hidden_pad, hidden_pad)
    # heads (built unpadded, then packed into the fused head)
    mw, mb = linear(ks[2], hidden_dim, latent_dim, hidden_pad, latent_pad)
    lvw, lvb = linear(ks[3], hidden_dim, latent_dim, hidden_pad, latent_pad)
    hw = jnp.zeros((hidden_pad, 2 * latent_pad), f32)
    hw = hw.at[:, :latent_pad].set(mw).at[:, latent_pad:].set(lvw)
    hb = jnp.zeros((1, 2 * latent_pad), f32)
    hb = hb.at[:, :latent_pad].set(mb).at[:, latent_pad:].set(lvb)
    # decoder
    d1w, d1b = linear(ks[4], latent_dim, hidden_dim, latent_pad, hidden_pad)
    d2w, d2b = linear(ks[5], hidden_dim, hidden_dim, hidden_pad, hidden_pad)
    d3w, d3b = linear(ks[6], hidden_dim, hidden_dim, hidden_pad, hidden_pad)
    d4w, d4b = linear(ks[7], hidden_dim, input_dim, hidden_pad, input_pad)

    bf16 = jnp.bfloat16
    return (
        e1w.astype(bf16), e1b, e2w.astype(bf16), e2b,
        hw.astype(bf16), hb,
        d1w.astype(bf16), d1b, d2w.astype(bf16), d2b,
        d3w.astype(bf16), d3b, d4w.astype(bf16), d4b,
    )


# --------------------------------------------------------------------------
# Batch tiling: big tiles, minimal padding waste, even step count for v7x
# --------------------------------------------------------------------------
def _choose_tiling(B, tm_cap=512):
    """Returns (TM, n_tiles) with TM % 8 == 0, TM <= ~tm_cap, n_tiles * TM >= B.

    TM is capped at 512 (safe under v5e's 16 MiB default scoped VMEM while
    still amortizing per-step overhead on v6e/v7x).  For B > 8 the step count
    is at least 2 and even, so the "parallel" batch axis can be balanced
    across both v7x TensorCores.  TM tracks cdiv(B, n_tiles), so padding waste
    is at most 7 rows per tile (e.g. B=300 -> TM=152, grid=(2,)).
    """
    if B <= 8:
        return _round_up(max(B, 1), 8), 1
    n = max(2, -(-B // tm_cap))
    if n % 2:
        n += 1
    tm = _round_up(-(-B // n), 8)
    return tm, n


# --------------------------------------------------------------------------
# Wrapper
# --------------------------------------------------------------------------
def vae_forward(x_nchw, eps, params, input_shape, latent_dim, latent_pad=8):
    """x_nchw: (B, 1, H, W); eps: (B, latent_dim) standard normal."""
    B = x_nchw.shape[0]
    H, W = input_shape
    input_dim = H * W
    input_pad = params[0].shape[0]          # e1w rows (input_dim padded to 128)

    # bf16 input (the MXU consumes bf16 anyway) -> halves x DMA + VMEM.
    x_flat = x_nchw.reshape(B, input_dim).astype(jnp.bfloat16)
    if input_pad != input_dim:
        x_flat = jnp.pad(x_flat, ((0, 0), (0, input_pad - input_dim)))

    # zero-pad eps into the padded latent width (stays f32; tiny)
    eps_pad = jnp.zeros((B, latent_pad), jnp.float32)
    eps_pad = eps_pad.at[:, :latent_dim].set(eps.astype(jnp.float32))

    # --- adaptive batch tiling ----------------------------------------------
    TM, n_tiles = _choose_tiling(B)
    B_pad = TM * n_tiles
    if B_pad != B:
        x_flat = jnp.pad(x_flat, ((0, B_pad - B), (0, 0)))
        eps_pad = jnp.pad(eps_pad, ((0, B_pad - B), (0, 0)))
    grid = (n_tiles,)

    def tile_spec(cols):
        return pl.BlockSpec((TM, cols), lambda i: (i, 0))

    def resident_spec(shape):
        nd = len(shape)
        return pl.BlockSpec(shape, lambda i, _nd=nd: (0,) * _nd)

    in_specs = [tile_spec(input_pad), tile_spec(latent_pad)]
    in_specs += [resident_spec(p.shape) for p in params]
    out_specs = (tile_spec(input_pad), tile_spec(2 * latent_pad))
    out_shape = (
        jax.ShapeDtypeStruct((B_pad, input_pad), jnp.float32),       # x_out flat
        jax.ShapeDtypeStruct((B_pad, 2 * latent_pad), jnp.float32),  # mean|logvar
    )

    kernel = functools.partial(_vae_kernel, latent_pad=latent_pad)
    xout_flat, stats = pl.pallas_call(
        kernel,
        out_shape=out_shape,
        grid=grid,
        in_specs=in_specs,
        out_specs=out_specs,
        compiler_params=pltpu.CompilerParams(
            dimension_semantics=("parallel",),   # shard batch tiles on v7x TCs
        ),
    )(x_flat, eps_pad, *params)

    x_out = xout_flat[:B, :input_dim].reshape(B, 1, H, W)
    z_mean = stats[:B, :latent_dim]
    z_logvar = stats[:B, latent_pad:latent_pad + latent_dim]
    return x_out, z_mean, z_logvar


# --------------------------------------------------------------------------
# Pure-JAX reference (same bf16-dot / f32-accumulate math on padded params)
# --------------------------------------------------------------------------
def ref_forward(x_nchw, eps, params, input_shape, latent_dim, latent_pad=8):
    (e1w, e1b, e2w, e2b, hw, hb,
     d1w, d1b, d2w, d2b, d3w, d3b, d4w, d4b) = params
    B = x_nchw.shape[0]
    input_dim = input_shape[0] * input_shape[1]
    input_pad = e1w.shape[0]

    def dense(x, w, b):
        return jnp.dot(x.astype(jnp.bfloat16), w,
                       preferred_element_type=jnp.float32) + b

    xf = x_nchw.reshape(B, input_dim).astype(jnp.float32)
    if input_pad != input_dim:
        xf = jnp.pad(xf, ((0, 0), (0, input_pad - input_dim)))
    h = jnp.maximum(dense(xf, e1w, e1b), 0.0)
    h = jnp.maximum(dense(h, e2w, e2b), 0.0)
    stats = dense(h, hw, hb)
    mean, logvar = stats[:, :latent_pad], stats[:, latent_pad:]
    eps_pad = jnp.zeros((B, latent_pad), jnp.float32).at[:, :latent_dim].set(eps)
    z = eps_pad * jnp.exp(0.5 * logvar) + mean
    d = jnp.maximum(dense(z, d1w, d1b), 0.0)
    d = jnp.maximum(dense(d, d2w, d2b), 0.0)
    d = jnp.maximum(dense(d, d3w, d3b), 0.0)
    xo = jax.nn.sigmoid(dense(d, d4w, d4b))[:, :input_dim]
    return (xo.reshape(B, 1, *input_shape),
            mean[:, :latent_dim], logvar[:, :latent_dim])


# --------------------------------------------------------------------------
if __name__ == "__main__":
    input_shape = (16, 16)      # -> input_dim = 256
    latent_dim = 3
    hidden_dim = 500

    key = jax.random.PRNGKey(0)
    k_x, k_eps, k_params, k_x2, k_eps2 = jax.random.split(key, 5)

    params = init_vae_params(
        k_params, input_dim=input_shape[0] * input_shape[1],
        latent_dim=latent_dim, hidden_dim=hidden_dim,
    )

    def check(B, kx, ke):
        x = jax.random.uniform(kx, (B, 1, *input_shape), jnp.float32)
        # Standard-normal noise for the reparameterization trick (torch.randn
        # inside the module is hoisted to an explicit input here).
        eps = jax.random.normal(ke, (B, latent_dim), jnp.float32)

        x_out, z_mean, z_logvar = vae_forward(x, eps, params, input_shape,
                                              latent_dim)
        jax.block_until_ready((x_out, z_mean, z_logvar))

        r_out, r_mean, r_logvar = ref_forward(x, eps, params, input_shape,
                                              latent_dim)
        assert x_out.shape == (B, 1, *input_shape)
        assert z_mean.shape == (B, latent_dim)
        assert z_logvar.shape == (B, latent_dim)
        assert jnp.allclose(x_out, r_out, atol=2e-3, rtol=2e-3)
        assert jnp.allclose(z_mean, r_mean, atol=2e-3, rtol=2e-3)
        assert jnp.allclose(z_logvar, r_logvar, atol=2e-3, rtol=2e-3)

    # small demo batch (single 8-row tile) and a bigger one that exercises the
    # adaptive batch grid (B=300 -> TM=152, grid=(2,), only 4 padded rows).
    check(2, k_x, k_eps)
    check(300, k_x2, k_eps2)

    print("KERNEL_OK")
</pallas_src>

<mosaic_0001>
module attributes {stable_mosaic.version = 11 : i64} {
  func.func @_vae_kernel(%arg0: i32, %arg1: memref<8x256xbf16, #tpu.memory_space<vmem>>, %arg2: memref<8x8xf32, #tpu.memory_space<vmem>>, %arg3: memref<256x512xbf16, #tpu.memory_space<vmem>>, %arg4: memref<1x512xf32, #tpu.memory_space<vmem>>, %arg5: memref<512x512xbf16, #tpu.memory_space<vmem>>, %arg6: memref<1x512xf32, #tpu.memory_space<vmem>>, %arg7: memref<512x16xbf16, #tpu.memory_space<vmem>>, %arg8: memref<1x16xf32, #tpu.memory_space<vmem>>, %arg9: memref<8x512xbf16, #tpu.memory_space<vmem>>, %arg10: memref<1x512xf32, #tpu.memory_space<vmem>>, %arg11: memref<512x512xbf16, #tpu.memory_space<vmem>>, %arg12: memref<1x512xf32, #tpu.memory_space<vmem>>, %arg13: memref<512x512xbf16, #tpu.memory_space<vmem>>, %arg14: memref<1x512xf32, #tpu.memory_space<vmem>>, %arg15: memref<512x256xbf16, #tpu.memory_space<vmem>>, %arg16: memref<1x256xf32, #tpu.memory_space<vmem>>, %arg17: memref<8x256xf32, #tpu.memory_space<vmem>>, %arg18: memref<8x16xf32, #tpu.memory_space<vmem>>) attributes {dimension_semantics = [#tpu.dimension_semantics<parallel>], iteration_bounds = array<i64: 1>, scalar_prefetch = 0 : i64, scratch_operands = 0 : i64, tpu.core_type = #tpu.core_type<tc>, window_params = [{transform_indices = @transform_0, window_bounds = array<i64: 8, 256>}, {transform_indices = @transform_1, window_bounds = array<i64: 8, 8>}, {pipeline_mode = #tpu.pipeline_mode<synchronous>, transform_indices = @transform_2, window_bounds = array<i64: 256, 512>}, {pipeline_mode = #tpu.pipeline_mode<synchronous>, transform_indices = @transform_3, window_bounds = array<i64: 1, 512>}, {pipeline_mode = #tpu.pipeline_mode<synchronous>, transform_indices = @transform_4, window_bounds = array<i64: 512, 512>}, {pipeline_mode = #tpu.pipeline_mode<synchronous>, transform_indices = @transform_5, window_bounds = array<i64: 1, 512>}, {pipeline_mode = #tpu.pipeline_mode<synchronous>, transform_indices = @transform_6, window_bounds = array<i64: 512, 16>}, {pipeline_mode = #tpu.pipeline_mode<synchronous>, transform_indices = @transform_7, window_bounds = array<i64: 1, 16>}, {pipeline_mode = #tpu.pipeline_mode<synchronous>, transform_indices = @transform_8, window_bounds = array<i64: 8, 512>}, {pipeline_mode = #tpu.pipeline_mode<synchronous>, transform_indices = @transform_9, window_bounds = array<i64: 1, 512>}, {pipeline_mode = #tpu.pipeline_mode<synchronous>, transform_indices = @transform_10, window_bounds = array<i64: 512, 512>}, {pipeline_mode = #tpu.pipeline_mode<synchronous>, transform_indices = @transform_11, window_bounds = array<i64: 1, 512>}, {pipeline_mode = #tpu.pipeline_mode<synchronous>, transform_indices = @transform_12, window_bounds = array<i64: 512, 512>}, {pipeline_mode = #tpu.pipeline_mode<synchronous>, transform_indices = @transform_13, window_bounds = array<i64: 1, 512>}, {pipeline_mode = #tpu.pipeline_mode<synchronous>, transform_indices = @transform_14, window_bounds = array<i64: 512, 256>}, {pipeline_mode = #tpu.pipeline_mode<synchronous>, transform_indices = @transform_15, window_bounds = array<i64: 1, 256>}, {transform_indices = @transform_16, window_bounds = array<i64: 8, 256>}, {transform_indices = @transform_17, window_bounds = array<i64: 8, 16>}]} {
    %c0 = arith.constant 0 : index
    %c0_0 = arith.constant 0 : index
    %0 = vector.load %arg1[%c0, %c0_0] : memref<8x256xbf16, #tpu.memory_space<vmem>>, vector<8x256xbf16>
    %c0_1 = arith.constant 0 : index
    %c0_2 = arith.constant 0 : index
    %1 = vector.load %arg3[%c0_1, %c0_2] : memref<256x512xbf16, #tpu.memory_space<vmem>>, vector<256x512xbf16>
    %cst = arith.constant dense<0.000000e+00> : vector<8x512xf32>
    %2 = tpu.matmul %0, %1, %cst {dimension_numbers = #tpu.dot_dimension_numbers<[1], [0], [0], [1], [0, 0, 1, 1], [], []>} : vector<8x256xbf16>, vector<256x512xbf16>, vector<8x512xf32> -> vector<8x512xf32>
    %c0_3 = arith.constant 0 : index
    %c0_4 = arith.constant 0 : index
    %3 = vector.load %arg4[%c0_3, %c0_4] : memref<1x512xf32, #tpu.memory_space<vmem>>, vector<1x512xf32>
    %4 = vector.broadcast %3 : vector<1x512xf32> to vector<8x512xf32>
    %5 = arith.addf %2, %4 : vector<8x512xf32>
    %6 = arith.truncf %5 : vector<8x512xf32> to vector<8x512xbf16>
    %cst_5 = arith.constant 0.000000e+00 : bf16
    %7 = vector.broadcast %cst_5 : bf16 to vector<8x512xbf16>
    %8 = arith.maximumf %6, %7 : vector<8x512xbf16>
    %c0_6 = arith.constant 0 : index
    %c0_7 = arith.constant 0 : index
    %9 = vector.load %arg5[%c0_6, %c0_7] : memref<512x512xbf16, #tpu.memory_space<vmem>>, vector<512x512xbf16>
    %cst_8 = arith.constant dense<0.000000e+00> : vector<8x512xf32>
    %10 = tpu.matmul %8, %9, %cst_8 {dimension_numbers = #tpu.dot_dimension_numbers<[1], [0], [0], [1], [0, 0, 1, 1], [], []>} : vector<8x512xbf16>, vector<512x512xbf16>, vector<8x512xf32> -> vector<8x512xf32>
    %c0_9 = arith.constant 0 : index
    %c0_10 = arith.constant 0 : index
    %11 = vector.load %arg6[%c0_9, %c0_10] : memref<1x512xf32, #tpu.memory_space<vmem>>, vector<1x512xf32>
    %12 = vector.broadcast %11 : vector<1x512xf32> to vector<8x512xf32>
    %13 = arith.addf %10, %12 : vector<8x512xf32>
    %14 = arith.truncf %13 : vector<8x512xf32> to vector<8x512xbf16>
    %cst_11 = arith.constant 0.000000e+00 : bf16
    %15 = vector.broadcast %cst_11 : bf16 to vector<8x512xbf16>
    %16 = arith.maximumf %14, %15 : vector<8x512xbf16>
    %c0_12 = arith.constant 0 : index
    %c0_13 = arith.constant 0 : index
    %17 = vector.load %arg7[%c0_12, %c0_13] : memref<512x16xbf16, #tpu.memory_space<vmem>>, vector<512x16xbf16>
    %cst_14 = arith.constant dense<0.000000e+00> : vector<8x16xf32>
    %18 = tpu.matmul %16, %17, %cst_14 {dimension_numbers = #tpu.dot_dimension_numbers<[1], [0], [0], [1], [0, 0, 1, 1], [], []>} : vector<8x512xbf16>, vector<512x16xbf16>, vector<8x16xf32> -> vector<8x16xf32>
    %c0_15 = arith.constant 0 : index
    %c0_16 = arith.constant 0 : index
    %19 = vector.load %arg8[%c0_15, %c0_16] : memref<1x16xf32, #tpu.memory_space<vmem>>, vector<1x16xf32>
    %20 = vector.broadcast %19 : vector<1x16xf32> to vector<8x16xf32>
    %21 = arith.addf %18, %20 : vector<8x16xf32>
    %c0_17 = arith.constant 0 : index
    %c0_18 = arith.constant 0 : index
    %22 = vector.load %arg18[%c0_17, %c0_18] : memref<8x16xf32, #tpu.memory_space<vmem>>, vector<8x16xf32>
    tpu.vector_store %arg18[%c0_17, %c0_18], %21 {strides = array<i32>} : memref<8x16xf32, #tpu.memory_space<vmem>>, vector<8x16xf32>,
    %23 = vector.extract_strided_slice %21 {offsets = [0, 0], sizes = [8, 8], strides = [1, 1]} : vector<8x16xf32> to vector<8x8xf32>
    %24 = vector.extract_strided_slice %21 {offsets = [0, 8], sizes = [8, 8], strides = [1, 1]} : vector<8x16xf32> to vector<8x8xf32>
    %c0_19 = arith.constant 0 : index
    %c0_20 = arith.constant 0 : index
    %25 = vector.load %arg2[%c0_19, %c0_20] : memref<8x8xf32, #tpu.memory_space<vmem>>, vector<8x8xf32>
    %cst_21 = arith.constant 5.000000e-01 : f32
    %26 = vector.broadcast %cst_21 : f32 to vector<8x8xf32>
    %27 = arith.mulf %24, %26 : vector<8x8xf32>
    %28 = math.exp %27 : vector<8x8xf32>
    %29 = arith.mulf %25, %28 : vector<8x8xf32>
    %30 = arith.addf %29, %23 : vector<8x8xf32>
    %31 = arith.truncf %30 : vector<8x8xf32> to vector<8x8xbf16>
    %c0_22 = arith.constant 0 : index
    %c0_23 = arith.constant 0 : index
    %32 = vector.load %arg9[%c0_22, %c0_23] : memref<8x512xbf16, #tpu.memory_space<vmem>>, vector<8x512xbf16>
    %cst_24 = arith.constant dense<0.000000e+00> : vector<8x512xf32>
    %33 = tpu.matmul %31, %32, %cst_24 {dimension_numbers = #tpu.dot_dimension_numbers<[1], [0], [0], [1], [0, 0, 1, 1], [], []>} : vector<8x8xbf16>, vector<8x512xbf16>, vector<8x512xf32> -> vector<8x512xf32>
    %c0_25 = arith.constant 0 : index
    %c0_26 = arith.constant 0 : index
    %34 = vector.load %arg10[%c0_25, %c0_26] : memref<1x512xf32, #tpu.memory_space<vmem>>, vector<1x512xf32>
    %35 = vector.broadcast %34 : vector<1x512xf32> to vector<8x512xf32>
    %36 = arith.addf %33, %35 : vector<8x512xf32>
    %37 = arith.truncf %36 : vector<8x512xf32> to vector<8x512xbf16>
    %cst_27 = arith.constant 0.000000e+00 : bf16
    %38 = vector.broadcast %cst_27 : bf16 to vector<8x512xbf16>
    %39 = arith.maximumf %37, %38 : vector<8x512xbf16>
    %c0_28 = arith.constant 0 : index
    %c0_29 = arith.constant 0 : index
    %40 = vector.load %arg11[%c0_28, %c0_29] : memref<512x512xbf16, #tpu.memory_space<vmem>>, vector<512x512xbf16>
    %cst_30 = arith.constant dense<0.000000e+00> : vector<8x512xf32>
    %41 = tpu.matmul %39, %40, %cst_30 {dimension_numbers = #tpu.dot_dimension_numbers<[1], [0], [0], [1], [0, 0, 1, 1], [], []>} : vector<8x512xbf16>, vector<512x512xbf16>, vector<8x512xf32> -> vector<8x512xf32>
    %c0_31 = arith.constant 0 : index
    %c0_32 = arith.constant 0 : index
    %42 = vector.load %arg12[%c0_31, %c0_32] : memref<1x512xf32, #tpu.memory_space<vmem>>, vector<1x512xf32>
    %43 = vector.broadcast %42 : vector<1x512xf32> to vector<8x512xf32>
    %44 = arith.addf %41, %43 : vector<8x512xf32>
    %45 = arith.truncf %44 : vector<8x512xf32> to vector<8x512xbf16>
    %cst_33 = arith.constant 0.000000e+00 : bf16
    %46 = vector.broadcast %cst_33 : bf16 to vector<8x512xbf16>
    %47 = arith.maximumf %45, %46 : vector<8x512xbf16>
    %c0_34 = arith.constant 0 : index
    %c0_35 = arith.constant 0 : index
    %48 = vector.load %arg13[%c0_34, %c0_35] : memref<512x512xbf16, #tpu.memory_space<vmem>>, vector<512x512xbf16>
    %cst_36 = arith.constant dense<0.000000e+00> : vector<8x512xf32>
    %49 = tpu.matmul %47, %48, %cst_36 {dimension_numbers = #tpu.dot_dimension_numbers<[1], [0], [0], [1], [0, 0, 1, 1], [], []>} : vector<8x512xbf16>, vector<512x512xbf16>, vector<8x512xf32> -> vector<8x512xf32>
    %c0_37 = arith.constant 0 : index
    %c0_38 = arith.constant 0 : index
    %50 = vector.load %arg14[%c0_37, %c0_38] : memref<1x512xf32, #tpu.memory_space<vmem>>, vector<1x512xf32>
    %51 = vector.broadcast %50 : vector<1x512xf32> to vector<8x512xf32>
    %52 = arith.addf %49, %51 : vector<8x512xf32>
    %53 = arith.truncf %52 : vector<8x512xf32> to vector<8x512xbf16>
    %cst_39 = arith.constant 0.000000e+00 : bf16
    %54 = vector.broadcast %cst_39 : bf16 to vector<8x512xbf16>
    %55 = arith.maximumf %53, %54 : vector<8x512xbf16>
    %c0_40 = arith.constant 0 : index
    %c0_41 = arith.constant 0 : index
    %56 = vector.load %arg15[%c0_40, %c0_41] : memref<512x256xbf16, #tpu.memory_space<vmem>>, vector<512x256xbf16>
    %cst_42 = arith.constant dense<0.000000e+00> : vector<8x256xf32>
    %57 = tpu.matmul %55, %56, %cst_42 {dimension_numbers = #tpu.dot_dimension_numbers<[1], [0], [0], [1], [0, 0, 1, 1], [], []>} : vector<8x512xbf16>, vector<512x256xbf16>, vector<8x256xf32> -> vector<8x256xf32>
    %c0_43 = arith.constant 0 : index
    %c0_44 = arith.constant 0 : index
    %58 = vector.load %arg16[%c0_43, %c0_44] : memref<1x256xf32, #tpu.memory_space<vmem>>, vector<1x256xf32>
    %59 = vector.broadcast %58 : vector<1x256xf32> to vector<8x256xf32>
    %60 = arith.addf %57, %59 : vector<8x256xf32>
    %cst_45 = arith.constant 0.000000e+00 : f32
    %61 = vector.broadcast %cst_45 : f32 to vector<8x256xf32>
    %62 = arith.subf %61, %60 : vector<8x256xf32>
    %63 = math.exp %62 : vector<8x256xf32>
    %cst_46 = arith.constant 1.000000e+00 : f32
    %64 = vector.broadcast %cst_46 : f32 to vector<8x256xf32>
    %65 = arith.addf %64, %63 : vector<8x256xf32>
    %66 = tpu.reciprocal %65 {approx = true} : vector<8x256xf32> -> vector<8x256xf32>
    %c0_47 = arith.constant 0 : index
    %c0_48 = arith.constant 0 : index
    %67 = vector.load %arg17[%c0_47, %c0_48] : memref<8x256xf32, #tpu.memory_space<vmem>>, vector<8x256xf32>
    tpu.vector_store %arg17[%c0_47, %c0_48], %66 {strides = array<i32>} : memref<8x256xf32, #tpu.memory_space<vmem>>, vector<8x256xf32>,
    return
  }
  func.func @transform_0(%arg0: i32) -> (i32, i32) {
    %c0_i32 = arith.constant 0 : i32
    %c0_i32_0 = arith.constant 0 : i32
    return %arg0, %c0_i32 : i32, i32
  }
  func.func @transform_1(%arg0: i32) -> (i32, i32) {
    %c0_i32 = arith.constant 0 : i32
    %c0_i32_0 = arith.constant 0 : i32
    return %arg0, %c0_i32 : i32, i32
  }
  func.func @transform_2(%arg0: i32) -> (i32, i32) {
    %c0_i32 = arith.constant 0 : i32
    %c0_i32_0 = arith.constant 0 : i32
    %c0_i32_1 = arith.constant 0 : i32
    return %c0_i32, %c0_i32_0 : i32, i32
  }
  func.func @transform_3(%arg0: i32) -> (i32, i32) {
    %c0_i32 = arith.constant 0 : i32
    %c0_i32_0 = arith.constant 0 : i32
    %c0_i32_1 = arith.constant 0 : i32
    return %c0_i32, %c0_i32_0 : i32, i32
  }
  func.func @transform_4(%arg0: i32) -> (i32, i32) {
    %c0_i32 = arith.constant 0 : i32
    %c0_i32_0 = arith.constant 0 : i32
    %c0_i32_1 = arith.constant 0 : i32
    return %c0_i32, %c0_i32_0 : i32, i32
  }
  func.func @transform_5(%arg0: i32) -> (i32, i32) {
    %c0_i32 = arith.constant 0 : i32
    %c0_i32_0 = arith.constant 0 : i32
    %c0_i32_1 = arith.constant 0 : i32
    return %c0_i32, %c0_i32_0 : i32, i32
  }
  func.func @transform_6(%arg0: i32) -> (i32, i32) {
    %c0_i32 = arith.constant 0 : i32
    %c0_i32_0 = arith.constant 0 : i32
    %c0_i32_1 = arith.constant 0 : i32
    return %c0_i32, %c0_i32_0 : i32, i32
  }
  func.func @transform_7(%arg0: i32) -> (i32, i32) {
    %c0_i32 = arith.constant 0 : i32
    %c0_i32_0 = arith.constant 0 : i32
    %c0_i32_1 = arith.constant 0 : i32
    return %c0_i32, %c0_i32_0 : i32, i32
  }
  func.func @transform_8(%arg0: i32) -> (i32, i32) {
    %c0_i32 = arith.constant 0 : i32
    %c0_i32_0 = arith.constant 0 : i32
    %c0_i32_1 = arith.constant 0 : i32
    return %c0_i32, %c0_i32_0 : i32, i32
  }
  func.func @transform_9(%arg0: i32) -> (i32, i32) {
    %c0_i32 = arith.constant 0 : i32
    %c0_i32_0 = arith.constant 0 : i32
    %c0_i32_1 = arith.constant 0 : i32
    return %c0_i32, %c0_i32_0 : i32, i32
  }
  func.func @transform_10(%arg0: i32) -> (i32, i32) {
    %c0_i32 = arith.constant 0 : i32
    %c0_i32_0 = arith.constant 0 : i32
    %c0_i32_1 = arith.constant 0 : i32
    return %c0_i32, %c0_i32_0 : i32, i32
  }
  func.func @transform_11(%arg0: i32) -> (i32, i32) {
    %c0_i32 = arith.constant 0 : i32
    %c0_i32_0 = arith.constant 0 : i32
    %c0_i32_1 = arith.constant 0 : i32
    return %c0_i32, %c0_i32_0 : i32, i32
  }
  func.func @transform_12(%arg0: i32) -> (i32, i32) {
    %c0_i32 = arith.constant 0 : i32
    %c0_i32_0 = arith.constant 0 : i32
    %c0_i32_1 = arith.constant 0 : i32
    return %c0_i32, %c0_i32_0 : i32, i32
  }
  func.func @transform_13(%arg0: i32) -> (i32, i32) {
    %c0_i32 = arith.constant 0 : i32
    %c0_i32_0 = arith.constant 0 : i32
    %c0_i32_1 = arith.constant 0 : i32
    return %c0_i32, %c0_i32_0 : i32, i32
  }
  func.func @transform_14(%arg0: i32) -> (i32, i32) {
    %c0_i32 = arith.constant 0 : i32
    %c0_i32_0 = arith.constant 0 : i32
    %c0_i32_1 = arith.constant 0 : i32
    return %c0_i32, %c0_i32_0 : i32, i32
  }
  func.func @transform_15(%arg0: i32) -> (i32, i32) {
    %c0_i32 = arith.constant 0 : i32
    %c0_i32_0 = arith.constant 0 : i32
    %c0_i32_1 = arith.constant 0 : i32
    return %c0_i32, %c0_i32_0 : i32, i32
  }
  func.func @transform_16(%arg0: i32) -> (i32, i32) {
    %c0_i32 = arith.constant 0 : i32
    %c0_i32_0 = arith.constant 0 : i32
    return %arg0, %c0_i32 : i32, i32
  }
  func.func @transform_17(%arg0: i32) -> (i32, i32) {
    %c0_i32 = arith.constant 0 : i32
    %c0_i32_0 = arith.constant 0 : i32
    return %arg0, %c0_i32 : i32, i32
  }
}

</mosaic_0001>

<llo_original>
// kernel: tpu_custom_call.1
$region0: #{tpu_custom_call.1}
  #allocation0 [shape = 'u32[]', space=smem, size = 0x4, offset = 0x4, fixed_abs, tag = 'smem constant byte address 0x4 - core index']
  #allocation1 [shape = 'u32[144,128]{1,0:T(1,128)}', space=vmem, size = 0x12000, scoped, tag = 'internal scratch']
  %s0 = inlined_call_operand.vmem [shape: bf16[8,256], index: 0, kind: input, shape index: {}]
  %s1 = inlined_call_operand.vmem [shape: f32[8,8], index: 1, kind: input, shape index: {}]
  %s2 = inlined_call_operand.hbm [shape: bf16[256,512], index: 2, kind: input, shape index: {}]
  %s3 = inlined_call_operand.vmem [shape: f32[1,512], index: 3, kind: input, shape index: {}]
  %s4 = inlined_call_operand.hbm [shape: bf16[512,512], index: 4, kind: input, shape index: {}]
  %s5 = inlined_call_operand.vmem [shape: f32[1,512], index: 5, kind: input, shape index: {}]
  %s6 = inlined_call_operand.vmem [shape: bf16[512,16], index: 6, kind: input, shape index: {}]
  %s7 = inlined_call_operand.vmem [shape: f32[1,16], index: 7, kind: input, shape index: {}]
  %s8 = inlined_call_operand.vmem [shape: bf16[8,512], index: 8, kind: input, shape index: {}]
  %s9 = inlined_call_operand.vmem [shape: f32[1,512], index: 9, kind: input, shape index: {}]
  %s10 = inlined_call_operand.hbm [shape: bf16[512,512], index: 10, kind: input, shape index: {}]
  %s11 = inlined_call_operand.vmem [shape: f32[1,512], index: 11, kind: input, shape index: {}]
  %s12 = inlined_call_operand.hbm [shape: bf16[512,512], index: 12, kind: input, shape index: {}]
  %s13 = inlined_call_operand.vmem [shape: f32[1,512], index: 13, kind: input, shape index: {}]
  %s14 = inlined_call_operand.hbm [shape: bf16[512,256], index: 14, kind: input, shape index: {}]
  %s15 = inlined_call_operand.vmem [shape: f32[1,256], index: 15, kind: input, shape index: {}]
  %s16 = inlined_call_operand.hbm [shape: f32[8,256], index: 16, kind: output, shape index: {0}]
  %s17 = inlined_call_operand.hbm [shape: f32[8,16], index: 17, kind: output, shape index: {1}]
  %18 = xla_tuple %s16, %s17
  %s19 = sld [smem:[#allocation0]]
  $region102: #{tpu_custom_call.1} parent=0
    _
  %s21 = ssub.s32 1, %s19
  %s22 = scalar_select 0, %s21, %s19
  $region1: #{tpu_custom_call.1} parent=0
    #allocation2 [shape = 'u8[262144]{0}', space=vmem, size = 0x40000, scoped, tag = 'input window, operand 2, single buffered']
    #allocation3 [shape = 's32[1]{0}', space=sflag, size = 0x4, scoped, tag = 'scoped memory for tpu_custom_call.1']
    #allocation4 [shape = 's32[1]{0}', space=sflag, size = 0x4, scoped, tag = 'scoped memory for tpu_custom_call.1']
    #allocation5 [shape = 'u8[524288]{0}', space=vmem, size = 0x80000, scoped, tag = 'input window, operand 4, single buffered']
    #allocation6 [shape = 's32[1]{0}', space=sflag, size = 0x4, scoped, tag = 'scoped memory for tpu_custom_call.1']
    #allocation7 [shape = 'u8[524288]{0}', space=vmem, size = 0x80000, scoped, tag = 'input window, operand 10, single buffered']
    #allocation8 [shape = 'u8[524288]{0}', space=vmem, size = 0x80000, scoped, tag = 'input window, operand 12, single buffered']
    #allocation9 [shape = 's32[1]{0}', space=sflag, size = 0x4, scoped, tag = 'scoped memory for tpu_custom_call.1']
    #allocation10 [shape = 'u8[262144]{0}', space=vmem, size = 0x40000, scoped, tag = 'input window, operand 14, single buffered']
    #allocation11 [shape = 'u8[8192]{0}', space=vmem, size = 0x2000, scoped, tag = 'output window, operand 0, single buffered']
    #allocation12 [shape = 'u8[4096]{0}', space=vmem, size = 0x1000, scoped, tag = 'output window, operand 1, single buffered']
    #allocation13 [shape = 's32[1]{0}', space=sflag, size = 0x4, scoped, tag = 'scoped memory for tpu_custom_call.1']
    %23 = vsyncpa [#allocation3], 0
    %24 = vsyncpa [#allocation6], 0
    %25 = vsyncpa [#allocation9], 0
    %26 = vsyncpa [#allocation4], 0
    %27 = vsyncpa [#allocation13], 0
    // Predicated region
    $region2: #{tpu_custom_call.1} parent=1 // pred_check
      _
    $region3: #{tpu_custom_call.1} parent=1 // pred_check_branch
      %29 = sbr.rel (0) target = $region5
    $region4: #{tpu_custom_call.1} parent=1 // pred_region
      _
    $region5: #{tpu_custom_call.1} parent=1 // pred_fallthru
      _
    // Predicated region
    $region6: #{tpu_custom_call.1} parent=1 // pred_check
      _
    $region7: #{tpu_custom_call.1} parent=1 // pred_check_branch
      %31 = sbr.rel (0) target = $region9
    $region8: #{tpu_custom_call.1} parent=1 // pred_region
      _
    $region9: #{tpu_custom_call.1} parent=1 // pred_fallthru
      _
    // Predicated region
    $region10: #{tpu_custom_call.1} parent=1 // pred_check
      _
    $region11: #{tpu_custom_call.1} parent=1 // pred_check_branch
      %33 = sbr.rel (0) target = $region13
    $region12: #{tpu_custom_call.1} parent=1 // pred_region
      %s35 = ssub.s32 8192, 8192
      %36 = vsyncadd [#allocation3], %s35
      %s37 = sshll.u32 [#allocation2], 4
      %s38 = int_to_ptr.vmem [resolvable:$true] %s37
      %43 = dma.hbm_to_vmem [thread:$0]  %s2, 8192, %s38, [#allocation3], 256, 256, 16
    $region13: #{tpu_custom_call.1} parent=1 // pred_fallthru
      _
    // Predicated region
    $region14: #{tpu_custom_call.1} parent=1 // pred_check
      _
    $region15: #{tpu_custom_call.1} parent=1 // pred_check_branch
      %45 = sbr.rel (0) target = $region17
    $region16: #{tpu_custom_call.1} parent=1 // pred_region
      _
    $region17: #{tpu_custom_call.1} parent=1 // pred_fallthru
      _
    // Predicated region
    $region18: #{tpu_custom_call.1} parent=1 // pred_check
      _
    $region19: #{tpu_custom_call.1} parent=1 // pred_check_branch
      %47 = sbr.rel (0) target = $region21
    $region20: #{tpu_custom_call.1} parent=1 // pred_region
      %s49 = ssub.s32 16384, 16384
      %50 = vsyncadd [#allocation6], %s49
      %s51 = sshll.u32 [#allocation5], 4
      %s52 = int_to_ptr.vmem [resolvable:$true] %s51
      %57 = dma.hbm_to_vmem [thread:$0]  %s4, 16384, %s52, [#allocation6], 256, 256, 16
    $region21: #{tpu_custom_call.1} parent=1 // pred_fallthru
      _
    // Predicated region
    $region22: #{tpu_custom_call.1} parent=1 // pred_check
      _
    $region23: #{tpu_custom_call.1} parent=1 // pred_check_branch
      %59 = sbr.rel (0) target = $region25
    $region24: #{tpu_custom_call.1} parent=1 // pred_region
      _
    $region25: #{tpu_custom_call.1} parent=1 // pred_fallthru
      _
    // Predicated region
    $region26: #{tpu_custom_call.1} parent=1 // pred_check
      _
    $region27: #{tpu_custom_call.1} parent=1 // pred_check_branch
      %61 = sbr.rel (0) target = $region29
    $region28: #{tpu_custom_call.1} parent=1 // pred_region
      _
    $region29: #{tpu_custom_call.1} parent=1 // pred_fallthru
      _
    // Predicated region
    $region30: #{tpu_custom_call.1} parent=1 // pred_check
      _
    $region31: #{tpu_custom_call.1} parent=1 // pred_check_branch
      %63 = sbr.rel (0) target = $region33
    $region32: #{tpu_custom_call.1} parent=1 // pred_region
      _
    $region33: #{tpu_custom_call.1} parent=1 // pred_fallthru
      _
    // Predicated region
    $region34: #{tpu_custom_call.1} parent=1 // pred_check
      _
    $region35: #{tpu_custom_call.1} parent=1 // pred_check_branch
      %65 = sbr.rel (0) target = $region37
    $region36: #{tpu_custom_call.1} parent=1 // pred_region
      _
    $region37: #{tpu_custom_call.1} parent=1 // pred_fallthru
      _
    // Predicated region
    $region38: #{tpu_custom_call.1} parent=1 // pred_check
      _
    $region39: #{tpu_custom_call.1} parent=1 // pred_check_branch
      %67 = sbr.rel (0) target = $region41
    $region40: #{tpu_custom_call.1} parent=1 // pred_region
      _
    $region41: #{tpu_custom_call.1} parent=1 // pred_fallthru
      _
    // Predicated region
    $region42: #{tpu_custom_call.1} parent=1 // pred_check
      _
    $region43: #{tpu_custom_call.1} parent=1 // pred_check_branch
      %69 = sbr.rel (0) target = $region45
    $region44: #{tpu_custom_call.1} parent=1 // pred_region
      %s71 = ssub.s32 16384, 16384
      %72 = vsyncadd [#allocation6], %s71
      %s73 = sshll.u32 [#allocation7], 4
      %s74 = int_to_ptr.vmem [resolvable:$true] %s73
      %79 = dma.hbm_to_vmem [thread:$0]  %s10, 16384, %s74, [#allocation6], 256, 256, 16
    $region45: #{tpu_custom_call.1} parent=1 // pred_fallthru
      _
    // Predicated region
    $region46: #{tpu_custom_call.1} parent=1 // pred_check
      _
    $region47: #{tpu_custom_call.1} parent=1 // pred_check_branch
      %81 = sbr.rel (0) target = $region49
    $region48: #{tpu_custom_call.1} parent=1 // pred_region
      _
    $region49: #{tpu_custom_call.1} parent=1 // pred_fallthru
      _
    // Predicated region
    $region50: #{tpu_custom_call.1} parent=1 // pred_check
      _
    $region51: #{tpu_custom_call.1} parent=1 // pred_check_branch
      %83 = sbr.rel (0) target = $region53
    $region52: #{tpu_custom_call.1} parent=1 // pred_region
      %s85 = ssub.s32 16384, 16384
      %86 = vsyncadd [#allocation9], %s85
      %s87 = sshll.u32 [#allocation8], 4
      %s88 = int_to_ptr.vmem [resolvable:$true] %s87
      %93 = dma.hbm_to_vmem [thread:$0]  %s12, 16384, %s88, [#allocation9], 256, 256, 16
    $region53: #{tpu_custom_call.1} parent=1 // pred_fallthru
      _
    // Predicated region
    $region54: #{tpu_custom_call.1} parent=1 // pred_check
      _
    $region55: #{tpu_custom_call.1} parent=1 // pred_check_branch
      %95 = sbr.rel (0) target = $region57
    $region56: #{tpu_custom_call.1} parent=1 // pred_region
      _
    $region57: #{tpu_custom_call.1} parent=1 // pred_fallthru
      _
    // Predicated region
    $region58: #{tpu_custom_call.1} parent=1 // pred_check
      _
    $region59: #{tpu_custom_call.1} parent=1 // pred_check_branch
      %97 = sbr.rel (0) target = $region61
    $region60: #{tpu_custom_call.1} parent=1 // pred_region
      %s99 = ssub.s32 8192, 8192
      %100 = vsyncadd [#allocation9], %s99
      %s101 = sshll.u32 [#allocation10], 4
      %s102 = int_to_ptr.vmem [resolvable:$true] %s101
      %107 = dma.hbm_to_vmem [thread:$0]  %s14, 8192, %s102, [#allocation9], 128, 128, 8
    $region61: #{tpu_custom_call.1} parent=1 // pred_fallthru
      _
    // Predicated region
    $region62: #{tpu_custom_call.1} parent=1 // pred_check
      _
    $region63: #{tpu_custom_call.1} parent=1 // pred_check_branch
      %109 = sbr.rel (0) target = $region65
    $region64: #{tpu_custom_call.1} parent=1 // pred_region
      _
    $region65: #{tpu_custom_call.1} parent=1 // pred_fallthru
      _
    // Predicated region
    $region66: #{tpu_custom_call.1} parent=1 // pred_check
      _
    $region67: #{tpu_custom_call.1} parent=1 // pred_check_branch
      %111 = sbr.rel (0) target = $region69
    $region68: #{tpu_custom_call.1} parent=1 // pred_region
      %112 = dma.done [#allocation3], 8192
    $region69: #{tpu_custom_call.1} parent=1 // pred_fallthru
      _
    // Predicated region
    $region70: #{tpu_custom_call.1} parent=1 // pred_check
      _
    $region71: #{tpu_custom_call.1} parent=1 // pred_check_branch
      %114 = sbr.rel (0) target = $region73
    $region72: #{tpu_custom_call.1} parent=1 // pred_region
      %115 = dma.done [#allocation6], 16384
    $region73: #{tpu_custom_call.1} parent=1 // pred_fallthru
      _
    // Predicated region
    $region74: #{tpu_custom_call.1} parent=1 // pred_check
      _
    $region75: #{tpu_custom_call.1} parent=1 // pred_check_branch
      %117 = sbr.rel (0) target = $region77
    $region76: #{tpu_custom_call.1} parent=1 // pred_region
      %118 = dma.done [#allocation6], 16384
    $region77: #{tpu_custom_call.1} parent=1 // pred_fallthru
      _
    // Predicated region
    $region78: #{tpu_custom_call.1} parent=1 // pred_check
      _
    $region79: #{tpu_custom_call.1} parent=1 // pred_check_branch
      %120 = sbr.rel (0) target = $region81
    $region80: #{tpu_custom_call.1} parent=1 // pred_region
      %121 = dma.done [#allocation9], 16384
    $region81: #{tpu_custom_call.1} parent=1 // pred_fallthru
      _
    // Predicated region
    $region82: #{tpu_custom_call.1} parent=1 // pred_check
      _
    $region83: #{tpu_custom_call.1} parent=1 // pred_check_branch
      %123 = sbr.rel (0) target = $region85
    $region84: #{tpu_custom_call.1} parent=1 // pred_region
      %124 = dma.done [#allocation9], 8192
    $region85: #{tpu_custom_call.1} parent=1 // pred_fallthru
      _
    %v126 = vld [vmem:[%s0] sm:$0xff]
    %v127 = vld [vmem:[#allocation2] sm:$0xff]
    %v128 = vld [vmem:[#allocation2 + $0x8] sm:$0xff]
    %v129 = vld [vmem:[#allocation2 + $0x10] sm:$0xff]
    %v130 = vld [vmem:[#allocation2 + $0x18] sm:$0xff]
    %v131 = vld [vmem:[#allocation2 + $0x20] sm:$0xff]
    %v132 = vld [vmem:[#allocation2 + $0x28] sm:$0xff]
    %v133 = vld [vmem:[#allocation2 + $0x30] sm:$0xff]
    %v134 = vld [vmem:[#allocation2 + $0x38] sm:$0xff]
    %v135 = vld [vmem:[#allocation2 + $0x40] sm:$0xff]
    %v136 = vld [vmem:[#allocation2 + $0x48] sm:$0xff]
    %v137 = vld [vmem:[#allocation2 + $0x50] sm:$0xff]
    %v138 = vld [vmem:[#allocation2 + $0x58] sm:$0xff]
    %v139 = vld [vmem:[#allocation2 + $0x60] sm:$0xff]
    %v140 = vld [vmem:[#allocation2 + $0x68] sm:$0xff]
    %v141 = vld [vmem:[#allocation2 + $0x70] sm:$0xff]
    %v142 = vld [vmem:[#allocation2 + $0x78] sm:$0xff]
    %v143 = vld [vmem:[#allocation2 + $0x80] sm:$0xff]
    %v144 = vld [vmem:[#allocation2 + $0x88] sm:$0xff]
    %v145 = vld [vmem:[#allocation2 + $0x90] sm:$0xff]
    %v146 = vld [vmem:[#allocation2 + $0x98] sm:$0xff]
    %v147 = vld [vmem:[#allocation2 + $0xa0] sm:$0xff]
    %v148 = vld [vmem:[#allocation2 + $0xa8] sm:$0xff]
    %v149 = vld [vmem:[#allocation2 + $0xb0] sm:$0xff]
    %v150 = vld [vmem:[#allocation2 + $0xb8] sm:$0xff]
    %v151 = vld [vmem:[#allocation2 + $0xc0] sm:$0xff]
    %v152 = vld [vmem:[#allocation2 + $0xc8] sm:$0xff]
    %v153 = vld [vmem:[#allocation2 + $0xd0] sm:$0xff]
    %v154 = vld [vmem:[#allocation2 + $0xd8] sm:$0xff]
    %v155 = vld [vmem:[#allocation2 + $0xe0] sm:$0xff]
    %v156 = vld [vmem:[#allocation2 + $0xe8] sm:$0xff]
    %v157 = vld [vmem:[#allocation2 + $0xf0] sm:$0xff]
    %v158 = vld [vmem:[#allocation2 + $0xf8] sm:$0xff]
    %v159 = vld [vmem:[#allocation2 + $0x100] sm:$0xff]
    %v160 = vld [vmem:[#allocation2 + $0x108] sm:$0xff]
    %v161 = vld [vmem:[#allocation2 + $0x110] sm:$0xff]
    %v162 = vld [vmem:[#allocation2 + $0x118] sm:$0xff]
    %v163 = vld [vmem:[#allocation2 + $0x120] sm:$0xff]
    %v164 = vld [vmem:[#allocation2 + $0x128] sm:$0xff]
    %v165 = vld [vmem:[#allocation2 + $0x130] sm:$0xff]
    %v166 = vld [vmem:[#allocation2 + $0x138] sm:$0xff]
    %v167 = vld [vmem:[#allocation2 + $0x140] sm:$0xff]
    %v168 = vld [vmem:[#allocation2 + $0x148] sm:$0xff]
    %v169 = vld [vmem:[#allocation2 + $0x150] sm:$0xff]
    %v170 = vld [vmem:[#allocation2 + $0x158] sm:$0xff]
    %v171 = vld [vmem:[#allocation2 + $0x160] sm:$0xff]
    %v172 = vld [vmem:[#allocation2 + $0x168] sm:$0xff]
    %v173 = vld [vmem:[#allocation2 + $0x170] sm:$0xff]
    %v174 = vld [vmem:[#allocation2 + $0x178] sm:$0xff]
    %v175 = vld [vmem:[#allocation2 + $0x180] sm:$0xff]
    %v176 = vld [vmem:[#allocation2 + $0x188] sm:$0xff]
    %v177 = vld [vmem:[#allocation2 + $0x190] sm:$0xff]
    %v178 = vld [vmem:[#allocation2 + $0x198] sm:$0xff]
    %v179 = vld [vmem:[#allocation2 + $0x1a0] sm:$0xff]
    %v180 = vld [vmem:[#allocation2 + $0x1a8] sm:$0xff]
    %v181 = vld [vmem:[#allocation2 + $0x1b0] sm:$0xff]
    %v182 = vld [vmem:[#allocation2 + $0x1b8] sm:$0xff]
    %v183 = vld [vmem:[#allocation2 + $0x1c0] sm:$0xff]
    %v184 = vld [vmem:[#allocation2 + $0x1c8] sm:$0xff]
    %v185 = vld [vmem:[#allocation2 + $0x1d0] sm:$0xff]
    %v186 = vld [vmem:[#allocation2 + $0x1d8] sm:$0xff]
    %v187 = vld [vmem:[#allocation2 + $0x1e0] sm:$0xff]
    %v188 = vld [vmem:[#allocation2 + $0x1e8] sm:$0xff]
    %v189 = vld [vmem:[#allocation2 + $0x1f0] sm:$0xff]
    %v190 = vld [vmem:[#allocation2 + $0x1f8] sm:$0xff]
    %v191 = vld [vmem:[%s3] sm:$0xf]
    %v193 = vlaneseq
    %v194 = vshrl.u32 %v193, 7
    %v195 = vsub.s32 0, %v194
    %v196 = vrot.slane %v191, %v195
    %v197 = vlaneseq
    %v198 = vshrl.u32 %v197, 7
    %v199 = vsub.s32 1, %v198
    %v200 = vrot.slane %v191, %v199
    %v201 = vlaneseq
    %v202 = vshrl.u32 %v201, 7
    %v203 = vsub.s32 2, %v202
    %v204 = vrot.slane %v191, %v203
    %v205 = vlaneseq
    %v206 = vshrl.u32 %v205, 7
    %v207 = vsub.s32 3, %v206
    %v208 = vrot.slane %v191, %v207
    %v214 = vunpack.c.l.b16 %v126
    %v215 = vunpack.c.h.b16 %v126
    %v216 = vpack.c.b16 %v214, %v214
    %v217 = vpack.c.b16 %v215, %v215
    %v284 = vunpack.c.l.b16 %v127
    %v285 = vunpack.c.h.b16 %v127
    %v286 = vunpack.c.l.b16 %v128
    %v287 = vunpack.c.h.b16 %v128
    %v288 = vunpack.c.l.b16 %v129
    %v289 = vunpack.c.h.b16 %v129
    %v290 = vunpack.c.l.b16 %v130
    %v291 = vunpack.c.h.b16 %v130
    %v292 = vunpack.c.l.b16 %v131
    %v293 = vunpack.c.h.b16 %v131
    %v294 = vunpack.c.l.b16 %v132
    %v295 = vunpack.c.h.b16 %v132
    %v296 = vunpack.c.l.b16 %v133
    %v297 = vunpack.c.h.b16 %v133
    %v298 = vunpack.c.l.b16 %v134
    %v299 = vunpack.c.h.b16 %v134
    %v300 = vunpack.c.l.b16 %v135
    %v301 = vunpack.c.h.b16 %v135
    %v302 = vunpack.c.l.b16 %v136
    %v303 = vunpack.c.h.b16 %v136
    %v304 = vunpack.c.l.b16 %v137
    %v305 = vunpack.c.h.b16 %v137
    %v306 = vunpack.c.l.b16 %v138
    %v307 = vunpack.c.h.b16 %v138
    %v308 = vunpack.c.l.b16 %v139
    %v309 = vunpack.c.h.b16 %v139
    %v310 = vunpack.c.l.b16 %v140
    %v311 = vunpack.c.h.b16 %v140
    %v312 = vunpack.c.l.b16 %v141
    %v313 = vunpack.c.h.b16 %v141
    %v314 = vunpack.c.l.b16 %v142
    %v315 = vunpack.c.h.b16 %v142
    %v316 = vunpack.c.l.b16 %v143
    %v317 = vunpack.c.h.b16 %v143
    %v318 = vunpack.c.l.b16 %v144
    %v319 = vunpack.c.h.b16 %v144
    %v320 = vunpack.c.l.b16 %v145
    %v321 = vunpack.c.h.b16 %v145
    %v322 = vunpack.c.l.b16 %v146
    %v323 = vunpack.c.h.b16 %v146
    %v324 = vunpack.c.l.b16 %v147
    %v325 = vunpack.c.h.b16 %v147
    %v326 = vunpack.c.l.b16 %v148
    %v327 = vunpack.c.h.b16 %v148
    %v328 = vunpack.c.l.b16 %v149
    %v329 = vunpack.c.h.b16 %v149
    %v330 = vunpack.c.l.b16 %v150
    %v331 = vunpack.c.h.b16 %v150
    %v332 = vunpack.c.l.b16 %v151
    %v333 = vunpack.c.h.b16 %v151
    %v334 = vunpack.c.l.b16 %v152
    %v335 = vunpack.c.h.b16 %v152
    %v336 = vunpack.c.l.b16 %v153
    %v337 = vunpack.c.h.b16 %v153
    %v338 = vunpack.c.l.b16 %v154
    %v339 = vunpack.c.h.b16 %v154
    %v340 = vunpack.c.l.b16 %v155
    %v341 = vunpack.c.h.b16 %v155
    %v342 = vunpack.c.l.b16 %v156
    %v343 = vunpack.c.h.b16 %v156
    %v344 = vunpack.c.l.b16 %v157
    %v345 = vunpack.c.h.b16 %v157
    %v346 = vunpack.c.l.b16 %v158
    %v347 = vunpack.c.h.b16 %v158
    %v348 = vunpack.c.l.b16 %v159
    %v349 = vunpack.c.h.b16 %v159
    %v350 = vunpack.c.l.b16 %v160
    %v351 = vunpack.c.h.b16 %v160
    %v352 = vunpack.c.l.b16 %v161
    %v353 = vunpack.c.h.b16 %v161
    %v354 = vunpack.c.l.b16 %v162
    %v355 = vunpack.c.h.b16 %v162
    %v356 = vunpack.c.l.b16 %v163
    %v357 = vunpack.c.h.b16 %v163
    %v358 = vunpack.c.l.b16 %v164
    %v359 = vunpack.c.h.b16 %v164
    %v360 = vunpack.c.l.b16 %v165
    %v361 = vunpack.c.h.b16 %v165
    %v362 = vunpack.c.l.b16 %v166
    %v363 = vunpack.c.h.b16 %v166
    %v364 = vunpack.c.l.b16 %v167
    %v365 = vunpack.c.h.b16 %v167
    %v366 = vunpack.c.l.b16 %v168
    %v367 = vunpack.c.h.b16 %v168
    %v368 = vunpack.c.l.b16 %v169
    %v369 = vunpack.c.h.b16 %v169
    %v370 = vunpack.c.l.b16 %v170
    %v371 = vunpack.c.h.b16 %v170
    %v372 = vunpack.c.l.b16 %v171
    %v373 = vunpack.c.h.b16 %v171
    %v374 = vunpack.c.l.b16 %v172
    %v375 = vunpack.c.h.b16 %v172
    %v376 = vunpack.c.l.b16 %v173
    %v377 = vunpack.c.h.b16 %v173
    %v378 = vunpack.c.l.b16 %v174
    %v379 = vunpack.c.h.b16 %v174
    %v380 = vunpack.c.l.b16 %v175
    %v381 = vunpack.c.h.b16 %v175
    %v382 = vunpack.c.l.b16 %v176
    %v383 = vunpack.c.h.b16 %v176
    %v384 = vunpack.c.l.b16 %v177
    %v385 = vunpack.c.h.b16 %v177
    %v386 = vunpack.c.l.b16 %v178
    %v387 = vunpack.c.h.b16 %v178
    %v388 = vunpack.c.l.b16 %v179
    %v389 = vunpack.c.h.b16 %v179
    %v390 = vunpack.c.l.b16 %v180
    %v391 = vunpack.c.h.b16 %v180
    %v392 = vunpack.c.l.b16 %v181
    %v393 = vunpack.c.h.b16 %v181
    %v394 = vunpack.c.l.b16 %v182
    %v395 = vunpack.c.h.b16 %v182
    %v396 = vunpack.c.l.b16 %v183
    %v397 = vunpack.c.h.b16 %v183
    %v398 = vunpack.c.l.b16 %v184
    %v399 = vunpack.c.h.b16 %v184
    %v400 = vunpack.c.l.b16 %v185
    %v401 = vunpack.c.h.b16 %v185
    %v402 = vunpack.c.l.b16 %v186
    %v403 = vunpack.c.h.b16 %v186
    %v404 = vunpack.c.l.b16 %v187
    %v405 = vunpack.c.h.b16 %v187
    %v406 = vunpack.c.l.b16 %v188
    %v407 = vunpack.c.h.b16 %v188
    %v408 = vunpack.c.l.b16 %v189
    %v409 = vunpack.c.h.b16 %v189
    %v410 = vunpack.c.l.b16 %v190
    %v411 = vunpack.c.h.b16 %v190
    %v412 = vpack.c.b16 %v288, %v284
    %v413 = vpack.c.b16 %v289, %v285
    %v414 = vpack.c.b16 %v290, %v286
    %v415 = vpack.c.b16 %v291, %v287
    %v416 = vpack.c.b16 %v296, %v292
    %v417 = vpack.c.b16 %v297, %v293
    %v418 = vpack.c.b16 %v298, %v294
    %v419 = vpack.c.b16 %v299, %v295
    %v420 = vpack.c.b16 %v304, %v300
    %v421 = vpack.c.b16 %v305, %v301
    %v422 = vpack.c.b16 %v306, %v302
    %v423 = vpack.c.b16 %v307, %v303
    %v424 = vpack.c.b16 %v312, %v308
    %v425 = vpack.c.b16 %v313, %v309
    %v426 = vpack.c.b16 %v314, %v310
    %v427 = vpack.c.b16 %v315, %v311
    %v428 = vpack.c.b16 %v320, %v316
    %v429 = vpack.c.b16 %v321, %v317
    %v430 = vpack.c.b16 %v322, %v318
    %v431 = vpack.c.b16 %v323, %v319
    %v432 = vpack.c.b16 %v328, %v324
    %v433 = vpack.c.b16 %v329, %v325
    %v434 = vpack.c.b16 %v330, %v326
    %v435 = vpack.c.b16 %v331, %v327
    %v436 = vpack.c.b16 %v336, %v332
    %v437 = vpack.c.b16 %v337, %v333
    %v438 = vpack.c.b16 %v338, %v334
    %v439 = vpack.c.b16 %v339, %v335
    %v440 = vpack.c.b16 %v344, %v340
    %v441 = vpack.c.b16 %v345, %v341
    %v442 = vpack.c.b16 %v346, %v342
    %v443 = vpack.c.b16 %v347, %v343
    %v444 = vpack.c.b16 %v352, %v348
    %v445 = vpack.c.b16 %v353, %v349
    %v446 = vpack.c.b16 %v354, %v350
    %v447 = vpack.c.b16 %v355, %v351
    %v448 = vpack.c.b16 %v360, %v356
    %v449 = vpack.c.b16 %v361, %v357
    %v450 = vpack.c.b16 %v362, %v358
    %v451 = vpack.c.b16 %v363, %v359
    %v452 = vpack.c.b16 %v368, %v364
    %v453 = vpack.c.b16 %v369, %v365
    %v454 = vpack.c.b16 %v370, %v366
    %v455 = vpack.c.b16 %v371, %v367
    %v456 = vpack.c.b16 %v376, %v372
    %v457 = vpack.c.b16 %v377, %v373
    %v458 = vpack.c.b16 %v378, %v374
    %v459 = vpack.c.b16 %v379, %v375
    %v460 = vpack.c.b16 %v384, %v380
    %v461 = vpack.c.b16 %v385, %v381
    %v462 = vpack.c.b16 %v386, %v382
    %v463 = vpack.c.b16 %v387, %v383
    %v464 = vpack.c.b16 %v392, %v388
    %v465 = vpack.c.b16 %v393, %v389
    %v466 = vpack.c.b16 %v394, %v390
    %v467 = vpack.c.b16 %v395, %v391
    %v468 = vpack.c.b16 %v400, %v396
    %v469 = vpack.c.b16 %v401, %v397
    %v470 = vpack.c.b16 %v402, %v398
    %v471 = vpack.c.b16 %v403, %v399
    %v472 = vpack.c.b16 %v408, %v404
    %v473 = vpack.c.b16 %v409, %v405
    %v474 = vpack.c.b16 %v410, %v406
    %v475 = vpack.c.b16 %v411, %v407
    %540 = vmatprep.subr.bf16.mxu0 %v413
    %541 = vmatpush1.bf16.msra.mxu0 %v412
    %542 = vmatprep.subr.bf16.mxu0 %v417
    %543 = vmatpush1.bf16.msra.mxu0 %v416
    %544 = vmatprep.subr.bf16.mxu0 %v421
    %545 = vmatpush1.bf16.msra.mxu0 %v420
    %546 = vmatprep.subr.bf16.mxu0 %v425
    %547 = vmatpush1.bf16.msra.mxu0 %v424
    %548 = vmatprep.subr.bf16.mxu0 %v429
    %549 = vmatpush1.bf16.msra.mxu0 %v428
    %550 = vmatprep.subr.bf16.mxu0 %v433
    %551 = vmatpush1.bf16.msra.mxu0 %v432
    %552 = vmatprep.subr.bf16.mxu0 %v437
    %553 = vmatpush1.bf16.msra.mxu0 %v436
    %554 = vmatprep.subr.bf16.mxu0 %v441
    %555 = vmatpush1.bf16.msra.mxu0 %v440
    %556 = vmatprep.subr.bf16.mxu0 %v445
    %557 = vmatpush1.bf16.msra.mxu0 %v444
    %558 = vmatprep.subr.bf16.mxu0 %v449
    %559 = vmatpush1.bf16.msra.mxu0 %v448
    %560 = vmatprep.subr.bf16.mxu0 %v453
    %561 = vmatpush1.bf16.msra.mxu0 %v452
    %562 = vmatprep.subr.bf16.mxu0 %v457
    %563 = vmatpush1.bf16.msra.mxu0 %v456
    %564 = vmatprep.subr.bf16.mxu0 %v461
    %565 = vmatpush1.bf16.msra.mxu0 %v460
    %566 = vmatprep.subr.bf16.mxu0 %v465
    %567 = vmatpush1.bf16.msra.mxu0 %v464
    %568 = vmatprep.subr.bf16.mxu0 %v469
    %569 = vmatpush1.bf16.msra.mxu0 %v468
    %570 = vmatprep.subr.bf16.mxu0 %v473
    %571 = vmatpush1.bf16.msra.mxu0 %v472
    %572 = vmatprep.mubr.bf16.mxu0 %v217
    %573 = vmatmul.mubr.bf16.gmra.mrb[0].mxu0 %v216
    %v574 = vpop.f32.mrb[0].mxu0
    %v575 = vadd.f32 %v196, %v574
    %v576 = vpop.f32.mrb[0].mxu0
    %v577 = vadd.f32 %v200, %v576
    %v578 = vpop.f32.mrb[0].mxu0
    %v579 = vpop.f32.mrb[0].mxu0
    %580 = vdwg.mxu0
    %581 = vmatprep.subr.bf16.mxu0 %v415
    %582 = vmatpush1.bf16.msra.mxu0 %v414
    %583 = vmatprep.subr.bf16.mxu0 %v419
    %584 = vmatpush1.bf16.msra.mxu0 %v418
    %585 = vmatprep.subr.bf16.mxu0 %v423
    %586 = vmatpush1.bf16.msra.mxu0 %v422
    %587 = vmatprep.subr.bf16.mxu0 %v427
    %588 = vmatpush1.bf16.msra.mxu0 %v426
    %589 = vmatprep.subr.bf16.mxu0 %v431
    %590 = vmatpush1.bf16.msra.mxu0 %v430
    %591 = vmatprep.subr.bf16.mxu0 %v435
    %592 = vmatpush1.bf16.msra.mxu0 %v434
    %593 = vmatprep.subr.bf16.mxu0 %v439
    %594 = vmatpush1.bf16.msra.mxu0 %v438
    %595 = vmatprep.subr.bf16.mxu0 %v443
    %596 = vmatpush1.bf16.msra.mxu0 %v442
    %597 = vmatprep.subr.bf16.mxu0 %v447
    %598 = vmatpush1.bf16.msra.mxu0 %v446
    %599 = vmatprep.subr.bf16.mxu0 %v451
    %600 = vmatpush1.bf16.msra.mxu0 %v450
    %601 = vmatprep.subr.bf16.mxu0 %v455
    %602 = vmatpush1.bf16.msra.mxu0 %v454
    %603 = vmatprep.subr.bf16.mxu0 %v459
    %604 = vmatpush1.bf16.msra.mxu0 %v458
    %605 = vmatprep.subr.bf16.mxu0 %v463
    %606 = vmatpush1.bf16.msra.mxu0 %v462
    %607 = vmatprep.subr.bf16.mxu0 %v467
    %608 = vmatpush1.bf16.msra.mxu0 %v466
    %609 = vmatprep.subr.bf16.mxu0 %v471
    %610 = vmatpush1.bf16.msra.mxu0 %v470
    %611 = vmatprep.subr.bf16.mxu0 %v475
    %612 = vmatpush1.bf16.msra.mxu0 %v474
    %613 = vmatprep.mubr.bf16.mxu0 %v217
    %614 = vmatmul.mubr.bf16.gmra.mrb[0].mxu0 %v216
    %v615 = vpop.f32.mrb[0].mxu0
    %v616 = vadd.f32 %v204, %v615
    %v617 = vpop.f32.mrb[0].mxu0
    %v618 = vadd.f32 %v208, %v617
    %v619 = vpop.f32.mrb[0].mxu0
    %v620 = vpop.f32.mrb[0].mxu0
    %621 = vdwg.mxu0
    %v622 = vpack.c.bf16 %v575, %v575
    %v623 = vpack.c.bf16 %v577, %v577
    %v624 = vpack.c.bf16 %v616, %v616
    %v625 = vpack.c.bf16 %v618, %v618
    %v626 = vmax.bf16 %v622, 0
    %v627 = vmax.bf16 %v623, 0
    %v628 = vmax.bf16 %v624, 0
    %v629 = vmax.bf16 %v625, 0
    %v630 = vld [vmem:[#allocation5] sm:$0xff]
    %v631 = vld [vmem:[#allocation5 + $0x8] sm:$0xff]
    %v632 = vld [vmem:[#allocation5 + $0x10] sm:$0xff]
    %v633 = vld [vmem:[#allocation5 + $0x18] sm:$0xff]
    %v634 = vld [vmem:[#allocation5 + $0x20] sm:$0xff]
    %v635 = vld [vmem:[#allocation5 + $0x28] sm:$0xff]
    %v636 = vld [vmem:[#allocation5 + $0x30] sm:$0xff]
    %v637 = vld [vmem:[#allocation5 + $0x38] sm:$0xff]
    %v638 = vld [vmem:[#allocation5 + $0x40] sm:$0xff]
    %v639 = vld [vmem:[#allocation5 + $0x48] sm:$0xff]
    %v640 = vld [vmem:[#allocation5 + $0x50] sm:$0xff]
    %v641 = vld [vmem:[#allocation5 + $0x58] sm:$0xff]
    %v642 = vld [vmem:[#allocation5 + $0x60] sm:$0xff]
    %v643 = vld [vmem:[#allocation5 + $0x68] sm:$0xff]
    %v644 = vld [vmem:[#allocation5 + $0x70] sm:$0xff]
    %v645 = vld [vmem:[#allocation5 + $0x78] sm:$0xff]
    %v646 = vld [vmem:[#allocation5 + $0x80] sm:$0xff]
    %v647 = vld [vmem:[#allocation5 + $0x88] sm:$0xff]
    %v648 = vld [vmem:[#allocation5 + $0x90] sm:$0xff]
    %v649 = vld [vmem:[#allocation5 + $0x98] sm:$0xff]
    %v650 = vld [vmem:[#allocation5 + $0xa0] sm:$0xff]
    %v651 = vld [vmem:[#allocation5 + $0xa8] sm:$0xff]
    %v652 = vld [vmem:[#allocation5 + $0xb0] sm:$0xff]
    %v653 = vld [vmem:[#allocation5 + $0xb8] sm:$0xff]
    %v654 = vld [vmem:[#allocation5 + $0xc0] sm:$0xff]
    %v655 = vld [vmem:[#allocation5 + $0xc8] sm:$0xff]
    %v656 = vld [vmem:[#allocation5 + $0xd0] sm:$0xff]
    %v657 = vld [vmem:[#allocation5 + $0xd8] sm:$0xff]
    %v658 = vld [vmem:[#allocation5 + $0xe0] sm:$0xff]
    %v659 = vld [vmem:[#allocation5 + $0xe8] sm:$0xff]
    %v660 = vld [vmem:[#allocation5 + $0xf0] sm:$0xff]
    %v661 = vld [vmem:[#allocation5 + $0xf8] sm:$0xff]
    %v662 = vld [vmem:[#allocation5 + $0x100] sm:$0xff]
    %v663 = vld [vmem:[#allocation5 + $0x108] sm:$0xff]
    %v664 = vld [vmem:[#allocation5 + $0x110] sm:$0xff]
    %v665 = vld [vmem:[#allocation5 + $0x118] sm:$0xff]
    %v666 = vld [vmem:[#allocation5 + $0x120] sm:$0xff]
    %v667 = vld [vmem:[#allocation5 + $0x128] sm:$0xff]
    %v668 = vld [vmem:[#allocation5 + $0x130] sm:$0xff]
    %v669 = vld [vmem:[#allocation5 + $0x138] sm:$0xff]
    %v670 = vld [vmem:[#allocation5 + $0x140] sm:$0xff]
    %v671 = vld [vmem:[#allocation5 + $0x148] sm:$0xff]
    %v672 = vld [vmem:[#allocation5 + $0x150] sm:$0xff]
    %v673 = vld [vmem:[#allocation5 + $0x158] sm:$0xff]
    %v674 = vld [vmem:[#allocation5 + $0x160] sm:$0xff]
    %v675 = vld [vmem:[#allocation5 + $0x168] sm:$0xff]
    %v676 = vld [vmem:[#allocation5 + $0x170] sm:$0xff]
    %v677 = vld [vmem:[#allocation5 + $0x178] sm:$0xff]
    %v678 = vld [vmem:[#allocation5 + $0x180] sm:$0xff]
    %v679 = vld [vmem:[#allocation5 + $0x188] sm:$0xff]
    %v680 = vld [vmem:[#allocation5 + $0x190] sm:$0xff]
    %v681 = vld [vmem:[#allocation5 + $0x198] sm:$0xff]
    %v682 = vld [vmem:[#allocation5 + $0x1a0] sm:$0xff]
    %v683 = vld [vmem:[#allocation5 + $0x1a8] sm:$0xff]
    %v684 = vld [vmem:[#allocation5 + $0x1b0] sm:$0xff]
    %v685 = vld [vmem:[#allocation5 + $0x1b8] sm:$0xff]
    %v686 = vld [vmem:[#allocation5 + $0x1c0] sm:$0xff]
    %v687 = vld [vmem:[#allocation5 + $0x1c8] sm:$0xff]
    %v688 = vld [vmem:[#allocation5 + $0x1d0] sm:$0xff]
    %v689 = vld [vmem:[#allocation5 + $0x1d8] sm:$0xff]
    %v690 = vld [vmem:[#allocation5 + $0x1e0] sm:$0xff]
    %v691 = vld [vmem:[#allocation5 + $0x1e8] sm:$0xff]
    %v692 = vld [vmem:[#allocation5 + $0x1f0] sm:$0xff]
    %v693 = vld [vmem:[#allocation5 + $0x1f8] sm:$0xff]
    %v694 = vld [vmem:[#allocation5 + $0x200] sm:$0xff]
    %v695 = vld [vmem:[#allocation5 + $0x208] sm:$0xff]
    %v696 = vld [vmem:[#allocation5 + $0x210] sm:$0xff]
    %v697 = vld [vmem:[#allocation5 + $0x218] sm:$0xff]
    %v698 = vld [vmem:[#allocation5 + $0x220] sm:$0xff]
    %v699 = vld [vmem:[#allocation5 + $0x228] sm:$0xff]
    %v700 = vld [vmem:[#allocation5 + $0x230] sm:$0xff]
    %v701 = vld [vmem:[#allocation5 + $0x238] sm:$0xff]
    %v702 = vld [vmem:[#allocation5 + $0x240] sm:$0xff]
    %v703 = vld [vmem:[#allocation5 + $0x248] sm:$0xff]
    %v704 = vld [vmem:[#allocation5 + $0x250] sm:$0xff]
    %v705 = vld [vmem:[#allocation5 + $0x258] sm:$0xff]
    %v706 = vld [vmem:[#allocation5 + $0x260] sm:$0xff]
    %v707 = vld [vmem:[#allocation5 + $0x268] sm:$0xff]
    %v708 = vld [vmem:[#allocation5 + $0x270] sm:$0xff]
    %v709 = vld [vmem:[#allocation5 + $0x278] sm:$0xff]
    %v710 = vld [vmem:[#allocation5 + $0x280] sm:$0xff]
    %v711 = vld [vmem:[#allocation5 + $0x288] sm:$0xff]
    %v712 = vld [vmem:[#allocation5 + $0x290] sm:$0xff]
    %v713 = vld [vmem:[#allocation5 + $0x298] sm:$0xff]
    %v714 = vld [vmem:[#allocation5 + $0x2a0] sm:$0xff]
    %v715 = vld [vmem:[#allocation5 + $0x2a8] sm:$0xff]
    %v716 = vld [vmem:[#allocation5 + $0x2b0] sm:$0xff]
    %v717 = vld [vmem:[#allocation5 + $0x2b8] sm:$0xff]
    %v718 = vld [vmem:[#allocation5 + $0x2c0] sm:$0xff]
    %v719 = vld [vmem:[#allocation5 + $0x2c8] sm:$0xff]
    %v720 = vld [vmem:[#allocation5 + $0x2d0] sm:$0xff]
    %v721 = vld [vmem:[#allocation5 + $0x2d8] sm:$0xff]
    %v722 = vld [vmem:[#allocation5 + $0x2e0] sm:$0xff]
    %v723 = vld [vmem:[#allocation5 + $0x2e8] sm:$0xff]
    %v724 = vld [vmem:[#allocation5 + $0x2f0] sm:$0xff]
    %v725 = vld [vmem:[#allocation5 + $0x2f8] sm:$0xff]
    %v726 = vld [vmem:[#allocation5 + $0x300] sm:$0xff]
    %v727 = vld [vmem:[#allocation5 + $0x308] sm:$0xff]
    %v728 = vld [vmem:[#allocation5 + $0x310] sm:$0xff]
    %v729 = vld [vmem:[#allocation5 + $0x318] sm:$0xff]
    %v730 = vld [vmem:[#allocation5 + $0x320] sm:$0xff]
    %v731 = vld [vmem:[#allocation5 + $0x328] sm:$0xff]
    %v732 = vld [vmem:[#allocation5 + $0x330] sm:$0xff]
    %v733 = vld [vmem:[#allocation5 + $0x338] sm:$0xff]
    %v734 = vld [vmem:[#allocation5 + $0x340] sm:$0xff]
    %v735 = vld [vmem:[#allocation5 + $0x348] sm:$0xff]
    %v736 = vld [vmem:[#allocation5 + $0x350] sm:$0xff]
    %v737 = vld [vmem:[#allocation5 + $0x358] sm:$0xff]
    %v738 = vld [vmem:[#allocation5 + $0x360] sm:$0xff]
    %v739 = vld [vmem:[#allocation5 + $0x368] sm:$0xff]
    %v740 = vld [vmem:[#allocation5 + $0x370] sm:$0xff]
    %v741 = vld [vmem:[#allocation5 + $0x378] sm:$0xff]
    %v742 = vld [vmem:[#allocation5 + $0x380] sm:$0xff]
    %v743 = vld [vmem:[#allocation5 + $0x388] sm:$0xff]
    %v744 = vld [vmem:[#allocation5 + $0x390] sm:$0xff]
    %v745 = vld [vmem:[#allocation5 + $0x398] sm:$0xff]
    %v746 = vld [vmem:[#allocation5 + $0x3a0] sm:$0xff]
    %v747 = vld [vmem:[#allocation5 + $0x3a8] sm:$0xff]
    %v748 = vld [vmem:[#allocation5 + $0x3b0] sm:$0xff]
    %v749 = vld [vmem:[#allocation5 + $0x3b8] sm:$0xff]
    %v750 = vld [vmem:[#allocation5 + $0x3c0] sm:$0xff]
    %v751 = vld [vmem:[#allocation5 + $0x3c8] sm:$0xff]
    %v752 = vld [vmem:[#allocation5 + $0x3d0] sm:$0xff]
    %v753 = vld [vmem:[#allocation5 + $0x3d8] sm:$0xff]
    %v754 = vld [vmem:[#allocation5 + $0x3e0] sm:$0xff]
    %v755 = vld [vmem:[#allocation5 + $0x3e8] sm:$0xff]
    %v756 = vld [vmem:[#allocation5 + $0x3f0] sm:$0xff]
    %v757 = vld [vmem:[#allocation5 + $0x3f8] sm:$0xff]
    %v758 = vld [vmem:[%s5] sm:$0xf]
    %v760 = vlaneseq
    %v761 = vshrl.u32 %v760, 7
    %v762 = vsub.s32 0, %v761
    %v763 = vrot.slane %v758, %v762
    %v764 = vlaneseq
    %v765 = vshrl.u32 %v764, 7
    %v766 = vsub.s32 1, %v765
    %v767 = vrot.slane %v758, %v766
    %v768 = vlaneseq
    %v769 = vshrl.u32 %v768, 7
    %v770 = vsub.s32 2, %v769
    %v771 = vrot.slane %v758, %v770
    %v772 = vlaneseq
    %v773 = vshrl.u32 %v772, 7
    %v774 = vsub.s32 3, %v773
    %v775 = vrot.slane %v758, %v774
    %v908 = vunpack.c.l.b16 %v630
    %v909 = vunpack.c.h.b16 %v630
    %v910 = vunpack.c.l.b16 %v631
    %v911 = vunpack.c.h.b16 %v631
    %v912 = vunpack.c.l.b16 %v632
    %v913 = vunpack.c.h.b16 %v632
    %v914 = vunpack.c.l.b16 %v633
    %v915 = vunpack.c.h.b16 %v633
    %v916 = vunpack.c.l.b16 %v634
    %v917 = vunpack.c.h.b16 %v634
    %v918 = vunpack.c.l.b16 %v635
    %v919 = vunpack.c.h.b16 %v635
    %v920 = vunpack.c.l.b16 %v636
    %v921 = vunpack.c.h.b16 %v636
    %v922 = vunpack.c.l.b16 %v637
    %v923 = vunpack.c.h.b16 %v637
    %v924 = vunpack.c.l.b16 %v638
    %v925 = vunpack.c.h.b16 %v638
    %v926 = vunpack.c.l.b16 %v639
    %v927 = vunpack.c.h.b16 %v639
    %v928 = vunpack.c.l.b16 %v640
    %v929 = vunpack.c.h.b16 %v640
    %v930 = vunpack.c.l.b16 %v641
    %v931 = vunpack.c.h.b16 %v641
    %v932 = vunpack.c.l.b16 %v642
    %v933 = vunpack.c.h.b16 %v642
    %v934 = vunpack.c.l.b16 %v643
    %v935 = vunpack.c.h.b16 %v643
    %v936 = vunpack.c.l.b16 %v644
    %v937 = vunpack.c.h.b16 %v644
    %v938 = vunpack.c.l.b16 %v645
    %v939 = vunpack.c.h.b16 %v645
    %v940 = vunpack.c.l.b16 %v646
    %v941 = vunpack.c.h.b16 %v646
    %v942 = vunpack.c.l.b16 %v647
    %v943 = vunpack.c.h.b16 %v647
    %v944 = vunpack.c.l.b16 %v648
    %v945 = vunpack.c.h.b16 %v648
    %v946 = vunpack.c.l.b16 %v649
    %v947 = vunpack.c.h.b16 %v649
    %v948 = vunpack.c.l.b16 %v650
    %v949 = vunpack.c.h.b16 %v650
    %v950 = vunpack.c.l.b16 %v651
    %v951 = vunpack.c.h.b16 %v651
    %v952 = vunpack.c.l.b16 %v652
    %v953 = vunpack.c.h.b16 %v652
    %v954 = vunpack.c.l.b16 %v653
    %v955 = vunpack.c.h.b16 %v653
    %v956 = vunpack.c.l.b16 %v654
    %v957 = vunpack.c.h.b16 %v654
    %v958 = vunpack.c.l.b16 %v655
    %v959 = vunpack.c.h.b16 %v655
    %v960 = vunpack.c.l.b16 %v656
    %v961 = vunpack.c.h.b16 %v656
    %v962 = vunpack.c.l.b16 %v657
    %v963 = vunpack.c.h.b16 %v657
    %v964 = vunpack.c.l.b16 %v658
    %v965 = vunpack.c.h.b16 %v658
    %v966 = vunpack.c.l.b16 %v659
    %v967 = vunpack.c.h.b16 %v659
    %v968 = vunpack.c.l.b16 %v660
    %v969 = vunpack.c.h.b16 %v660
    %v970 = vunpack.c.l.b16 %v661
    %v971 = vunpack.c.h.b16 %v661
    %v972 = vunpack.c.l.b16 %v662
    %v973 = vunpack.c.h.b16 %v662
    %v974 = vunpack.c.l.b16 %v663
    %v975 = vunpack.c.h.b16 %v663
    %v976 = vunpack.c.l.b16 %v664
    %v977 = vunpack.c.h.b16 %v664
    %v978 = vunpack.c.l.b16 %v665
    %v979 = vunpack.c.h.b16 %v665
    %v980 = vunpack.c.l.b16 %v666
    %v981 = vunpack.c.h.b16 %v666
    %v982 = vunpack.c.l.b16 %v667
    %v983 = vunpack.c.h.b16 %v667
    %v984 = vunpack.c.l.b16 %v668
    %v985 = vunpack.c.h.b16 %v668
    %v986 = vunpack.c.l.b16 %v669
    %v987 = vunpack.c.h.b16 %v669
    %v988 = vunpack.c.l.b16 %v670
    %v989 = vunpack.c.h.b16 %v670
    %v990 = vunpack.c.l.b16 %v671
    %v991 = vunpack.c.h.b16 %v671
    %v992 = vunpack.c.l.b16 %v672
    %v993 = vunpack.c.h.b16 %v672
    %v994 = vunpack.c.l.b16 %v673
    %v995 = vunpack.c.h.b16 %v673
    %v996 = vunpack.c.l.b16 %v674
    %v997 = vunpack.c.h.b16 %v674
    %v998 = vunpack.c.l.b16 %v675
    %v999 = vunpack.c.h.b16 %v675
    %v1000 = vunpack.c.l.b16 %v676
    %v1001 = vunpack.c.h.b16 %v676
    %v1002 = vunpack.c.l.b16 %v677
    %v1003 = vunpack.c.h.b16 %v677
    %v1004 = vunpack.c.l.b16 %v678
    %v1005 = vunpack.c.h.b16 %v678
    %v1006 = vunpack.c.l.b16 %v679
    %v1007 = vunpack.c.h.b16 %v679
    %v1008 = vunpack.c.l.b16 %v680
    %v1009 = vunpack.c.h.b16 %v680
    %v1010 = vunpack.c.l.b16 %v681
    %v1011 = vunpack.c.h.b16 %v681
    %v1012 = vunpack.c.l.b16 %v682
    %v1013 = vunpack.c.h.b16 %v682
    %v1014 = vunpack.c.l.b16 %v683
    %v1015 = vunpack.c.h.b16 %v683
    %v1016 = vunpack.c.l.b16 %v684
    %v1017 = vunpack.c.h.b16 %v684
    %v1018 = vunpack.c.l.b16 %v685
    %v1019 = vunpack.c.h.b16 %v685
    %v1020 = vunpack.c.l.b16 %v686
    %v1021 = vunpack.c.h.b16 %v686
    %v1022 = vunpack.c.l.b16 %v687
    %v1023 = vunpack.c.h.b16 %v687
    %v1024 = vunpack.c.l.b16 %v688
    %v1025 = vunpack.c.h.b16 %v688
    %v1026 = vunpack.c.l.b16 %v689
    %v1027 = vunpack.c.h.b16 %v689
    %v1028 = vunpack.c.l.b16 %v690
    %v1029 = vunpack.c.h.b16 %v690
    %v1030 = vunpack.c.l.b16 %v691
    %v1031 = vunpack.c.h.b16 %v691
    %v1032 = vunpack.c.l.b16 %v692
    %v1033 = vunpack.c.h.b16 %v692
    %v1034 = vunpack.c.l.b16 %v693
    %v1035 = vunpack.c.h.b16 %v693
    %v1036 = vunpack.c.l.b16 %v694
    %v1037 = vunpack.c.h.b16 %v694
    %v1038 = vunpack.c.l.b16 %v695
    %v1039 = vunpack.c.h.b16 %v695
    %v1040 = vunpack.c.l.b16 %v696
    %v1041 = vunpack.c.h.b16 %v696
    %v1042 = vunpack.c.l.b16 %v697
    %v1043 = vunpack.c.h.b16 %v697
    %v1044 = vunpack.c.l.b16 %v698
    %v1045 = vunpack.c.h.b16 %v698
    %v1046 = vunpack.c.l.b16 %v699
    %v1047 = vunpack.c.h.b16 %v699
    %v1048 = vunpack.c.l.b16 %v700
    %v1049 = vunpack.c.h.b16 %v700
    %v1050 = vunpack.c.l.b16 %v701
    %v1051 = vunpack.c.h.b16 %v701
    %v1052 = vunpack.c.l.b16 %v702
    %v1053 = vunpack.c.h.b16 %v702
    %v1054 = vunpack.c.l.b16 %v703
    %v1055 = vunpack.c.h.b16 %v703
    %v1056 = vunpack.c.l.b16 %v704
    %v1057 = vunpack.c.h.b16 %v704
    %v1058 = vunpack.c.l.b16 %v705
    %v1059 = vunpack.c.h.b16 %v705
    %v1060 = vunpack.c.l.b16 %v706
    %v1061 = vunpack.c.h.b16 %v706
    %v1062 = vunpack.c.l.b16 %v707
    %v1063 = vunpack.c.h.b16 %v707
    %v1064 = vunpack.c.l.b16 %v708
    %v1065 = vunpack.c.h.b16 %v708
    %v1066 = vunpack.c.l.b16 %v709
    %v1067 = vunpack.c.h.b16 %v709
    %v1068 = vunpack.c.l.b16 %v710
    %v1069 = vunpack.c.h.b16 %v710
    %v1070 = vunpack.c.l.b16 %v711
    %v1071 = vunpack.c.h.b16 %v711
    %v1072 = vunpack.c.l.b16 %v712
    %v1073 = vunpack.c.h.b16 %v712
    %v1074 = vunpack.c.l.b16 %v713
    %v1075 = vunpack.c.h.b16 %v713
    %v1076 = vunpack.c.l.b16 %v714
    %v1077 = vunpack.c.h.b16 %v714
    %v1078 = vunpack.c.l.b16 %v715
    %v1079 = vunpack.c.h.b16 %v715
    %v1080 = vunpack.c.l.b16 %v716
    %v1081 = vunpack.c.h.b16 %v716
    %v1082 = vunpack.c.l.b16 %v717
    %v1083 = vunpack.c.h.b16 %v717
    %v1084 = vunpack.c.l.b16 %v718
    %v1085 = vunpack.c.h.b16 %v718
    %v1086 = vunpack.c.l.b16 %v719
    %v1087 = vunpack.c.h.b16 %v719
    %v1088 = vunpack.c.l.b16 %v720
    %v1089 = vunpack.c.h.b16 %v720
    %v1090 = vunpack.c.l.b16 %v721
    %v1091 = vunpack.c.h.b16 %v721
    %v1092 = vunpack.c.l.b16 %v722
    %v1093 = vunpack.c.h.b16 %v722
    %v1094 = vunpack.c.l.b16 %v723
    %v1095 = vunpack.c.h.b16 %v723
    %v1096 = vunpack.c.l.b16 %v724
    %v1097 = vunpack.c.h.b16 %v724
    %v1098 = vunpack.c.l.b16 %v725
    %v1099 = vunpack.c.h.b16 %v725
    %v1100 = vunpack.c.l.b16 %v726
    %v1101 = vunpack.c.h.b16 %v726
    %v1102 = vunpack.c.l.b16 %v727
    %v1103 = vunpack.c.h.b16 %v727
    %v1104 = vunpack.c.l.b16 %v728
    %v1105 = vunpack.c.h.b16 %v728
    %v1106 = vunpack.c.l.b16 %v729
    %v1107 = vunpack.c.h.b16 %v729
    %v1108 = vunpack.c.l.b16 %v730
    %v1109 = vunpack.c.h.b16 %v730
    %v1110 = vunpack.c.l.b16 %v731
    %v1111 = vunpack.c.h.b16 %v731
    %v1112 = vunpack.c.l.b16 %v732
    %v1113 = vunpack.c.h.b16 %v732
    %v1114 = vunpack.c.l.b16 %v733
    %v1115 = vunpack.c.h.b16 %v733
    %v1116 = vunpack.c.l.b16 %v734
    %v1117 = vunpack.c.h.b16 %v734
    %v1118 = vunpack.c.l.b16 %v735
    %v1119 = vunpack.c.h.b16 %v735
    %v1120 = vunpack.c.l.b16 %v736
    %v1121 = vunpack.c.h.b16 %v736
    %v1122 = vunpack.c.l.b16 %v737
    %v1123 = vunpack.c.h.b16 %v737
    %v1124 = vunpack.c.l.b16 %v738
    %v1125 = vunpack.c.h.b16 %v738
    %v1126 = vunpack.c.l.b16 %v739
    %v1127 = vunpack.c.h.b16 %v739
    %v1128 = vunpack.c.l.b16 %v740
    %v1129 = vunpack.c.h.b16 %v740
    %v1130 = vunpack.c.l.b16 %v741
    %v1131 = vunpack.c.h.b16 %v741
    %v1132 = vunpack.c.l.b16 %v742
    %v1133 = vunpack.c.h.b16 %v742
    %v1134 = vunpack.c.l.b16 %v743
    %v1135 = vunpack.c.h.b16 %v743
    %v1136 = vunpack.c.l.b16 %v744
    %v1137 = vunpack.c.h.b16 %v744
    %v1138 = vunpack.c.l.b16 %v745
    %v1139 = vunpack.c.h.b16 %v745
    %v1140 = vunpack.c.l.b16 %v746
    %v1141 = vunpack.c.h.b16 %v746
    %v1142 = vunpack.c.l.b16 %v747
    %v1143 = vunpack.c.h.b16 %v747
    %v1144 = vunpack.c.l.b16 %v748
    %v1145 = vunpack.c.h.b16 %v748
    %v1146 = vunpack.c.l.b16 %v749
    %v1147 = vunpack.c.h.b16 %v749
    %v1148 = vunpack.c.l.b16 %v750
    %v1149 = vunpack.c.h.b16 %v750
    %v1150 = vunpack.c.l.b16 %v751
    %v1151 = vunpack.c.h.b16 %v751
    %v1152 = vunpack.c.l.b16 %v752
    %v1153 = vunpack.c.h.b16 %v752
    %v1154 = vunpack.c.l.b16 %v753
    %v1155 = vunpack.c.h.b16 %v753
    %v1156 = vunpack.c.l.b16 %v754
    %v1157 = vunpack.c.h.b16 %v754
    %v1158 = vunpack.c.l.b16 %v755
    %v1159 = vunpack.c.h.b16 %v755
    %v1160 = vunpack.c.l.b16 %v756
    %v1161 = vunpack.c.h.b16 %v756
    %v1162 = vunpack.c.l.b16 %v757
    %v1163 = vunpack.c.h.b16 %v757
    %v1164 = vpack.c.b16 %v912, %v908
    %v1165 = vpack.c.b16 %v913, %v909
    %v1166 = vpack.c.b16 %v914, %v910
    %v1167 = vpack.c.b16 %v915, %v911
    %v1168 = vpack.c.b16 %v920, %v916
    %v1169 = vpack.c.b16 %v921, %v917
    %v1170 = vpack.c.b16 %v922, %v918
    %v1171 = vpack.c.b16 %v923, %v919
    %v1172 = vpack.c.b16 %v928, %v924
    %v1173 = vpack.c.b16 %v929, %v925
    %v1174 = vpack.c.b16 %v930, %v926
    %v1175 = vpack.c.b16 %v931, %v927
    %v1176 = vpack.c.b16 %v936, %v932
    %v1177 = vpack.c.b16 %v937, %v933
    %v1178 = vpack.c.b16 %v938, %v934
    %v1179 = vpack.c.b16 %v939, %v935
    %v1180 = vpack.c.b16 %v944, %v940
    %v1181 = vpack.c.b16 %v945, %v941
    %v1182 = vpack.c.b16 %v946, %v942
    %v1183 = vpack.c.b16 %v947, %v943
    %v1184 = vpack.c.b16 %v952, %v948
    %v1185 = vpack.c.b16 %v953, %v949
    %v1186 = vpack.c.b16 %v954, %v950
    %v1187 = vpack.c.b16 %v955, %v951
    %v1188 = vpack.c.b16 %v960, %v956
    %v1189 = vpack.c.b16 %v961, %v957
    %v1190 = vpack.c.b16 %v962, %v958
    %v1191 = vpack.c.b16 %v963, %v959
    %v1192 = vpack.c.b16 %v968, %v964
    %v1193 = vpack.c.b16 %v969, %v965
    %v1194 = vpack.c.b16 %v970, %v966
    %v1195 = vpack.c.b16 %v971, %v967
    %v1196 = vpack.c.b16 %v976, %v972
    %v1197 = vpack.c.b16 %v977, %v973
    %v1198 = vpack.c.b16 %v978, %v974
    %v1199 = vpack.c.b16 %v979, %v975
    %v1200 = vpack.c.b16 %v984, %v980
    %v1201 = vpack.c.b16 %v985, %v981
    %v1202 = vpack.c.b16 %v986, %v982
    %v1203 = vpack.c.b16 %v987, %v983
    %v1204 = vpack.c.b16 %v992, %v988
    %v1205 = vpack.c.b16 %v993, %v989
    %v1206 = vpack.c.b16 %v994, %v990
    %v1207 = vpack.c.b16 %v995, %v991
    %v1208 = vpack.c.b16 %v1000, %v996
    %v1209 = vpack.c.b16 %v1001, %v997
    %v1210 = vpack.c.b16 %v1002, %v998
    %v1211 = vpack.c.b16 %v1003, %v999
    %v1212 = vpack.c.b16 %v1008, %v1004
    %v1213 = vpack.c.b16 %v1009, %v1005
    %v1214 = vpack.c.b16 %v1010, %v1006
    %v1215 = vpack.c.b16 %v1011, %v1007
    %v1216 = vpack.c.b16 %v1016, %v1012
    %v1217 = vpack.c.b16 %v1017, %v1013
    %v1218 = vpack.c.b16 %v1018, %v1014
    %v1219 = vpack.c.b16 %v1019, %v1015
    %v1220 = vpack.c.b16 %v1024, %v1020
    %v1221 = vpack.c.b16 %v1025, %v1021
    %v1222 = vpack.c.b16 %v1026, %v1022
    %v1223 = vpack.c.b16 %v1027, %v1023
    %v1224 = vpack.c.b16 %v1032, %v1028
    %v1225 = vpack.c.b16 %v1033, %v1029
    %v1226 = vpack.c.b16 %v1034, %v1030
    %v1227 = vpack.c.b16 %v1035, %v1031
    %v1228 = vpack.c.b16 %v1040, %v1036
    %v1229 = vpack.c.b16 %v1041, %v1037
    %v1230 = vpack.c.b16 %v1042, %v1038
    %v1231 = vpack.c.b16 %v1043, %v1039
    %v1232 = vpack.c.b16 %v1048, %v1044
    %v1233 = vpack.c.b16 %v1049, %v1045
    %v1234 = vpack.c.b16 %v1050, %v1046
    %v1235 = vpack.c.b16 %v1051, %v1047
    %v1236 = vpack.c.b16 %v1056, %v1052
    %v1237 = vpack.c.b16 %v1057, %v1053
    %v1238 = vpack.c.b16 %v1058, %v1054
    %v1239 = vpack.c.b16 %v1059, %v1055
    %v1240 = vpack.c.b16 %v1064, %v1060
    %v1241 = vpack.c.b16 %v1065, %v1061
    %v1242 = vpack.c.b16 %v1066, %v1062
    %v1243 = vpack.c.b16 %v1067, %v1063
    %v1244 = vpack.c.b16 %v1072, %v1068
    %v1245 = vpack.c.b16 %v1073, %v1069
    %v1246 = vpack.c.b16 %v1074, %v1070
    %v1247 = vpack.c.b16 %v1075, %v1071
    %v1248 = vpack.c.b16 %v1080, %v1076
    %v1249 = vpack.c.b16 %v1081, %v1077
    %v1250 = vpack.c.b16 %v1082, %v1078
    %v1251 = vpack.c.b16 %v1083, %v1079
    %v1252 = vpack.c.b16 %v1088, %v1084
    %v1253 = vpack.c.b16 %v1089, %v1085
    %v1254 = vpack.c.b16 %v1090, %v1086
    %v1255 = vpack.c.b16 %v1091, %v1087
    %v1256 = vpack.c.b16 %v1096, %v1092
    %v1257 = vpack.c.b16 %v1097, %v1093
    %v1258 = vpack.c.b16 %v1098, %v1094
    %v1259 = vpack.c.b16 %v1099, %v1095
    %v1260 = vpack.c.b16 %v1104, %v1100
    %v1261 = vpack.c.b16 %v1105, %v1101
    %v1262 = vpack.c.b16 %v1106, %v1102
    %v1263 = vpack.c.b16 %v1107, %v1103
    %v1264 = vpack.c.b16 %v1112, %v1108
    %v1265 = vpack.c.b16 %v1113, %v1109
    %v1266 = vpack.c.b16 %v1114, %v1110
    %v1267 = vpack.c.b16 %v1115, %v1111
    %v1268 = vpack.c.b16 %v1120, %v1116
    %v1269 = vpack.c.b16 %v1121, %v1117
    %v1270 = vpack.c.b16 %v1122, %v1118
    %v1271 = vpack.c.b16 %v1123, %v1119
    %v1272 = vpack.c.b16 %v1128, %v1124
    %v1273 = vpack.c.b16 %v1129, %v1125
    %v1274 = vpack.c.b16 %v1130, %v1126
    %v1275 = vpack.c.b16 %v1131, %v1127
    %v1276 = vpack.c.b16 %v1136, %v1132
    %v1277 = vpack.c.b16 %v1137, %v1133
    %v1278 = vpack.c.b16 %v1138, %v1134
    %v1279 = vpack.c.b16 %v1139, %v1135
    %v1280 = vpack.c.b16 %v1144, %v1140
    %v1281 = vpack.c.b16 %v1145, %v1141
    %v1282 = vpack.c.b16 %v1146, %v1142
    %v1283 = vpack.c.b16 %v1147, %v1143
    %v1284 = vpack.c.b16 %v1152, %v1148
    %v1285 = vpack.c.b16 %v1153, %v1149
    %v1286 = vpack.c.b16 %v1154, %v1150
    %v1287 = vpack.c.b16 %v1155, %v1151
    %v1288 = vpack.c.b16 %v1160, %v1156
    %v1289 = vpack.c.b16 %v1161, %v1157
    %v1290 = vpack.c.b16 %v1162, %v1158
    %v1291 = vpack.c.b16 %v1163, %v1159
    %1420 = vmatprep.subr.bf16.mxu0 %v1165
    %1421 = vmatpush1.bf16.msra.mxu0 %v1164
    %1422 = vmatprep.subr.bf16.mxu0 %v1169
    %1423 = vmatpush1.bf16.msra.mxu0 %v1168
    %1424 = vmatprep.subr.bf16.mxu0 %v1173
    %1425 = vmatpush1.bf16.msra.mxu0 %v1172
    %1426 = vmatprep.subr.bf16.mxu0 %v1177
    %1427 = vmatpush1.bf16.msra.mxu0 %v1176
    %1428 = vmatprep.subr.bf16.mxu0 %v1181
    %1429 = vmatpush1.bf16.msra.mxu0 %v1180
    %1430 = vmatprep.subr.bf16.mxu0 %v1185
    %1431 = vmatpush1.bf16.msra.mxu0 %v1184
    %1432 = vmatprep.subr.bf16.mxu0 %v1189
    %1433 = vmatpush1.bf16.msra.mxu0 %v1188
    %1434 = vmatprep.subr.bf16.mxu0 %v1193
    %1435 = vmatpush1.bf16.msra.mxu0 %v1192
    %1436 = vmatprep.subr.bf16.mxu0 %v1197
    %1437 = vmatpush1.bf16.msra.mxu0 %v1196
    %1438 = vmatprep.subr.bf16.mxu0 %v1201
    %1439 = vmatpush1.bf16.msra.mxu0 %v1200
    %1440 = vmatprep.subr.bf16.mxu0 %v1205
    %1441 = vmatpush1.bf16.msra.mxu0 %v1204
    %1442 = vmatprep.subr.bf16.mxu0 %v1209
    %1443 = vmatpush1.bf16.msra.mxu0 %v1208
    %1444 = vmatprep.subr.bf16.mxu0 %v1213
    %1445 = vmatpush1.bf16.msra.mxu0 %v1212
    %1446 = vmatprep.subr.bf16.mxu0 %v1217
    %1447 = vmatpush1.bf16.msra.mxu0 %v1216
    %1448 = vmatprep.subr.bf16.mxu0 %v1221
    %1449 = vmatpush1.bf16.msra.mxu0 %v1220
    %1450 = vmatprep.subr.bf16.mxu0 %v1225
    %1451 = vmatpush1.bf16.msra.mxu0 %v1224
    %1452 = vmatprep.mubr.bf16.mxu0 %v627
    %1453 = vmatmul.mubr.bf16.gmra.mrb[0].mxu0 %v626
    %v1454 = vpop.f32.mrb[0].mxu0
    %v1455 = vadd.f32 %v763, %v1454
    %v1456 = vpop.f32.mrb[0].mxu0
    %v1457 = vadd.f32 %v767, %v1456
    %v1458 = vpop.f32.mrb[0].mxu0
    %v1459 = vpop.f32.mrb[0].mxu0
    %1460 = vdwg.mxu0
    %1461 = vmatprep.subr.bf16.mxu0 %v1229
    %1462 = vmatpush1.bf16.msra.mxu0 %v1228
    %1463 = vmatprep.subr.bf16.mxu0 %v1233
    %1464 = vmatpush1.bf16.msra.mxu0 %v1232
    %1465 = vmatprep.subr.bf16.mxu0 %v1237
    %1466 = vmatpush1.bf16.msra.mxu0 %v1236
    %1467 = vmatprep.subr.bf16.mxu0 %v1241
    %1468 = vmatpush1.bf16.msra.mxu0 %v1240
    %1469 = vmatprep.subr.bf16.mxu0 %v1245
    %1470 = vmatpush1.bf16.msra.mxu0 %v1244
    %1471 = vmatprep.subr.bf16.mxu0 %v1249
    %1472 = vmatpush1.bf16.msra.mxu0 %v1248
    %1473 = vmatprep.subr.bf16.mxu0 %v1253
    %1474 = vmatpush1.bf16.msra.mxu0 %v1252
    %1475 = vmatprep.subr.bf16.mxu0 %v1257
    %1476 = vmatpush1.bf16.msra.mxu0 %v1256
    %1477 = vmatprep.subr.bf16.mxu0 %v1261
    %1478 = vmatpush1.bf16.msra.mxu0 %v1260
    %1479 = vmatprep.subr.bf16.mxu0 %v1265
    %1480 = vmatpush1.bf16.msra.mxu0 %v1264
    %1481 = vmatprep.subr.bf16.mxu0 %v1269
    %1482 = vmatpush1.bf16.msra.mxu0 %v1268
    %1483 = vmatprep.subr.bf16.mxu0 %v1273
    %1484 = vmatpush1.bf16.msra.mxu0 %v1272
    %1485 = vmatprep.subr.bf16.mxu0 %v1277
    %1486 = vmatpush1.bf16.msra.mxu0 %v1276
    %1487 = vmatprep.subr.bf16.mxu0 %v1281
    %1488 = vmatpush1.bf16.msra.mxu0 %v1280
    %1489 = vmatprep.subr.bf16.mxu0 %v1285
    %1490 = vmatpush1.bf16.msra.mxu0 %v1284
    %1491 = vmatprep.subr.bf16.mxu0 %v1289
    %1492 = vmatpush1.bf16.msra.mxu0 %v1288
    %1493 = vmatprep.mubr.bf16.mxu0 %v629
    %1494 = vmatmul.mubr.bf16.gmra.mrb[0].mxu0 %v628
    %v1495 = vpop.f32.mrb[0].mxu0
    %v1496 = vadd.f32 %v1455, %v1495
    %v1497 = vpop.f32.mrb[0].mxu0
    %v1498 = vadd.f32 %v1457, %v1497
    %v1499 = vpop.f32.mrb[0].mxu0
    %v1500 = vpop.f32.mrb[0].mxu0
    %1501 = vdwg.mxu0
    %1502 = vmatprep.subr.bf16.mxu0 %v1167
    %1503 = vmatpush1.bf16.msra.mxu0 %v1166
    %1504 = vmatprep.subr.bf16.mxu0 %v1171
    %1505 = vmatpush1.bf16.msra.mxu0 %v1170
    %1506 = vmatprep.subr.bf16.mxu0 %v1175
    %1507 = vmatpush1.bf16.msra.mxu0 %v1174
    %1508 = vmatprep.subr.bf16.mxu0 %v1179
    %1509 = vmatpush1.bf16.msra.mxu0 %v1178
    %1510 = vmatprep.subr.bf16.mxu0 %v1183
    %1511 = vmatpush1.bf16.msra.mxu0 %v1182
    %1512 = vmatprep.subr.bf16.mxu0 %v1187
    %1513 = vmatpush1.bf16.msra.mxu0 %v1186
    %1514 = vmatprep.subr.bf16.mxu0 %v1191
    %1515 = vmatpush1.bf16.msra.mxu0 %v1190
    %1516 = vmatprep.subr.bf16.mxu0 %v1195
    %1517 = vmatpush1.bf16.msra.mxu0 %v1194
    %1518 = vmatprep.subr.bf16.mxu0 %v1199
    %1519 = vmatpush1.bf16.msra.mxu0 %v1198
    %1520 = vmatprep.subr.bf16.mxu0 %v1203
    %1521 = vmatpush1.bf16.msra.mxu0 %v1202
    %1522 = vmatprep.subr.bf16.mxu0 %v1207
    %1523 = vmatpush1.bf16.msra.mxu0 %v1206
    %1524 = vmatprep.subr.bf16.mxu0 %v1211
    %1525 = vmatpush1.bf16.msra.mxu0 %v1210
    %1526 = vmatprep.subr.bf16.mxu0 %v1215
    %1527 = vmatpush1.bf16.msra.mxu0 %v1214
    %1528 = vmatprep.subr.bf16.mxu0 %v1219
    %1529 = vmatpush1.bf16.msra.mxu0 %v1218
    %1530 = vmatprep.subr.bf16.mxu0 %v1223
    %1531 = vmatpush1.bf16.msra.mxu0 %v1222
    %1532 = vmatprep.subr.bf16.mxu0 %v1227
    %1533 = vmatpush1.bf16.msra.mxu0 %v1226
    %1534 = vmatprep.mubr.bf16.mxu0 %v627
    %1535 = vmatmul.mubr.bf16.gmra.mrb[0].mxu0 %v626
    %v1536 = vpop.f32.mrb[0].mxu0
    %v1537 = vadd.f32 %v771, %v1536
    %v1538 = vpop.f32.mrb[0].mxu0
    %v1539 = vadd.f32 %v775, %v1538
    %v1540 = vpop.f32.mrb[0].mxu0
    %v1541 = vpop.f32.mrb[0].mxu0
    %1542 = vdwg.mxu0
    %1543 = vmatprep.subr.bf16.mxu0 %v1231
    %1544 = vmatpush1.bf16.msra.mxu0 %v1230
    %1545 = vmatprep.subr.bf16.mxu0 %v1235
    %1546 = vmatpush1.bf16.msra.mxu0 %v1234
    %1547 = vmatprep.subr.bf16.mxu0 %v1239
    %1548 = vmatpush1.bf16.msra.mxu0 %v1238
    %1549 = vmatprep.subr.bf16.mxu0 %v1243
    %1550 = vmatpush1.bf16.msra.mxu0 %v1242
    %1551 = vmatprep.subr.bf16.mxu0 %v1247
    %1552 = vmatpush1.bf16.msra.mxu0 %v1246
    %1553 = vmatprep.subr.bf16.mxu0 %v1251
    %1554 = vmatpush1.bf16.msra.mxu0 %v1250
    %1555 = vmatprep.subr.bf16.mxu0 %v1255
    %1556 = vmatpush1.bf16.msra.mxu0 %v1254
    %1557 = vmatprep.subr.bf16.mxu0 %v1259
    %1558 = vmatpush1.bf16.msra.mxu0 %v1258
    %1559 = vmatprep.subr.bf16.mxu0 %v1263
    %1560 = vmatpush1.bf16.msra.mxu0 %v1262
    %1561 = vmatprep.subr.bf16.mxu0 %v1267
    %1562 = vmatpush1.bf16.msra.mxu0 %v1266
    %1563 = vmatprep.subr.bf16.mxu0 %v1271
    %1564 = vmatpush1.bf16.msra.mxu0 %v1270
    %1565 = vmatprep.subr.bf16.mxu0 %v1275
    %1566 = vmatpush1.bf16.msra.mxu0 %v1274
    %1567 = vmatprep.subr.bf16.mxu0 %v1279
    %1568 = vmatpush1.bf16.msra.mxu0 %v1278
    %1569 = vmatprep.subr.bf16.mxu0 %v1283
    %1570 = vmatpush1.bf16.msra.mxu0 %v1282
    %1571 = vmatprep.subr.bf16.mxu0 %v1287
    %1572 = vmatpush1.bf16.msra.mxu0 %v1286
    %1573 = vmatprep.subr.bf16.mxu0 %v1291
    %1574 = vmatpush1.bf16.msra.mxu0 %v1290
    %1575 = vmatprep.mubr.bf16.mxu0 %v629
    %1576 = vmatmul.mubr.bf16.gmra.mrb[0].mxu0 %v628
    %v1577 = vpop.f32.mrb[0].mxu0
    %v1578 = vadd.f32 %v1537, %v1577
    %v1579 = vpop.f32.mrb[0].mxu0
    %v1580 = vadd.f32 %v1539, %v1579
    %v1581 = vpop.f32.mrb[0].mxu0
    %v1582 = vpop.f32.mrb[0].mxu0
    %1583 = vdwg.mxu0
    %v1584 = vpack.c.bf16 %v1496, %v1496
    %v1585 = vpack.c.bf16 %v1498, %v1498
    %v1586 = vpack.c.bf16 %v1578, %v1578
    %v1587 = vpack.c.bf16 %v1580, %v1580
    %v1588 = vmax.bf16 %v1584, 0
    %v1589 = vmax.bf16 %v1585, 0
    %v1590 = vmax.bf16 %v1586, 0
    %v1591 = vmax.bf16 %v1587, 0
    %v1592 = vld [vmem:[%s6] sm:$0xf]
    %v1593 = vld [vmem:[%s6 + $0x4] sm:$0xf]
    %v1594 = vld [vmem:[%s6 + $0x8] sm:$0xf]
    %v1595 = vld [vmem:[%s6 + $0xc] sm:$0xf]
    %v1596 = vld [vmem:[%s6 + $0x10] sm:$0xf]
    %v1597 = vld [vmem:[%s6 + $0x14] sm:$0xf]
    %v1598 = vld [vmem:[%s6 + $0x18] sm:$0xf]
    %v1599 = vld [vmem:[%s6 + $0x1c] sm:$0xf]
    %v1600 = vld [vmem:[%s6 + $0x20] sm:$0xf]
    %v1601 = vld [vmem:[%s6 + $0x24] sm:$0xf]
    %v1602 = vld [vmem:[%s6 + $0x28] sm:$0xf]
    %v1603 = vld [vmem:[%s6 + $0x2c] sm:$0xf]
    %v1604 = vld [vmem:[%s6 + $0x30] sm:$0xf]
    %v1605 = vld [vmem:[%s6 + $0x34] sm:$0xf]
    %v1606 = vld [vmem:[%s6 + $0x38] sm:$0xf]
    %v1607 = vld [vmem:[%s6 + $0x3c] sm:$0xf]
    %v1608 = vld [vmem:[%s6 + $0x40] sm:$0xf]
    %v1609 = vld [vmem:[%s6 + $0x44] sm:$0xf]
    %v1610 = vld [vmem:[%s6 + $0x48] sm:$0xf]
    %v1611 = vld [vmem:[%s6 + $0x4c] sm:$0xf]
    %v1612 = vld [vmem:[%s6 + $0x50] sm:$0xf]
    %v1613 = vld [vmem:[%s6 + $0x54] sm:$0xf]
    %v1614 = vld [vmem:[%s6 + $0x58] sm:$0xf]
    %v1615 = vld [vmem:[%s6 + $0x5c] sm:$0xf]
    %v1616 = vld [vmem:[%s6 + $0x60] sm:$0xf]
    %v1617 = vld [vmem:[%s6 + $0x64] sm:$0xf]
    %v1618 = vld [vmem:[%s6 + $0x68] sm:$0xf]
    %v1619 = vld [vmem:[%s6 + $0x6c] sm:$0xf]
    %v1620 = vld [vmem:[%s6 + $0x70] sm:$0xf]
    %v1621 = vld [vmem:[%s6 + $0x74] sm:$0xf]
    %v1622 = vld [vmem:[%s6 + $0x78] sm:$0xf]
    %v1623 = vld [vmem:[%s6 + $0x7c] sm:$0xf]
    %v1624 = vld [vmem:[%s6 + $0x80] sm:$0xf]
    %v1625 = vld [vmem:[%s6 + $0x84] sm:$0xf]
    %v1626 = vld [vmem:[%s6 + $0x88] sm:$0xf]
    %v1627 = vld [vmem:[%s6 + $0x8c] sm:$0xf]
    %v1628 = vld [vmem:[%s6 + $0x90] sm:$0xf]
    %v1629 = vld [vmem:[%s6 + $0x94] sm:$0xf]
    %v1630 = vld [vmem:[%s6 + $0x98] sm:$0xf]
    %v1631 = vld [vmem:[%s6 + $0x9c] sm:$0xf]
    %v1632 = vld [vmem:[%s6 + $0xa0] sm:$0xf]
    %v1633 = vld [vmem:[%s6 + $0xa4] sm:$0xf]
    %v1634 = vld [vmem:[%s6 + $0xa8] sm:$0xf]
    %v1635 = vld [vmem:[%s6 + $0xac] sm:$0xf]
    %v1636 = vld [vmem:[%s6 + $0xb0] sm:$0xf]
    %v1637 = vld [vmem:[%s6 + $0xb4] sm:$0xf]
    %v1638 = vld [vmem:[%s6 + $0xb8] sm:$0xf]
    %v1639 = vld [vmem:[%s6 + $0xbc] sm:$0xf]
    %v1640 = vld [vmem:[%s6 + $0xc0] sm:$0xf]
    %v1641 = vld [vmem:[%s6 + $0xc4] sm:$0xf]
    %v1642 = vld [vmem:[%s6 + $0xc8] sm:$0xf]
    %v1643 = vld [vmem:[%s6 + $0xcc] sm:$0xf]
    %v1644 = vld [vmem:[%s6 + $0xd0] sm:$0xf]
    %v1645 = vld [vmem:[%s6 + $0xd4] sm:$0xf]
    %v1646 = vld [vmem:[%s6 + $0xd8] sm:$0xf]
    %v1647 = vld [vmem:[%s6 + $0xdc] sm:$0xf]
    %v1648 = vld [vmem:[%s6 + $0xe0] sm:$0xf]
    %v1649 = vld [vmem:[%s6 + $0xe4] sm:$0xf]
    %v1650 = vld [vmem:[%s6 + $0xe8] sm:$0xf]
    %v1651 = vld [vmem:[%s6 + $0xec] sm:$0xf]
    %v1652 = vld [vmem:[%s6 + $0xf0] sm:$0xf]
    %v1653 = vld [vmem:[%s6 + $0xf4] sm:$0xf]
    %v1654 = vld [vmem:[%s6 + $0xf8] sm:$0xf]
    %v1655 = vld [vmem:[%s6 + $0xfc] sm:$0xf]
    %v1656 = vld [vmem:[%s7] sm:$0x1]
    %v1658 = vlaneseq
    %v1659 = vshrl.u32 %v1658, 7
    %v1660 = vsub.s32 0, %v1659
    %v1661 = vrot.slane %v1656, %v1660
    %v1727 = vunpack.c.l.b16 %v1592
    %v1728 = vunpack.c.l.b16 %v1593
    %v1729 = vunpack.c.l.b16 %v1594
    %v1730 = vunpack.c.l.b16 %v1595
    %v1731 = vunpack.c.l.b16 %v1596
    %v1732 = vunpack.c.l.b16 %v1597
    %v1733 = vunpack.c.l.b16 %v1598
    %v1734 = vunpack.c.l.b16 %v1599
    %v1735 = vunpack.c.l.b16 %v1600
    %v1736 = vunpack.c.l.b16 %v1601
    %v1737 = vunpack.c.l.b16 %v1602
    %v1738 = vunpack.c.l.b16 %v1603
    %v1739 = vunpack.c.l.b16 %v1604
    %v1740 = vunpack.c.l.b16 %v1605
    %v1741 = vunpack.c.l.b16 %v1606
    %v1742 = vunpack.c.l.b16 %v1607
    %v1743 = vunpack.c.l.b16 %v1608
    %v1744 = vunpack.c.l.b16 %v1609
    %v1745 = vunpack.c.l.b16 %v1610
    %v1746 = vunpack.c.l.b16 %v1611
    %v1747 = vunpack.c.l.b16 %v1612
    %v1748 = vunpack.c.l.b16 %v1613
    %v1749 = vunpack.c.l.b16 %v1614
    %v1750 = vunpack.c.l.b16 %v1615
    %v1751 = vunpack.c.l.b16 %v1616
    %v1752 = vunpack.c.l.b16 %v1617
    %v1753 = vunpack.c.l.b16 %v1618
    %v1754 = vunpack.c.l.b16 %v1619
    %v1755 = vunpack.c.l.b16 %v1620
    %v1756 = vunpack.c.l.b16 %v1621
    %v1757 = vunpack.c.l.b16 %v1622
    %v1758 = vunpack.c.l.b16 %v1623
    %v1759 = vunpack.c.l.b16 %v1624
    %v1760 = vunpack.c.l.b16 %v1625
    %v1761 = vunpack.c.l.b16 %v1626
    %v1762 = vunpack.c.l.b16 %v1627
    %v1763 = vunpack.c.l.b16 %v1628
    %v1764 = vunpack.c.l.b16 %v1629
    %v1765 = vunpack.c.l.b16 %v1630
    %v1766 = vunpack.c.l.b16 %v1631
    %v1767 = vunpack.c.l.b16 %v1632
    %v1768 = vunpack.c.l.b16 %v1633
    %v1769 = vunpack.c.l.b16 %v1634
    %v1770 = vunpack.c.l.b16 %v1635
    %v1771 = vunpack.c.l.b16 %v1636
    %v1772 = vunpack.c.l.b16 %v1637
    %v1773 = vunpack.c.l.b16 %v1638
    %v1774 = vunpack.c.l.b16 %v1639
    %v1775 = vunpack.c.l.b16 %v1640
    %v1776 = vunpack.c.l.b16 %v1641
    %v1777 = vunpack.c.l.b16 %v1642
    %v1778 = vunpack.c.l.b16 %v1643
    %v1779 = vunpack.c.l.b16 %v1644
    %v1780 = vunpack.c.l.b16 %v1645
    %v1781 = vunpack.c.l.b16 %v1646
    %v1782 = vunpack.c.l.b16 %v1647
    %v1783 = vunpack.c.l.b16 %v1648
    %v1784 = vunpack.c.l.b16 %v1649
    %v1785 = vunpack.c.l.b16 %v1650
    %v1786 = vunpack.c.l.b16 %v1651
    %v1787 = vunpack.c.l.b16 %v1652
    %v1788 = vunpack.c.l.b16 %v1653
    %v1789 = vunpack.c.l.b16 %v1654
    %v1790 = vunpack.c.l.b16 %v1655
    %v1791 = vpack.c.b16 %v1728, %v1727
    %v1792 = vpack.c.b16 %v1730, %v1729
    %v1793 = vpack.c.b16 %v1732, %v1731
    %v1794 = vpack.c.b16 %v1734, %v1733
    %v1795 = vpack.c.b16 %v1736, %v1735
    %v1796 = vpack.c.b16 %v1738, %v1737
    %v1797 = vpack.c.b16 %v1740, %v1739
    %v1798 = vpack.c.b16 %v1742, %v1741
    %v1799 = vpack.c.b16 %v1744, %v1743
    %v1800 = vpack.c.b16 %v1746, %v1745
    %v1801 = vpack.c.b16 %v1748, %v1747
    %v1802 = vpack.c.b16 %v1750, %v1749
    %v1803 = vpack.c.b16 %v1752, %v1751
    %v1804 = vpack.c.b16 %v1754, %v1753
    %v1805 = vpack.c.b16 %v1756, %v1755
    %v1806 = vpack.c.b16 %v1758, %v1757
    %v1807 = vpack.c.b16 %v1760, %v1759
    %v1808 = vpack.c.b16 %v1762, %v1761
    %v1809 = vpack.c.b16 %v1764, %v1763
    %v1810 = vpack.c.b16 %v1766, %v1765
    %v1811 = vpack.c.b16 %v1768, %v1767
    %v1812 = vpack.c.b16 %v1770, %v1769
    %v1813 = vpack.c.b16 %v1772, %v1771
    %v1814 = vpack.c.b16 %v1774, %v1773
    %v1815 = vpack.c.b16 %v1776, %v1775
    %v1816 = vpack.c.b16 %v1778, %v1777
    %v1817 = vpack.c.b16 %v1780, %v1779
    %v1818 = vpack.c.b16 %v1782, %v1781
    %v1819 = vpack.c.b16 %v1784, %v1783
    %v1820 = vpack.c.b16 %v1786, %v1785
    %v1821 = vpack.c.b16 %v1788, %v1787
    %v1822 = vpack.c.b16 %v1790, %v1789
    %1855 = vmatprep.subr.bf16.mxu0 0
    %1856 = vmatpush1.bf16.msra.mxu0 %v1791
    %1857 = vmatprep.subr.bf16.mxu0 0
    %1858 = vmatpush1.bf16.msra.mxu0 %v1792
    %1859 = vmatprep.subr.bf16.mxu0 0
    %1860 = vmatpush1.bf16.msra.mxu0 %v1793
    %1861 = vmatprep.subr.bf16.mxu0 0
    %1862 = vmatpush1.bf16.msra.mxu0 %v1794
    %1863 = vmatprep.subr.bf16.mxu0 0
    %1864 = vmatpush1.bf16.msra.mxu0 %v1795
    %1865 = vmatprep.subr.bf16.mxu0 0
    %1866 = vmatpush1.bf16.msra.mxu0 %v1796
    %1867 = vmatprep.subr.bf16.mxu0 0
    %1868 = vmatpush1.bf16.msra.mxu0 %v1797
    %1869 = vmatprep.subr.bf16.mxu0 0
    %1870 = vmatpush1.bf16.msra.mxu0 %v1798
    %1871 = vmatprep.subr.bf16.mxu0 0
    %1872 = vmatpush1.bf16.msra.mxu0 %v1799
    %1873 = vmatprep.subr.bf16.mxu0 0
    %1874 = vmatpush1.bf16.msra.mxu0 %v1800
    %1875 = vmatprep.subr.bf16.mxu0 0
    %1876 = vmatpush1.bf16.msra.mxu0 %v1801
    %1877 = vmatprep.subr.bf16.mxu0 0
    %1878 = vmatpush1.bf16.msra.mxu0 %v1802
    %1879 = vmatprep.subr.bf16.mxu0 0
    %1880 = vmatpush1.bf16.msra.mxu0 %v1803
    %1881 = vmatprep.subr.bf16.mxu0 0
    %1882 = vmatpush1.bf16.msra.mxu0 %v1804
    %1883 = vmatprep.subr.bf16.mxu0 0
    %1884 = vmatpush1.bf16.msra.mxu0 %v1805
    %1885 = vmatprep.subr.bf16.mxu0 0
    %1886 = vmatpush1.bf16.msra.mxu0 %v1806
    %1887 = vmatprep.mubr.bf16.mxu0 %v1589
    %1888 = vmatmul.mubr.bf16.gmra.mrb[0].mxu0 %v1588
    %v1889 = vpop.f32.mrb[0].mxu0
    %v1890 = vadd.f32 %v1661, %v1889
    %v1891 = vpop.f32.mrb[0].mxu0
    %v1892 = vpop.f32.mrb[0].mxu0
    %v1893 = vpop.f32.mrb[0].mxu0
    %1894 = vdwg.mxu0
    %1895 = vmatprep.subr.bf16.mxu0 0
    %1896 = vmatpush1.bf16.msra.mxu0 %v1807
    %1897 = vmatprep.subr.bf16.mxu0 0
    %1898 = vmatpush1.bf16.msra.mxu0 %v1808
    %1899 = vmatprep.subr.bf16.mxu0 0
    %1900 = vmatpush1.bf16.msra.mxu0 %v1809
    %1901 = vmatprep.subr.bf16.mxu0 0
    %1902 = vmatpush1.bf16.msra.mxu0 %v1810
    %1903 = vmatprep.subr.bf16.mxu0 0
    %1904 = vmatpush1.bf16.msra.mxu0 %v1811
    %1905 = vmatprep.subr.bf16.mxu0 0
    %1906 = vmatpush1.bf16.msra.mxu0 %v1812
    %1907 = vmatprep.subr.bf16.mxu0 0
    %1908 = vmatpush1.bf16.msra.mxu0 %v1813
    %1909 = vmatprep.subr.bf16.mxu0 0
    %1910 = vmatpush1.bf16.msra.mxu0 %v1814
    %1911 = vmatprep.subr.bf16.mxu0 0
    %1912 = vmatpush1.bf16.msra.mxu0 %v1815
    %1913 = vmatprep.subr.bf16.mxu0 0
    %1914 = vmatpush1.bf16.msra.mxu0 %v1816
    %1915 = vmatprep.subr.bf16.mxu0 0
    %1916 = vmatpush1.bf16.msra.mxu0 %v1817
    %1917 = vmatprep.subr.bf16.mxu0 0
    %1918 = vmatpush1.bf16.msra.mxu0 %v1818
    %1919 = vmatprep.subr.bf16.mxu0 0
    %1920 = vmatpush1.bf16.msra.mxu0 %v1819
    %1921 = vmatprep.subr.bf16.mxu0 0
    %1922 = vmatpush1.bf16.msra.mxu0 %v1820
    %1923 = vmatprep.subr.bf16.mxu0 0
    %1924 = vmatpush1.bf16.msra.mxu0 %v1821
    %1925 = vmatprep.subr.bf16.mxu0 0
    %1926 = vmatpush1.bf16.msra.mxu0 %v1822
    %1927 = vmatprep.mubr.bf16.mxu0 %v1591
    %1928 = vmatmul.mubr.bf16.gmra.mrb[0].mxu0 %v1590
    %v1929 = vpop.f32.mrb[0].mxu0
    %v1930 = vadd.f32 %v1890, %v1929
    %v1931 = vpop.f32.mrb[0].mxu0
    %v1932 = vpop.f32.mrb[0].mxu0
    %v1933 = vpop.f32.mrb[0].mxu0
    %1934 = vdwg.mxu0
    %vm1935 = vcmask 130048
    %1936 = vst.msk [vmem:[#allocation12] sm:$0xff] %vm1935, %v1930
    %v1937 = vld [vmem:[%s1] sm:$0xff]
    %v1938 = vmul.f32 %v1930, 0.5
    %v1939 = vmul.f32 %v1938, 1.442695
    %v1940 = vpow.pop %v1939
    %1942 = vrot.lane.b32.xlu0 %v1940, 120
    %v1943 = vpop.permute.xlu0 %1942
    %v1945 = vmul.f32 %v1937, %v1943
    %v1946 = vadd.f32 %v1945, %v1930
    %v1947 = vpack.c.bf16 %v1946, %v1946
    %v1948 = vld [vmem:[%s8] sm:$0xff]
    %v1949 = vld [vmem:[%s8 + $0x8] sm:$0xff]
    %v1950 = vld [vmem:[%s9] sm:$0xf]
    %v1952 = vlaneseq
    %v1953 = vshrl.u32 %v1952, 7
    %v1954 = vsub.s32 0, %v1953
    %v1955 = vrot.slane %v1950, %v1954
    %v1956 = vlaneseq
    %v1957 = vshrl.u32 %v1956, 7
    %v1958 = vsub.s32 1, %v1957
    %v1959 = vrot.slane %v1950, %v1958
    %v1960 = vlaneseq
    %v1961 = vshrl.u32 %v1960, 7
    %v1962 = vsub.s32 2, %v1961
    %v1963 = vrot.slane %v1950, %v1962
    %v1964 = vlaneseq
    %v1965 = vshrl.u32 %v1964, 7
    %v1966 = vsub.s32 3, %v1965
    %v1967 = vrot.slane %v1950, %v1966
    %v1974 = vunpack.c.l.b16 %v1948
    %v1975 = vunpack.c.h.b16 %v1948
    %v1976 = vunpack.c.l.b16 %v1949
    %v1977 = vunpack.c.h.b16 %v1949
    %v1978 = vpack.c.b16 %v1974, %v1974
    %v1979 = vpack.c.b16 %v1975, %v1975
    %v1980 = vpack.c.b16 %v1976, %v1976
    %v1981 = vpack.c.b16 %v1977, %v1977
    %vm1982 = vcmask 64512
    %v1984 = vsel %vm1982, %v1947, 0
    %vm1986 = vcmask 1043456
    %v1988 = vsel %vm1986, %v1978, 0
    %v1991 = vsel %vm1986, %v1979, 0
    %v1994 = vsel %vm1986, %v1980, 0
    %v1997 = vsel %vm1986, %v1981, 0
    %1999 = vmatprep.subr.bf16.mxu0 %v1991
    %2000 = vmatpush1.bf16.msra.mxu0 %v1988
    %2001 = vmatprep.subr.bf16.mxu0 0
    %2002 = vmatpush1.bf16.msra.mxu0 0
    %2003 = vmatprep.subr.bf16.mxu0 0
    %2004 = vmatpush1.bf16.msra.mxu0 0
    %2005 = vmatprep.subr.bf16.mxu0 0
    %2006 = vmatpush1.bf16.msra.mxu0 0
    %2007 = vmatprep.subr.bf16.mxu0 0
    %2008 = vmatpush1.bf16.msra.mxu0 0
    %2009 = vmatprep.subr.bf16.mxu0 0
    %2010 = vmatpush1.bf16.msra.mxu0 0
    %2011 = vmatprep.subr.bf16.mxu0 0
    %2012 = vmatpush1.bf16.msra.mxu0 0
    %2013 = vmatprep.subr.bf16.mxu0 0
    %2014 = vmatpush1.bf16.msra.mxu0 0
    %2015 = vmatprep.subr.bf16.mxu0 0
    %2016 = vmatpush1.bf16.msra.mxu0 0
    %2017 = vmatprep.subr.bf16.mxu0 0
    %2018 = vmatpush1.bf16.msra.mxu0 0
    %2019 = vmatprep.subr.bf16.mxu0 0
    %2020 = vmatpush1.bf16.msra.mxu0 0
    %2021 = vmatprep.subr.bf16.mxu0 0
    %2022 = vmatpush1.bf16.msra.mxu0 0
    %2023 = vmatprep.subr.bf16.mxu0 0
    %2024 = vmatpush1.bf16.msra.mxu0 0
    %2025 = vmatprep.subr.bf16.mxu0 0
    %2026 = vmatpush1.bf16.msra.mxu0 0
    %2027 = vmatprep.subr.bf16.mxu0 0
    %2028 = vmatpush1.bf16.msra.mxu0 0
    %2029 = vmatprep.subr.bf16.mxu0 0
    %2030 = vmatpush1.bf16.msra.mxu0 0
    %2031 = vmatprep.mubr.bf16.mxu0 0
    %2032 = vmatmul.mubr.bf16.gmra.mrb[0].mxu0 %v1984
    %v2033 = vpop.f32.mrb[0].mxu0
    %v2034 = vadd.f32 %v1955, %v2033
    %v2035 = vpop.f32.mrb[0].mxu0
    %v2036 = vadd.f32 %v1959, %v2035
    %v2037 = vpop.f32.mrb[0].mxu0
    %v2038 = vpop.f32.mrb[0].mxu0
    %2039 = vdwg.mxu0
    %2040 = vmatprep.subr.bf16.mxu0 %v1997
    %2041 = vmatpush1.bf16.msra.mxu0 %v1994
    %2042 = vmatprep.subr.bf16.mxu0 0
    %2043 = vmatpush1.bf16.msra.mxu0 0
    %2044 = vmatprep.subr.bf16.mxu0 0
    %2045 = vmatpush1.bf16.msra.mxu0 0
    %2046 = vmatprep.subr.bf16.mxu0 0
    %2047 = vmatpush1.bf16.msra.mxu0 0
    %2048 = vmatprep.subr.bf16.mxu0 0
    %2049 = vmatpush1.bf16.msra.mxu0 0
    %2050 = vmatprep.subr.bf16.mxu0 0
    %2051 = vmatpush1.bf16.msra.mxu0 0
    %2052 = vmatprep.subr.bf16.mxu0 0
    %2053 = vmatpush1.bf16.msra.mxu0 0
    %2054 = vmatprep.subr.bf16.mxu0 0
    %2055 = vmatpush1.bf16.msra.mxu0 0
    %2056 = vmatprep.subr.bf16.mxu0 0
    %2057 = vmatpush1.bf16.msra.mxu0 0
    %2058 = vmatprep.subr.bf16.mxu0 0
    %2059 = vmatpush1.bf16.msra.mxu0 0
    %2060 = vmatprep.subr.bf16.mxu0 0
    %2061 = vmatpush1.bf16.msra.mxu0 0
    %2062 = vmatprep.subr.bf16.mxu0 0
    %2063 = vmatpush1.bf16.msra.mxu0 0
    %2064 = vmatprep.subr.bf16.mxu0 0
    %2065 = vmatpush1.bf16.msra.mxu0 0
    %2066 = vmatprep.subr.bf16.mxu0 0
    %2067 = vmatpush1.bf16.msra.mxu0 0
    %2068 = vmatprep.subr.bf16.mxu0 0
    %2069 = vmatpush1.bf16.msra.mxu0 0
    %2070 = vmatprep.subr.bf16.mxu0 0
    %2071 = vmatpush1.bf16.msra.mxu0 0
    %2072 = vmatprep.mubr.bf16.mxu0 0
    %2073 = vmatmul.mubr.bf16.gmra.mrb[0].mxu0 %v1984
    %v2074 = vpop.f32.mrb[0].mxu0
    %v2075 = vadd.f32 %v1963, %v2074
    %v2076 = vpop.f32.mrb[0].mxu0
    %v2077 = vadd.f32 %v1967, %v2076
    %v2078 = vpop.f32.mrb[0].mxu0
    %v2079 = vpop.f32.mrb[0].mxu0
    %2080 = vdwg.mxu0
    %v2081 = vpack.c.bf16 %v2034, %v2034
    %v2082 = vpack.c.bf16 %v2036, %v2036
    %v2083 = vpack.c.bf16 %v2075, %v2075
    %v2084 = vpack.c.bf16 %v2077, %v2077
    %v2085 = vmax.bf16 %v2081, 0
    %v2086 = vmax.bf16 %v2082, 0
    %v2087 = vmax.bf16 %v2083, 0
    %v2088 = vmax.bf16 %v2084, 0
    %v2089 = vld [vmem:[#allocation7] sm:$0xff]
    %v2090 = vld [vmem:[#allocation7 + $0x8] sm:$0xff]
    %v2091 = vld [vmem:[#allocation7 + $0x10] sm:$0xff]
    %v2092 = vld [vmem:[#allocation7 + $0x18] sm:$0xff]
    %v2093 = vld [vmem:[#allocation7 + $0x20] sm:$0xff]
    %v2094 = vld [vmem:[#allocation7 + $0x28] sm:$0xff]
    %v2095 = vld [vmem:[#allocation7 + $0x30] sm:$0xff]
    %v2096 = vld [vmem:[#allocation7 + $0x38] sm:$0xff]
    %v2097 = vld [vmem:[#allocation7 + $0x40] sm:$0xff]
    %v2098 = vld [vmem:[#allocation7 + $0x48] sm:$0xff]
    %v2099 = vld [vmem:[#allocation7 + $0x50] sm:$0xff]
    %v2100 = vld [vmem:[#allocation7 + $0x58] sm:$0xff]
    %v2101 = vld [vmem:[#allocation7 + $0x60] sm:$0xff]
    %v2102 = vld [vmem:[#allocation7 + $0x68] sm:$0xff]
    %v2103 = vld [vmem:[#allocation7 + $0x70] sm:$0xff]
    %v2104 = vld [vmem:[#allocation7 + $0x78] sm:$0xff]
    %v2105 = vld [vmem:[#allocation7 + $0x80] sm:$0xff]
    %v2106 = vld [vmem:[#allocation7 + $0x88] sm:$0xff]
    %v2107 = vld [vmem:[#allocation7 + $0x90] sm:$0xff]
    %v2108 = vld [vmem:[#allocation7 + $0x98] sm:$0xff]
    %v2109 = vld [vmem:[#allocation7 + $0xa0] sm:$0xff]
    %v2110 = vld [vmem:[#allocation7 + $0xa8] sm:$0xff]
    %v2111 = vld [vmem:[#allocation7 + $0xb0] sm:$0xff]
    %v2112 = vld [vmem:[#allocation7 + $0xb8] sm:$0xff]
    %v2113 = vld [vmem:[#allocation7 + $0xc0] sm:$0xff]
    %v2114 = vld [vmem:[#allocation7 + $0xc8] sm:$0xff]
    %v2115 = vld [vmem:[#allocation7 + $0xd0] sm:$0xff]
    %v2116 = vld [vmem:[#allocation7 + $0xd8] sm:$0xff]
    %v2117 = vld [vmem:[#allocation7 + $0xe0] sm:$0xff]
    %v2118 = vld [vmem:[#allocation7 + $0xe8] sm:$0xff]
    %v2119 = vld [vmem:[#allocation7 + $0xf0] sm:$0xff]
    %v2120 = vld [vmem:[#allocation7 + $0xf8] sm:$0xff]
    %v2121 = vld [vmem:[#allocation7 + $0x100] sm:$0xff]
    %v2122 = vld [vmem:[#allocation7 + $0x108] sm:$0xff]
    %v2123 = vld [vmem:[#allocation7 + $0x110] sm:$0xff]
    %v2124 = vld [vmem:[#allocation7 + $0x118] sm:$0xff]
    %v2125 = vld [vmem:[#allocation7 + $0x120] sm:$0xff]
    %v2126 = vld [vmem:[#allocation7 + $0x128] sm:$0xff]
    %v2127 = vld [vmem:[#allocation7 + $0x130] sm:$0xff]
    %v2128 = vld [vmem:[#allocation7 + $0x138] sm:$0xff]
    %v2129 = vld [vmem:[#allocation7 + $0x140] sm:$0xff]
    %v2130 = vld [vmem:[#allocation7 + $0x148] sm:$0xff]
    %v2131 = vld [vmem:[#allocation7 + $0x150] sm:$0xff]
    %v2132 = vld [vmem:[#allocation7 + $0x158] sm:$0xff]
    %v2133 = vld [vmem:[#allocation7 + $0x160] sm:$0xff]
    %v2134 = vld [vmem:[#allocation7 + $0x168] sm:$0xff]
    %v2135 = vld [vmem:[#allocation7 + $0x170] sm:$0xff]
    %v2136 = vld [vmem:[#allocation7 + $0x178] sm:$0xff]
    %v2137 = vld [vmem:[#allocation7 + $0x180] sm:$0xff]
    %v2138 = vld [vmem:[#allocation7 + $0x188] sm:$0xff]
    %v2139 = vld [vmem:[#allocation7 + $0x190] sm:$0xff]
    %v2140 = vld [vmem:[#allocation7 + $0x198] sm:$0xff]
    %v2141 = vld [vmem:[#allocation7 + $0x1a0] sm:$0xff]
    %v2142 = vld [vmem:[#allocation7 + $0x1a8] sm:$0xff]
    %v2143 = vld [vmem:[#allocation7 + $0x1b0] sm:$0xff]
    %v2144 = vld [vmem:[#allocation7 + $0x1b8] sm:$0xff]
    %v2145 = vld [vmem:[#allocation7 + $0x1c0] sm:$0xff]
    %v2146 = vld [vmem:[#allocation7 + $0x1c8] sm:$0xff]
    %v2147 = vld [vmem:[#allocation7 + $0x1d0] sm:$0xff]
    %v2148 = vld [vmem:[#allocation7 + $0x1d8] sm:$0xff]
    %v2149 = vld [vmem:[#allocation7 + $0x1e0] sm:$0xff]
    %v2150 = vld [vmem:[#allocation7 + $0x1e8] sm:$0xff]
    %v2151 = vld [vmem:[#allocation7 + $0x1f0] sm:$0xff]
    %v2152 = vld [vmem:[#allocation7 + $0x1f8] sm:$0xff]
    %v2153 = vld [vmem:[#allocation7 + $0x200] sm:$0xff]
    %v2154 = vld [vmem:[#allocation7 + $0x208] sm:$0xff]
    %v2155 = vld [vmem:[#allocation7 + $0x210] sm:$0xff]
    %v2156 = vld [vmem:[#allocation7 + $0x218] sm:$0xff]
    %v2157 = vld [vmem:[#allocation7 + $0x220] sm:$0xff]
    %v2158 = vld [vmem:[#allocation7 + $0x228] sm:$0xff]
    %v2159 = vld [vmem:[#allocation7 + $0x230] sm:$0xff]
    %v2160 = vld [vmem:[#allocation7 + $0x238] sm:$0xff]
    %v2161 = vld [vmem:[#allocation7 + $0x240] sm:$0xff]
    %v2162 = vld [vmem:[#allocation7 + $0x248] sm:$0xff]
    %v2163 = vld [vmem:[#allocation7 + $0x250] sm:$0xff]
    %v2164 = vld [vmem:[#allocation7 + $0x258] sm:$0xff]
    %v2165 = vld [vmem:[#allocation7 + $0x260] sm:$0xff]
    %v2166 = vld [vmem:[#allocation7 + $0x268] sm:$0xff]
    %v2167 = vld [vmem:[#allocation7 + $0x270] sm:$0xff]
    %v2168 = vld [vmem:[#allocation7 + $0x278] sm:$0xff]
    %v2169 = vld [vmem:[#allocation7 + $0x280] sm:$0xff]
    %v2170 = vld [vmem:[#allocation7 + $0x288] sm:$0xff]
    %v2171 = vld [vmem:[#allocation7 + $0x290] sm:$0xff]
    %v2172 = vld [vmem:[#allocation7 + $0x298] sm:$0xff]
    %v2173 = vld [vmem:[#allocation7 + $0x2a0] sm:$0xff]
    %v2174 = vld [vmem:[#allocation7 + $0x2a8] sm:$0xff]
    %v2175 = vld [vmem:[#allocation7 + $0x2b0] sm:$0xff]
    %v2176 = vld [vmem:[#allocation7 + $0x2b8] sm:$0xff]
    %v2177 = vld [vmem:[#allocation7 + $0x2c0] sm:$0xff]
    %v2178 = vld [vmem:[#allocation7 + $0x2c8] sm:$0xff]
    %v2179 = vld [vmem:[#allocation7 + $0x2d0] sm:$0xff]
    %v2180 = vld [vmem:[#allocation7 + $0x2d8] sm:$0xff]
    %v2181 = vld [vmem:[#allocation7 + $0x2e0] sm:$0xff]
    %v2182 = vld [vmem:[#allocation7 + $0x2e8] sm:$0xff]
    %v2183 = vld [vmem:[#allocation7 + $0x2f0] sm:$0xff]
    %v2184 = vld [vmem:[#allocation7 + $0x2f8] sm:$0xff]
    %v2185 = vld [vmem:[#allocation7 + $0x300] sm:$0xff]
    %v2186 = vld [vmem:[#allocation7 + $0x308] sm:$0xff]
    %v2187 = vld [vmem:[#allocation7 + $0x310] sm:$0xff]
    %v2188 = vld [vmem:[#allocation7 + $0x318] sm:$0xff]
    %v2189 = vld [vmem:[#allocation7 + $0x320] sm:$0xff]
    %v2190 = vld [vmem:[#allocation7 + $0x328] sm:$0xff]
    %v2191 = vld [vmem:[#allocation7 + $0x330] sm:$0xff]
    %v2192 = vld [vmem:[#allocation7 + $0x338] sm:$0xff]
    %v2193 = vld [vmem:[#allocation7 + $0x340] sm:$0xff]
    %v2194 = vld [vmem:[#allocation7 + $0x348] sm:$0xff]
    %v2195 = vld [vmem:[#allocation7 + $0x350] sm:$0xff]
    %v2196 = vld [vmem:[#allocation7 + $0x358] sm:$0xff]
    %v2197 = vld [vmem:[#allocation7 + $0x360] sm:$0xff]
    %v2198 = vld [vmem:[#allocation7 + $0x368] sm:$0xff]
    %v2199 = vld [vmem:[#allocation7 + $0x370] sm:$0xff]
    %v2200 = vld [vmem:[#allocation7 + $0x378] sm:$0xff]
    %v2201 = vld [vmem:[#allocation7 + $0x380] sm:$0xff]
    %v2202 = vld [vmem:[#allocation7 + $0x388] sm:$0xff]
    %v2203 = vld [vmem:[#allocation7 + $0x390] sm:$0xff]
    %v2204 = vld [vmem:[#allocation7 + $0x398] sm:$0xff]
    %v2205 = vld [vmem:[#allocation7 + $0x3a0] sm:$0xff]
    %v2206 = vld [vmem:[#allocation7 + $0x3a8] sm:$0xff]
    %v2207 = vld [vmem:[#allocation7 + $0x3b0] sm:$0xff]
    %v2208 = vld [vmem:[#allocation7 + $0x3b8] sm:$0xff]
    %v2209 = vld [vmem:[#allocation7 + $0x3c0] sm:$0xff]
    %v2210 = vld [vmem:[#allocation7 + $0x3c8] sm:$0xff]
    %v2211 = vld [vmem:[#allocation7 + $0x3d0] sm:$0xff]
    %v2212 = vld [vmem:[#allocation7 + $0x3d8] sm:$0xff]
    %v2213 = vld [vmem:[#allocation7 + $0x3e0] sm:$0xff]
    %v2214 = vld [vmem:[#allocation7 + $0x3e8] sm:$0xff]
    %v2215 = vld [vmem:[#allocation7 + $0x3f0] sm:$0xff]
    %v2216 = vld [vmem:[#allocation7 + $0x3f8] sm:$0xff]
    %v2217 = vld [vmem:[%s11] sm:$0xf]
    %v2219 = vlaneseq
    %v2220 = vshrl.u32 %v2219, 7
    %v2221 = vsub.s32 0, %v2220
    %v2222 = vrot.slane %v2217, %v2221
    %v2223 = vlaneseq
    %v2224 = vshrl.u32 %v2223, 7
    %v2225 = vsub.s32 1, %v2224
    %v2226 = vrot.slane %v2217, %v2225
    %v2227 = vlaneseq
    %v2228 = vshrl.u32 %v2227, 7
    %v2229 = vsub.s32 2, %v2228
    %v2230 = vrot.slane %v2217, %v2229
    %v2231 = vlaneseq
    %v2232 = vshrl.u32 %v2231, 7
    %v2233 = vsub.s32 3, %v2232
    %v2234 = vrot.slane %v2217, %v2233
    %v2367 = vunpack.c.l.b16 %v2089
    %v2368 = vunpack.c.h.b16 %v2089
    %v2369 = vunpack.c.l.b16 %v2090
    %v2370 = vunpack.c.h.b16 %v2090
    %v2371 = vunpack.c.l.b16 %v2091
    %v2372 = vunpack.c.h.b16 %v2091
    %v2373 = vunpack.c.l.b16 %v2092
    %v2374 = vunpack.c.h.b16 %v2092
    %v2375 = vunpack.c.l.b16 %v2093
    %v2376 = vunpack.c.h.b16 %v2093
    %v2377 = vunpack.c.l.b16 %v2094
    %v2378 = vunpack.c.h.b16 %v2094
    %v2379 = vunpack.c.l.b16 %v2095
    %v2380 = vunpack.c.h.b16 %v2095
    %v2381 = vunpack.c.l.b16 %v2096
    %v2382 = vunpack.c.h.b16 %v2096
    %v2383 = vunpack.c.l.b16 %v2097
    %v2384 = vunpack.c.h.b16 %v2097
    %v2385 = vunpack.c.l.b16 %v2098
    %v2386 = vunpack.c.h.b16 %v2098
    %v2387 = vunpack.c.l.b16 %v2099
    %v2388 = vunpack.c.h.b16 %v2099
    %v2389 = vunpack.c.l.b16 %v2100
    %v2390 = vunpack.c.h.b16 %v2100
    %v2391 = vunpack.c.l.b16 %v2101
    %v2392 = vunpack.c.h.b16 %v2101
    %v2393 = vunpack.c.l.b16 %v2102
    %v2394 = vunpack.c.h.b16 %v2102
    %v2395 = vunpack.c.l.b16 %v2103
    %v2396 = vunpack.c.h.b16 %v2103
    %v2397 = vunpack.c.l.b16 %v2104
    %v2398 = vunpack.c.h.b16 %v2104
    %v2399 = vunpack.c.l.b16 %v2105
    %v2400 = vunpack.c.h.b16 %v2105
    %v2401 = vunpack.c.l.b16 %v2106
    %v2402 = vunpack.c.h.b16 %v2106
    %v2403 = vunpack.c.l.b16 %v2107
    %v2404 = vunpack.c.h.b16 %v2107
    %v2405 = vunpack.c.l.b16 %v2108
    %v2406 = vunpack.c.h.b16 %v2108
    %v2407 = vunpack.c.l.b16 %v2109
    %v2408 = vunpack.c.h.b16 %v2109
    %v2409 = vunpack.c.l.b16 %v2110
    %v2410 = vunpack.c.h.b16 %v2110
    %v2411 = vunpack.c.l.b16 %v2111
    %v2412 = vunpack.c.h.b16 %v2111
    %v2413 = vunpack.c.l.b16 %v2112
    %v2414 = vunpack.c.h.b16 %v2112
    %v2415 = vunpack.c.l.b16 %v2113
    %v2416 = vunpack.c.h.b16 %v2113
    %v2417 = vunpack.c.l.b16 %v2114
    %v2418 = vunpack.c.h.b16 %v2114
    %v2419 = vunpack.c.l.b16 %v2115
    %v2420 = vunpack.c.h.b16 %v2115
    %v2421 = vunpack.c.l.b16 %v2116
    %v2422 = vunpack.c.h.b16 %v2116
    %v2423 = vunpack.c.l.b16 %v2117
    %v2424 = vunpack.c.h.b16 %v2117
    %v2425 = vunpack.c.l.b16 %v2118
    %v2426 = vunpack.c.h.b16 %v2118
    %v2427 = vunpack.c.l.b16 %v2119
    %v2428 = vunpack.c.h.b16 %v2119
    %v2429 = vunpack.c.l.b16 %v2120
    %v2430 = vunpack.c.h.b16 %v2120
    %v2431 = vunpack.c.l.b16 %v2121
    %v2432 = vunpack.c.h.b16 %v2121
    %v2433 = vunpack.c.l.b16 %v2122
    %v2434 = vunpack.c.h.b16 %v2122
    %v2435 = vunpack.c.l.b16 %v2123
    %v2436 = vunpack.c.h.b16 %v2123
    %v2437 = vunpack.c.l.b16 %v2124
    %v2438 = vunpack.c.h.b16 %v2124
    %v2439 = vunpack.c.l.b16 %v2125
    %v2440 = vunpack.c.h.b16 %v2125
    %v2441 = vunpack.c.l.b16 %v2126
    %v2442 = vunpack.c.h.b16 %v2126
    %v2443 = vunpack.c.l.b16 %v2127
    %v2444 = vunpack.c.h.b16 %v2127
    %v2445 = vunpack.c.l.b16 %v2128
    %v2446 = vunpack.c.h.b16 %v2128
    %v2447 = vunpack.c.l.b16 %v2129
    %v2448 = vunpack.c.h.b16 %v2129
    %v2449 = vunpack.c.l.b16 %v2130
    %v2450 = vunpack.c.h.b16 %v2130
    %v2451 = vunpack.c.l.b16 %v2131
    %v2452 = vunpack.c.h.b16 %v2131
    %v2453 = vunpack.c.l.b16 %v2132
    %v2454 = vunpack.c.h.b16 %v2132
    %v2455 = vunpack.c.l.b16 %v2133
    %v2456 = vunpack.c.h.b16 %v2133
    %v2457 = vunpack.c.l.b16 %v2134
    %v2458 = vunpack.c.h.b16 %v2134
    %v2459 = vunpack.c.l.b16 %v2135
    %v2460 = vunpack.c.h.b16 %v2135
    %v2461 = vunpack.c.l.b16 %v2136
    %v2462 = vunpack.c.h.b16 %v2136
    %v2463 = vunpack.c.l.b16 %v2137
    %v2464 = vunpack.c.h.b16 %v2137
    %v2465 = vunpack.c.l.b16 %v2138
    %v2466 = vunpack.c.h.b16 %v2138
    %v2467 = vunpack.c.l.b16 %v2139
    %v2468 = vunpack.c.h.b16 %v2139
    %v2469 = vunpack.c.l.b16 %v2140
    %v2470 = vunpack.c.h.b16 %v2140
    %v2471 = vunpack.c.l.b16 %v2141
    %v2472 = vunpack.c.h.b16 %v2141
    %v2473 = vunpack.c.l.b16 %v2142
    %v2474 = vunpack.c.h.b16 %v2142
    %v2475 = vunpack.c.l.b16 %v2143
    %v2476 = vunpack.c.h.b16 %v2143
    %v2477 = vunpack.c.l.b16 %v2144
    %v2478 = vunpack.c.h.b16 %v2144
    %v2479 = vunpack.c.l.b16 %v2145
    %v2480 = vunpack.c.h.b16 %v2145
    %v2481 = vunpack.c.l.b16 %v2146
    %v2482 = vunpack.c.h.b16 %v2146
    %v2483 = vunpack.c.l.b16 %v2147
    %v2484 = vunpack.c.h.b16 %v2147
    %v2485 = vunpack.c.l.b16 %v2148
    %v2486 = vunpack.c.h.b16 %v2148
    %v2487 = vunpack.c.l.b16 %v2149
    %v2488 = vunpack.c.h.b16 %v2149
    %v2489 = vunpack.c.l.b16 %v2150
    %v2490 = vunpack.c.h.b16 %v2150
    %v2491 = vunpack.c.l.b16 %v2151
    %v2492 = vunpack.c.h.b16 %v2151
    %v2493 = vunpack.c.l.b16 %v2152
    %v2494 = vunpack.c.h.b16 %v2152
    %v2495 = vunpack.c.l.b16 %v2153
    %v2496 = vunpack.c.h.b16 %v2153
    %v2497 = vunpack.c.l.b16 %v2154
    %v2498 = vunpack.c.h.b16 %v2154
    %v2499 = vunpack.c.l.b16 %v2155
    %v2500 = vunpack.c.h.b16 %v2155
    %v2501 = vunpack.c.l.b16 %v2156
    %v2502 = vunpack.c.h.b16 %v2156
    %v2503 = vunpack.c.l.b16 %v2157
    %v2504 = vunpack.c.h.b16 %v2157
    %v2505 = vunpack.c.l.b16 %v2158
    %v2506 = vunpack.c.h.b16 %v2158
    %v2507 = vunpack.c.l.b16 %v2159
    %v2508 = vunpack.c.h.b16 %v2159
    %v2509 = vunpack.c.l.b16 %v2160
    %v2510 = vunpack.c.h.b16 %v2160
    %v2511 = vunpack.c.l.b16 %v2161
    %v2512 = vunpack.c.h.b16 %v2161
    %v2513 = vunpack.c.l.b16 %v2162
    %v2514 = vunpack.c.h.b16 %v2162
    %v2515 = vunpack.c.l.b16 %v2163
    %v2516 = vunpack.c.h.b16 %v2163
    %v2517 = vunpack.c.l.b16 %v2164
    %v2518 = vunpack.c.h.b16 %v2164
    %v2519 = vunpack.c.l.b16 %v2165
    %v2520 = vunpack.c.h.b16 %v2165
    %v2521 = vunpack.c.l.b16 %v2166
    %v2522 = vunpack.c.h.b16 %v2166
    %v2523 = vunpack.c.l.b16 %v2167
    %v2524 = vunpack.c.h.b16 %v2167
    %v2525 = vunpack.c.l.b16 %v2168
    %v2526 = vunpack.c.h.b16 %v2168
    %v2527 = vunpack.c.l.b16 %v2169
    %v2528 = vunpack.c.h.b16 %v2169
    %v2529 = vunpack.c.l.b16 %v2170
    %v2530 = vunpack.c.h.b16 %v2170
    %v2531 = vunpack.c.l.b16 %v2171
    %v2532 = vunpack.c.h.b16 %v2171
    %v2533 = vunpack.c.l.b16 %v2172
    %v2534 = vunpack.c.h.b16 %v2172
    %v2535 = vunpack.c.l.b16 %v2173
    %v2536 = vunpack.c.h.b16 %v2173
    %v2537 = vunpack.c.l.b16 %v2174
    %v2538 = vunpack.c.h.b16 %v2174
    %v2539 = vunpack.c.l.b16 %v2175
    %v2540 = vunpack.c.h.b16 %v2175
    %v2541 = vunpack.c.l.b16 %v2176
    %v2542 = vunpack.c.h.b16 %v2176
    %v2543 = vunpack.c.l.b16 %v2177
    %v2544 = vunpack.c.h.b16 %v2177
    %v2545 = vunpack.c.l.b16 %v2178
    %v2546 = vunpack.c.h.b16 %v2178
    %v2547 = vunpack.c.l.b16 %v2179
    %v2548 = vunpack.c.h.b16 %v2179
    %v2549 = vunpack.c.l.b16 %v2180
    %v2550 = vunpack.c.h.b16 %v2180
    %v2551 = vunpack.c.l.b16 %v2181
    %v2552 = vunpack.c.h.b16 %v2181
    %v2553 = vunpack.c.l.b16 %v2182
    %v2554 = vunpack.c.h.b16 %v2182
    %v2555 = vunpack.c.l.b16 %v2183
    %v2556 = vunpack.c.h.b16 %v2183
    %v2557 = vunpack.c.l.b16 %v2184
    %v2558 = vunpack.c.h.b16 %v2184
    %v2559 = vunpack.c.l.b16 %v2185
    %v2560 = vunpack.c.h.b16 %v2185
    %v2561 = vunpack.c.l.b16 %v2186
    %v2562 = vunpack.c.h.b16 %v2186
    %v2563 = vunpack.c.l.b16 %v2187
    %v2564 = vunpack.c.h.b16 %v2187
    %v2565 = vunpack.c.l.b16 %v2188
    %v2566 = vunpack.c.h.b16 %v2188
    %v2567 = vunpack.c.l.b16 %v2189
    %v2568 = vunpack.c.h.b16 %v2189
    %v2569 = vunpack.c.l.b16 %v2190
    %v2570 = vunpack.c.h.b16 %v2190
    %v2571 = vunpack.c.l.b16 %v2191
    %v2572 = vunpack.c.h.b16 %v2191
    %v2573 = vunpack.c.l.b16 %v2192
    %v2574 = vunpack.c.h.b16 %v2192
    %v2575 = vunpack.c.l.b16 %v2193
    %v2576 = vunpack.c.h.b16 %v2193
    %v2577 = vunpack.c.l.b16 %v2194
    %v2578 = vunpack.c.h.b16 %v2194
    %v2579 = vunpack.c.l.b16 %v2195
    %v2580 = vunpack.c.h.b16 %v2195
    %v2581 = vunpack.c.l.b16 %v2196
    %v2582 = vunpack.c.h.b16 %v2196
    %v2583 = vunpack.c.l.b16 %v2197
    %v2584 = vunpack.c.h.b16 %v2197
    %v2585 = vunpack.c.l.b16 %v2198
    %v2586 = vunpack.c.h.b16 %v2198
    %v2587 = vunpack.c.l.b16 %v2199
    %v2588 = vunpack.c.h.b16 %v2199
    %v2589 = vunpack.c.l.b16 %v2200
    %v2590 = vunpack.c.h.b16 %v2200
    %v2591 = vunpack.c.l.b16 %v2201
    %v2592 = vunpack.c.h.b16 %v2201
    %v2593 = vunpack.c.l.b16 %v2202
    %v2594 = vunpack.c.h.b16 %v2202
    %v2595 = vunpack.c.l.b16 %v2203
    %v2596 = vunpack.c.h.b16 %v2203
    %v2597 = vunpack.c.l.b16 %v2204
    %v2598 = vunpack.c.h.b16 %v2204
    %v2599 = vunpack.c.l.b16 %v2205
    %v2600 = vunpack.c.h.b16 %v2205
    %v2601 = vunpack.c.l.b16 %v2206
    %v2602 = vunpack.c.h.b16 %v2206
    %v2603 = vunpack.c.l.b16 %v2207
    %v2604 = vunpack.c.h.b16 %v2207
    %v2605 = vunpack.c.l.b16 %v2208
    %v2606 = vunpack.c.h.b16 %v2208
    %v2607 = vunpack.c.l.b16 %v2209
    %v2608 = vunpack.c.h.b16 %v2209
    %v2609 = vunpack.c.l.b16 %v2210
    %v2610 = vunpack.c.h.b16 %v2210
    %v2611 = vunpack.c.l.b16 %v2211
    %v2612 = vunpack.c.h.b16 %v2211
    %v2613 = vunpack.c.l.b16 %v2212
    %v2614 = vunpack.c.h.b16 %v2212
    %v2615 = vunpack.c.l.b16 %v2213
    %v2616 = vunpack.c.h.b16 %v2213
    %v2617 = vunpack.c.l.b16 %v2214
    %v2618 = vunpack.c.h.b16 %v2214
    %v2619 = vunpack.c.l.b16 %v2215
    %v2620 = vunpack.c.h.b16 %v2215
    %v2621 = vunpack.c.l.b16 %v2216
    %v2622 = vunpack.c.h.b16 %v2216
    %v2623 = vpack.c.b16 %v2371, %v2367
    %v2624 = vpack.c.b16 %v2372, %v2368
    %v2625 = vpack.c.b16 %v2373, %v2369
    %v2626 = vpack.c.b16 %v2374, %v2370
    %v2627 = vpack.c.b16 %v2379, %v2375
    %v2628 = vpack.c.b16 %v2380, %v2376
    %v2629 = vpack.c.b16 %v2381, %v2377
    %v2630 = vpack.c.b16 %v2382, %v2378
    %v2631 = vpack.c.b16 %v2387, %v2383
    %v2632 = vpack.c.b16 %v2388, %v2384
    %v2633 = vpack.c.b16 %v2389, %v2385
    %v2634 = vpack.c.b16 %v2390, %v2386
    %v2635 = vpack.c.b16 %v2395, %v2391
    %v2636 = vpack.c.b16 %v2396, %v2392
    %v2637 = vpack.c.b16 %v2397, %v2393
    %v2638 = vpack.c.b16 %v2398, %v2394
    %v2639 = vpack.c.b16 %v2403, %v2399
    %v2640 = vpack.c.b16 %v2404, %v2400
    %v2641 = vpack.c.b16 %v2405, %v2401
    %v2642 = vpack.c.b16 %v2406, %v2402
    %v2643 = vpack.c.b16 %v2411, %v2407
    %v2644 = vpack.c.b16 %v2412, %v2408
    %v2645 = vpack.c.b16 %v2413, %v2409
    %v2646 = vpack.c.b16 %v2414, %v2410
    %v2647 = vpack.c.b16 %v2419, %v2415
    %v2648 = vpack.c.b16 %v2420, %v2416
    %v2649 = vpack.c.b16 %v2421, %v2417
    %v2650 = vpack.c.b16 %v2422, %v2418
    %v2651 = vpack.c.b16 %v2427, %v2423
    %v2652 = vpack.c.b16 %v2428, %v2424
    %v2653 = vpack.c.b16 %v2429, %v2425
    %v2654 = vpack.c.b16 %v2430, %v2426
    %v2655 = vpack.c.b16 %v2435, %v2431
    %v2656 = vpack.c.b16 %v2436, %v2432
    %v2657 = vpack.c.b16 %v2437, %v2433
    %v2658 = vpack.c.b16 %v2438, %v2434
    %v2659 = vpack.c.b16 %v2443, %v2439
    %v2660 = vpack.c.b16 %v2444, %v2440
    %v2661 = vpack.c.b16 %v2445, %v2441
    %v2662 = vpack.c.b16 %v2446, %v2442
    %v2663 = vpack.c.b16 %v2451, %v2447
    %v2664 = vpack.c.b16 %v2452, %v2448
    %v2665 = vpack.c.b16 %v2453, %v2449
    %v2666 = vpack.c.b16 %v2454, %v2450
    %v2667 = vpack.c.b16 %v2459, %v2455
    %v2668 = vpack.c.b16 %v2460, %v2456
    %v2669 = vpack.c.b16 %v2461, %v2457
    %v2670 = vpack.c.b16 %v2462, %v2458
    %v2671 = vpack.c.b16 %v2467, %v2463
    %v2672 = vpack.c.b16 %v2468, %v2464
    %v2673 = vpack.c.b16 %v2469, %v2465
    %v2674 = vpack.c.b16 %v2470, %v2466
    %v2675 = vpack.c.b16 %v2475, %v2471
    %v2676 = vpack.c.b16 %v2476, %v2472
    %v2677 = vpack.c.b16 %v2477, %v2473
    %v2678 = vpack.c.b16 %v2478, %v2474
    %v2679 = vpack.c.b16 %v2483, %v2479
    %v2680 = vpack.c.b16 %v2484, %v2480
    %v2681 = vpack.c.b16 %v2485, %v2481
    %v2682 = vpack.c.b16 %v2486, %v2482
    %v2683 = vpack.c.b16 %v2491, %v2487
    %v2684 = vpack.c.b16 %v2492, %v2488
    %v2685 = vpack.c.b16 %v2493, %v2489
    %v2686 = vpack.c.b16 %v2494, %v2490
    %v2687 = vpack.c.b16 %v2499, %v2495
    %v2688 = vpack.c.b16 %v2500, %v2496
    %v2689 = vpack.c.b16 %v2501, %v2497
    %v2690 = vpack.c.b16 %v2502, %v2498
    %v2691 = vpack.c.b16 %v2507, %v2503
    %v2692 = vpack.c.b16 %v2508, %v2504
    %v2693 = vpack.c.b16 %v2509, %v2505
    %v2694 = vpack.c.b16 %v2510, %v2506
    %v2695 = vpack.c.b16 %v2515, %v2511
    %v2696 = vpack.c.b16 %v2516, %v2512
    %v2697 = vpack.c.b16 %v2517, %v2513
    %v2698 = vpack.c.b16 %v2518, %v2514
    %v2699 = vpack.c.b16 %v2523, %v2519
    %v2700 = vpack.c.b16 %v2524, %v2520
    %v2701 = vpack.c.b16 %v2525, %v2521
    %v2702 = vpack.c.b16 %v2526, %v2522
    %v2703 = vpack.c.b16 %v2531, %v2527
    %v2704 = vpack.c.b16 %v2532, %v2528
    %v2705 = vpack.c.b16 %v2533, %v2529
    %v2706 = vpack.c.b16 %v2534, %v2530
    %v2707 = vpack.c.b16 %v2539, %v2535
    %v2708 = vpack.c.b16 %v2540, %v2536
    %v2709 = vpack.c.b16 %v2541, %v2537
    %v2710 = vpack.c.b16 %v2542, %v2538
    %v2711 = vpack.c.b16 %v2547, %v2543
    %v2712 = vpack.c.b16 %v2548, %v2544
    %v2713 = vpack.c.b16 %v2549, %v2545
    %v2714 = vpack.c.b16 %v2550, %v2546
    %v2715 = vpack.c.b16 %v2555, %v2551
    %v2716 = vpack.c.b16 %v2556, %v2552
    %v2717 = vpack.c.b16 %v2557, %v2553
    %v2718 = vpack.c.b16 %v2558, %v2554
    %v2719 = vpack.c.b16 %v2563, %v2559
    %v2720 = vpack.c.b16 %v2564, %v2560
    %v2721 = vpack.c.b16 %v2565, %v2561
    %v2722 = vpack.c.b16 %v2566, %v2562
    %v2723 = vpack.c.b16 %v2571, %v2567
    %v2724 = vpack.c.b16 %v2572, %v2568
    %v2725 = vpack.c.b16 %v2573, %v2569
    %v2726 = vpack.c.b16 %v2574, %v2570
    %v2727 = vpack.c.b16 %v2579, %v2575
    %v2728 = vpack.c.b16 %v2580, %v2576
    %v2729 = vpack.c.b16 %v2581, %v2577
    %v2730 = vpack.c.b16 %v2582, %v2578
    %v2731 = vpack.c.b16 %v2587, %v2583
    %v2732 = vpack.c.b16 %v2588, %v2584
    %v2733 = vpack.c.b16 %v2589, %v2585
    %v2734 = vpack.c.b16 %v2590, %v2586
    %v2735 = vpack.c.b16 %v2595, %v2591
    %v2736 = vpack.c.b16 %v2596, %v2592
    %v2737 = vpack.c.b16 %v2597, %v2593
    %v2738 = vpack.c.b16 %v2598, %v2594
    %v2739 = vpack.c.b16 %v2603, %v2599
    %v2740 = vpack.c.b16 %v2604, %v2600
    %v2741 = vpack.c.b16 %v2605, %v2601
    %v2742 = vpack.c.b16 %v2606, %v2602
    %v2743 = vpack.c.b16 %v2611, %v2607
    %v2744 = vpack.c.b16 %v2612, %v2608
    %v2745 = vpack.c.b16 %v2613, %v2609
    %v2746 = vpack.c.b16 %v2614, %v2610
    %v2747 = vpack.c.b16 %v2619, %v2615
    %v2748 = vpack.c.b16 %v2620, %v2616
    %v2749 = vpack.c.b16 %v2621, %v2617
    %v2750 = vpack.c.b16 %v2622, %v2618
    %2879 = vmatprep.subr.bf16.mxu0 %v2624
    %2880 = vmatpush1.bf16.msra.mxu0 %v2623
    %2881 = vmatprep.subr.bf16.mxu0 %v2628
    %2882 = vmatpush1.bf16.msra.mxu0 %v2627
    %2883 = vmatprep.subr.bf16.mxu0 %v2632
    %2884 = vmatpush1.bf16.msra.mxu0 %v2631
    %2885 = vmatprep.subr.bf16.mxu0 %v2636
    %2886 = vmatpush1.bf16.msra.mxu0 %v2635
    %2887 = vmatprep.subr.bf16.mxu0 %v2640
    %2888 = vmatpush1.bf16.msra.mxu0 %v2639
    %2889 = vmatprep.subr.bf16.mxu0 %v2644
    %2890 = vmatpush1.bf16.msra.mxu0 %v2643
    %2891 = vmatprep.subr.bf16.mxu0 %v2648
    %2892 = vmatpush1.bf16.msra.mxu0 %v2647
    %2893 = vmatprep.subr.bf16.mxu0 %v2652
    %2894 = vmatpush1.bf16.msra.mxu0 %v2651
    %2895 = vmatprep.subr.bf16.mxu0 %v2656
    %2896 = vmatpush1.bf16.msra.mxu0 %v2655
    %2897 = vmatprep.subr.bf16.mxu0 %v2660
    %2898 = vmatpush1.bf16.msra.mxu0 %v2659
    %2899 = vmatprep.subr.bf16.mxu0 %v2664
    %2900 = vmatpush1.bf16.msra.mxu0 %v2663
    %2901 = vmatprep.subr.bf16.mxu0 %v2668
    %2902 = vmatpush1.bf16.msra.mxu0 %v2667
    %2903 = vmatprep.subr.bf16.mxu0 %v2672
    %2904 = vmatpush1.bf16.msra.mxu0 %v2671
    %2905 = vmatprep.subr.bf16.mxu0 %v2676
    %2906 = vmatpush1.bf16.msra.mxu0 %v2675
    %2907 = vmatprep.subr.bf16.mxu0 %v2680
    %2908 = vmatpush1.bf16.msra.mxu0 %v2679
    %2909 = vmatprep.subr.bf16.mxu0 %v2684
    %2910 = vmatpush1.bf16.msra.mxu0 %v2683
    %2911 = vmatprep.mubr.bf16.mxu0 %v2086
    %2912 = vmatmul.mubr.bf16.gmra.mrb[0].mxu0 %v2085
    %v2913 = vpop.f32.mrb[0].mxu0
    %v2914 = vadd.f32 %v2222, %v2913
    %v2915 = vpop.f32.mrb[0].mxu0
    %v2916 = vadd.f32 %v2226, %v2915
    %v2917 = vpop.f32.mrb[0].mxu0
    %v2918 = vpop.f32.mrb[0].mxu0
    %2919 = vdwg.mxu0
    %2920 = vmatprep.subr.bf16.mxu0 %v2688
    %2921 = vmatpush1.bf16.msra.mxu0 %v2687
    %2922 = vmatprep.subr.bf16.mxu0 %v2692
    %2923 = vmatpush1.bf16.msra.mxu0 %v2691
    %2924 = vmatprep.subr.bf16.mxu0 %v2696
    %2925 = vmatpush1.bf16.msra.mxu0 %v2695
    %2926 = vmatprep.subr.bf16.mxu0 %v2700
    %2927 = vmatpush1.bf16.msra.mxu0 %v2699
    %2928 = vmatprep.subr.bf16.mxu0 %v2704
    %2929 = vmatpush1.bf16.msra.mxu0 %v2703
    %2930 = vmatprep.subr.bf16.mxu0 %v2708
    %2931 = vmatpush1.bf16.msra.mxu0 %v2707
    %2932 = vmatprep.subr.bf16.mxu0 %v2712
    %2933 = vmatpush1.bf16.msra.mxu0 %v2711
    %2934 = vmatprep.subr.bf16.mxu0 %v2716
    %2935 = vmatpush1.bf16.msra.mxu0 %v2715
    %2936 = vmatprep.subr.bf16.mxu0 %v2720
    %2937 = vmatpush1.bf16.msra.mxu0 %v2719
    %2938 = vmatprep.subr.bf16.mxu0 %v2724
    %2939 = vmatpush1.bf16.msra.mxu0 %v2723
    %2940 = vmatprep.subr.bf16.mxu0 %v2728
    %2941 = vmatpush1.bf16.msra.mxu0 %v2727
    %2942 = vmatprep.subr.bf16.mxu0 %v2732
    %2943 = vmatpush1.bf16.msra.mxu0 %v2731
    %2944 = vmatprep.subr.bf16.mxu0 %v2736
    %2945 = vmatpush1.bf16.msra.mxu0 %v2735
    %2946 = vmatprep.subr.bf16.mxu0 %v2740
    %2947 = vmatpush1.bf16.msra.mxu0 %v2739
    %2948 = vmatprep.subr.bf16.mxu0 %v2744
    %2949 = vmatpush1.bf16.msra.mxu0 %v2743
    %2950 = vmatprep.subr.bf16.mxu0 %v2748
    %2951 = vmatpush1.bf16.msra.mxu0 %v2747
    %2952 = vmatprep.mubr.bf16.mxu0 %v2088
    %2953 = vmatmul.mubr.bf16.gmra.mrb[0].mxu0 %v2087
    %v2954 = vpop.f32.mrb[0].mxu0
    %v2955 = vadd.f32 %v2914, %v2954
    %v2956 = vpop.f32.mrb[0].mxu0
    %v2957 = vadd.f32 %v2916, %v2956
    %v2958 = vpop.f32.mrb[0].mxu0
    %v2959 = vpop.f32.mrb[0].mxu0
    %2960 = vdwg.mxu0
    %2961 = vmatprep.subr.bf16.mxu0 %v2626
    %2962 = vmatpush1.bf16.msra.mxu0 %v2625
    %2963 = vmatprep.subr.bf16.mxu0 %v2630
    %2964 = vmatpush1.bf16.msra.mxu0 %v2629
    %2965 = vmatprep.subr.bf16.mxu0 %v2634
    %2966 = vmatpush1.bf16.msra.mxu0 %v2633
    %2967 = vmatprep.subr.bf16.mxu0 %v2638
    %2968 = vmatpush1.bf16.msra.mxu0 %v2637
    %2969 = vmatprep.subr.bf16.mxu0 %v2642
    %2970 = vmatpush1.bf16.msra.mxu0 %v2641
    %2971 = vmatprep.subr.bf16.mxu0 %v2646
    %2972 = vmatpush1.bf16.msra.mxu0 %v2645
    %2973 = vmatprep.subr.bf16.mxu0 %v2650
    %2974 = vmatpush1.bf16.msra.mxu0 %v2649
    %2975 = vmatprep.subr.bf16.mxu0 %v2654
    %2976 = vmatpush1.bf16.msra.mxu0 %v2653
    %2977 = vmatprep.subr.bf16.mxu0 %v2658
    %2978 = vmatpush1.bf16.msra.mxu0 %v2657
    %2979 = vmatprep.subr.bf16.mxu0 %v2662
    %2980 = vmatpush1.bf16.msra.mxu0 %v2661
    %2981 = vmatprep.subr.bf16.mxu0 %v2666
    %2982 = vmatpush1.bf16.msra.mxu0 %v2665
    %2983 = vmatprep.subr.bf16.mxu0 %v2670
    %2984 = vmatpush1.bf16.msra.mxu0 %v2669
    %2985 = vmatprep.subr.bf16.mxu0 %v2674
    %2986 = vmatpush1.bf16.msra.mxu0 %v2673
    %2987 = vmatprep.subr.bf16.mxu0 %v2678
    %2988 = vmatpush1.bf16.msra.mxu0 %v2677
    %2989 = vmatprep.subr.bf16.mxu0 %v2682
    %2990 = vmatpush1.bf16.msra.mxu0 %v2681
    %2991 = vmatprep.subr.bf16.mxu0 %v2686
    %2992 = vmatpush1.bf16.msra.mxu0 %v2685
    %2993 = vmatprep.mubr.bf16.mxu0 %v2086
    %2994 = vmatmul.mubr.bf16.gmra.mrb[0].mxu0 %v2085
    %v2995 = vpop.f32.mrb[0].mxu0
    %v2996 = vadd.f32 %v2230, %v2995
    %v2997 = vpop.f32.mrb[0].mxu0
    %v2998 = vadd.f32 %v2234, %v2997
    %v2999 = vpop.f32.mrb[0].mxu0
    %v3000 = vpop.f32.mrb[0].mxu0
    %3001 = vdwg.mxu0
    %3002 = vmatprep.subr.bf16.mxu0 %v2690
    %3003 = vmatpush1.bf16.msra.mxu0 %v2689
    %3004 = vmatprep.subr.bf16.mxu0 %v2694
    %3005 = vmatpush1.bf16.msra.mxu0 %v2693
    %3006 = vmatprep.subr.bf16.mxu0 %v2698
    %3007 = vmatpush1.bf16.msra.mxu0 %v2697
    %3008 = vmatprep.subr.bf16.mxu0 %v2702
    %3009 = vmatpush1.bf16.msra.mxu0 %v2701
    %3010 = vmatprep.subr.bf16.mxu0 %v2706
    %3011 = vmatpush1.bf16.msra.mxu0 %v2705
    %3012 = vmatprep.subr.bf16.mxu0 %v2710
    %3013 = vmatpush1.bf16.msra.mxu0 %v2709
    %3014 = vmatprep.subr.bf16.mxu0 %v2714
    %3015 = vmatpush1.bf16.msra.mxu0 %v2713
    %3016 = vmatprep.subr.bf16.mxu0 %v2718
    %3017 = vmatpush1.bf16.msra.mxu0 %v2717
    %3018 = vmatprep.subr.bf16.mxu0 %v2722
    %3019 = vmatpush1.bf16.msra.mxu0 %v2721
    %3020 = vmatprep.subr.bf16.mxu0 %v2726
    %3021 = vmatpush1.bf16.msra.mxu0 %v2725
    %3022 = vmatprep.subr.bf16.mxu0 %v2730
    %3023 = vmatpush1.bf16.msra.mxu0 %v2729
    %3024 = vmatprep.subr.bf16.mxu0 %v2734
    %3025 = vmatpush1.bf16.msra.mxu0 %v2733
    %3026 = vmatprep.subr.bf16.mxu0 %v2738
    %3027 = vmatpush1.bf16.msra.mxu0 %v2737
    %3028 = vmatprep.subr.bf16.mxu0 %v2742
    %3029 = vmatpush1.bf16.msra.mxu0 %v2741
    %3030 = vmatprep.subr.bf16.mxu0 %v2746
    %3031 = vmatpush1.bf16.msra.mxu0 %v2745
    %3032 = vmatprep.subr.bf16.mxu0 %v2750
    %3033 = vmatpush1.bf16.msra.mxu0 %v2749
    %3034 = vmatprep.mubr.bf16.mxu0 %v2088
    %3035 = vmatmul.mubr.bf16.gmra.mrb[0].mxu0 %v2087
    %v3036 = vpop.f32.mrb[0].mxu0
    %v3037 = vadd.f32 %v2996, %v3036
    %v3038 = vpop.f32.mrb[0].mxu0
    %v3039 = vadd.f32 %v2998, %v3038
    %v3040 = vpop.f32.mrb[0].mxu0
    %v3041 = vpop.f32.mrb[0].mxu0
    %3042 = vdwg.mxu0
    %v3043 = vpack.c.bf16 %v2955, %v2955
    %v3044 = vpack.c.bf16 %v2957, %v2957
    %v3045 = vpack.c.bf16 %v3037, %v3037
    %v3046 = vpack.c.bf16 %v3039, %v3039
    %v3047 = vmax.bf16 %v3043, 0
    %v3048 = vmax.bf16 %v3044, 0
    %v3049 = vmax.bf16 %v3045, 0
    %v3050 = vmax.bf16 %v3046, 0
    %v3051 = vld [vmem:[#allocation8] sm:$0xff]
    %v3052 = vld [vmem:[#allocation8 + $0x8] sm:$0xff]
    %v3053 = vld [vmem:[#allocation8 + $0x10] sm:$0xff]
    %v3054 = vld [vmem:[#allocation8 + $0x18] sm:$0xff]
    %v3055 = vld [vmem:[#allocation8 + $0x20] sm:$0xff]
    %v3056 = vld [vmem:[#allocation8 + $0x28] sm:$0xff]
    %v3057 = vld [vmem:[#allocation8 + $0x30] sm:$0xff]
    %v3058 = vld [vmem:[#allocation8 + $0x38] sm:$0xff]
    %v3059 = vld [vmem:[#allocation8 + $0x40] sm:$0xff]
    %v3060 = vld [vmem:[#allocation8 + $0x48] sm:$0xff]
    %v3061 = vld [vmem:[#allocation8 + $0x50] sm:$0xff]
    %v3062 = vld [vmem:[#allocation8 + $0x58] sm:$0xff]
    %v3063 = vld [vmem:[#allocation8 + $0x60] sm:$0xff]
    %v3064 = vld [vmem:[#allocation8 + $0x68] sm:$0xff]
    %v3065 = vld [vmem:[#allocation8 + $0x70] sm:$0xff]
    %v3066 = vld [vmem:[#allocation8 + $0x78] sm:$0xff]
    %v3067 = vld [vmem:[#allocation8 + $0x80] sm:$0xff]
    %v3068 = vld [vmem:[#allocation8 + $0x88] sm:$0xff]
    %v3069 = vld [vmem:[#allocation8 + $0x90] sm:$0xff]
    %v3070 = vld [vmem:[#allocation8 + $0x98] sm:$0xff]
    %v3071 = vld [vmem:[#allocation8 + $0xa0] sm:$0xff]
    %v3072 = vld [vmem:[#allocation8 + $0xa8] sm:$0xff]
    %v3073 = vld [vmem:[#allocation8 + $0xb0] sm:$0xff]
    %v3074 = vld [vmem:[#allocation8 + $0xb8] sm:$0xff]
    %v3075 = vld [vmem:[#allocation8 + $0xc0] sm:$0xff]
    %v3076 = vld [vmem:[#allocation8 + $0xc8] sm:$0xff]
    %v3077 = vld [vmem:[#allocation8 + $0xd0] sm:$0xff]
    %v3078 = vld [vmem:[#allocation8 + $0xd8] sm:$0xff]
    %v3079 = vld [vmem:[#allocation8 + $0xe0] sm:$0xff]
    %v3080 = vld [vmem:[#allocation8 + $0xe8] sm:$0xff]
    %v3081 = vld [vmem:[#allocation8 + $0xf0] sm:$0xff]
    %v3082 = vld [vmem:[#allocation8 + $0xf8] sm:$0xff]
    %v3083 = vld [vmem:[#allocation8 + $0x100] sm:$0xff]
    %v3084 = vld [vmem:[#allocation8 + $0x108] sm:$0xff]
    %v3085 = vld [vmem:[#allocation8 + $0x110] sm:$0xff]
    %v3086 = vld [vmem:[#allocation8 + $0x118] sm:$0xff]
    %v3087 = vld [vmem:[#allocation8 + $0x120] sm:$0xff]
    %v3088 = vld [vmem:[#allocation8 + $0x128] sm:$0xff]
    %v3089 = vld [vmem:[#allocation8 + $0x130] sm:$0xff]
    %v3090 = vld [vmem:[#allocation8 + $0x138] sm:$0xff]
    %v3091 = vld [vmem:[#allocation8 + $0x140] sm:$0xff]
    %v3092 = vld [vmem:[#allocation8 + $0x148] sm:$0xff]
    %v3093 = vld [vmem:[#allocation8 + $0x150] sm:$0xff]
    %v3094 = vld [vmem:[#allocation8 + $0x158] sm:$0xff]
    %v3095 = vld [vmem:[#allocation8 + $0x160] sm:$0xff]
    %v3096 = vld [vmem:[#allocation8 + $0x168] sm:$0xff]
    %v3097 = vld [vmem:[#allocation8 + $0x170] sm:$0xff]
    %v3098 = vld [vmem:[#allocation8 + $0x178] sm:$0xff]
    %v3099 = vld [vmem:[#allocation8 + $0x180] sm:$0xff]
    %v3100 = vld [vmem:[#allocation8 + $0x188] sm:$0xff]
    %v3101 = vld [vmem:[#allocation8 + $0x190] sm:$0xff]
    %v3102 = vld [vmem:[#allocation8 + $0x198] sm:$0xff]
    %v3103 = vld [vmem:[#allocation8 + $0x1a0] sm:$0xff]
    %v3104 = vld [vmem:[#allocation8 + $0x1a8] sm:$0xff]
    %v3105 = vld [vmem:[#allocation8 + $0x1b0] sm:$0xff]
    %v3106 = vld [vmem:[#allocation8 + $0x1b8] sm:$0xff]
    %v3107 = vld [vmem:[#allocation8 + $0x1c0] sm:$0xff]
    %v3108 = vld [vmem:[#allocation8 + $0x1c8] sm:$0xff]
    %v3109 = vld [vmem:[#allocation8 + $0x1d0] sm:$0xff]
    %v3110 = vld [vmem:[#allocation8 + $0x1d8] sm:$0xff]
    %v3111 = vld [vmem:[#allocation8 + $0x1e0] sm:$0xff]
    %v3112 = vld [vmem:[#allocation8 + $0x1e8] sm:$0xff]
    %v3113 = vld [vmem:[#allocation8 + $0x1f0] sm:$0xff]
    %v3114 = vld [vmem:[#allocation8 + $0x1f8] sm:$0xff]
    %v3115 = vld [vmem:[#allocation8 + $0x200] sm:$0xff]
    %v3116 = vld [vmem:[#allocation8 + $0x208] sm:$0xff]
    %v3117 = vld [vmem:[#allocation8 + $0x210] sm:$0xff]
    %v3118 = vld [vmem:[#allocation8 + $0x218] sm:$0xff]
    %v3119 = vld [vmem:[#allocation8 + $0x220] sm:$0xff]
    %v3120 = vld [vmem:[#allocation8 + $0x228] sm:$0xff]
    %v3121 = vld [vmem:[#allocation8 + $0x230] sm:$0xff]
    %v3122 = vld [vmem:[#allocation8 + $0x238] sm:$0xff]
    %v3123 = vld [vmem:[#allocation8 + $0x240] sm:$0xff]
    %v3124 = vld [vmem:[#allocation8 + $0x248] sm:$0xff]
    %v3125 = vld [vmem:[#allocation8 + $0x250] sm:$0xff]
    %v3126 = vld [vmem:[#allocation8 + $0x258] sm:$0xff]
    %v3127 = vld [vmem:[#allocation8 + $0x260] sm:$0xff]
    %v3128 = vld [vmem:[#allocation8 + $0x268] sm:$0xff]
    %v3129 = vld [vmem:[#allocation8 + $0x270] sm:$0xff]
    %v3130 = vld [vmem:[#allocation8 + $0x278] sm:$0xff]
    %v3131 = vld [vmem:[#allocation8 + $0x280] sm:$0xff]
    %v3132 = vld [vmem:[#allocation8 + $0x288] sm:$0xff]
    %v3133 = vld [vmem:[#allocation8 + $0x290] sm:$0xff]
    %v3134 = vld [vmem:[#allocation8 + $0x298] sm:$0xff]
    %v3135 = vld [vmem:[#allocation8 + $0x2a0] sm:$0xff]
    %v3136 = vld [vmem:[#allocation8 + $0x2a8] sm:$0xff]
    %v3137 = vld [vmem:[#allocation8 + $0x2b0] sm:$0xff]
    %v3138 = vld [vmem:[#allocation8 + $0x2b8] sm:$0xff]
    %v3139 = vld [vmem:[#allocation8 + $0x2c0] sm:$0xff]
    %v3140 = vld [vmem:[#allocation8 + $0x2c8] sm:$0xff]
    %v3141 = vld [vmem:[#allocation8 + $0x2d0] sm:$0xff]
    %v3142 = vld [vmem:[#allocation8 + $0x2d8] sm:$0xff]
    %v3143 = vld [vmem:[#allocation8 + $0x2e0] sm:$0xff]
    %v3144 = vld [vmem:[#allocation8 + $0x2e8] sm:$0xff]
    %v3145 = vld [vmem:[#allocation8 + $0x2f0] sm:$0xff]
    %v3146 = vld [vmem:[#allocation8 + $0x2f8] sm:$0xff]
    %v3147 = vld [vmem:[#allocation8 + $0x300] sm:$0xff]
    %v3148 = vld [vmem:[#allocation8 + $0x308] sm:$0xff]
    %v3149 = vld [vmem:[#allocation8 + $0x310] sm:$0xff]
    %v3150 = vld [vmem:[#allocation8 + $0x318] sm:$0xff]
    %v3151 = vld [vmem:[#allocation8 + $0x320] sm:$0xff]
    %v3152 = vld [vmem:[#allocation8 + $0x328] sm:$0xff]
    %v3153 = vld [vmem:[#allocation8 + $0x330] sm:$0xff]
    %v3154 = vld [vmem:[#allocation8 + $0x338] sm:$0xff]
    %v3155 = vld [vmem:[#allocation8 + $0x340] sm:$0xff]
    %v3156 = vld [vmem:[#allocation8 + $0x348] sm:$0xff]
    %v3157 = vld [vmem:[#allocation8 + $0x350] sm:$0xff]
    %v3158 = vld [vmem:[#allocation8 + $0x358] sm:$0xff]
    %v3159 = vld [vmem:[#allocation8 + $0x360] sm:$0xff]
    %v3160 = vld [vmem:[#allocation8 + $0x368] sm:$0xff]
    %v3161 = vld [vmem:[#allocation8 + $0x370] sm:$0xff]
    %v3162 = vld [vmem:[#allocation8 + $0x378] sm:$0xff]
    %v3163 = vld [vmem:[#allocation8 + $0x380] sm:$0xff]
    %v3164 = vld [vmem:[#allocation8 + $0x388] sm:$0xff]
    %v3165 = vld [vmem:[#allocation8 + $0x390] sm:$0xff]
    %v3166 = vld [vmem:[#allocation8 + $0x398] sm:$0xff]
    %v3167 = vld [vmem:[#allocation8 + $0x3a0] sm:$0xff]
    %v3168 = vld [vmem:[#allocation8 + $0x3a8] sm:$0xff]
    %v3169 = vld [vmem:[#allocation8 + $0x3b0] sm:$0xff]
    %v3170 = vld [vmem:[#allocation8 + $0x3b8] sm:$0xff]
    %v3171 = vld [vmem:[#allocation8 + $0x3c0] sm:$0xff]
    %v3172 = vld [vmem:[#allocation8 + $0x3c8] sm:$0xff]
    %v3173 = vld [vmem:[#allocation8 + $0x3d0] sm:$0xff]
    %v3174 = vld [vmem:[#allocation8 + $0x3d8] sm:$0xff]
    %v3175 = vld [vmem:[#allocation8 + $0x3e0] sm:$0xff]
    %v3176 = vld [vmem:[#allocation8 + $0x3e8] sm:$0xff]
    %v3177 = vld [vmem:[#allocation8 + $0x3f0] sm:$0xff]
    %v3178 = vld [vmem:[#allocation8 + $0x3f8] sm:$0xff]
    %v3179 = vld [vmem:[%s13] sm:$0xf]
    %v3181 = vlaneseq
    %v3182 = vshrl.u32 %v3181, 7
    %v3183 = vsub.s32 0, %v3182
    %v3184 = vrot.slane %v3179, %v3183
    %v3185 = vlaneseq
    %v3186 = vshrl.u32 %v3185, 7
    %v3187 = vsub.s32 1, %v3186
    %v3188 = vrot.slane %v3179, %v3187
    %v3189 = vlaneseq
    %v3190 = vshrl.u32 %v3189, 7
    %v3191 = vsub.s32 2, %v3190
    %v3192 = vrot.slane %v3179, %v3191
    %v3193 = vlaneseq
    %v3194 = vshrl.u32 %v3193, 7
    %v3195 = vsub.s32 3, %v3194
    %v3196 = vrot.slane %v3179, %v3195
    %v3329 = vunpack.c.l.b16 %v3051
    %v3330 = vunpack.c.h.b16 %v3051
    %v3331 = vunpack.c.l.b16 %v3052
    %v3332 = vunpack.c.h.b16 %v3052
    %v3333 = vunpack.c.l.b16 %v3053
    %v3334 = vunpack.c.h.b16 %v3053
    %v3335 = vunpack.c.l.b16 %v3054
    %v3336 = vunpack.c.h.b16 %v3054
    %v3337 = vunpack.c.l.b16 %v3055
    %v3338 = vunpack.c.h.b16 %v3055
    %v3339 = vunpack.c.l.b16 %v3056
    %v3340 = vunpack.c.h.b16 %v3056
    %v3341 = vunpack.c.l.b16 %v3057
    %v3342 = vunpack.c.h.b16 %v3057
    %v3343 = vunpack.c.l.b16 %v3058
    %v3344 = vunpack.c.h.b16 %v3058
    %v3345 = vunpack.c.l.b16 %v3059
    %v3346 = vunpack.c.h.b16 %v3059
    %v3347 = vunpack.c.l.b16 %v3060
    %v3348 = vunpack.c.h.b16 %v3060
    %v3349 = vunpack.c.l.b16 %v3061
    %v3350 = vunpack.c.h.b16 %v3061
    %v3351 = vunpack.c.l.b16 %v3062
    %v3352 = vunpack.c.h.b16 %v3062
    %v3353 = vunpack.c.l.b16 %v3063
    %v3354 = vunpack.c.h.b16 %v3063
    %v3355 = vunpack.c.l.b16 %v3064
    %v3356 = vunpack.c.h.b16 %v3064
    %v3357 = vunpack.c.l.b16 %v3065
    %v3358 = vunpack.c.h.b16 %v3065
    %v3359 = vunpack.c.l.b16 %v3066
    %v3360 = vunpack.c.h.b16 %v3066
    %v3361 = vunpack.c.l.b16 %v3067
    %v3362 = vunpack.c.h.b16 %v3067
    %v3363 = vunpack.c.l.b16 %v3068
    %v3364 = vunpack.c.h.b16 %v3068
    %v3365 = vunpack.c.l.b16 %v3069
    %v3366 = vunpack.c.h.b16 %v3069
    %v3367 = vunpack.c.l.b16 %v3070
    %v3368 = vunpack.c.h.b16 %v3070
    %v3369 = vunpack.c.l.b16 %v3071
    %v3370 = vunpack.c.h.b16 %v3071
    %v3371 = vunpack.c.l.b16 %v3072
    %v3372 = vunpack.c.h.b16 %v3072
    %v3373 = vunpack.c.l.b16 %v3073
    %v3374 = vunpack.c.h.b16 %v3073
    %v3375 = vunpack.c.l.b16 %v3074
    %v3376 = vunpack.c.h.b16 %v3074
    %v3377 = vunpack.c.l.b16 %v3075
    %v3378 = vunpack.c.h.b16 %v3075
    %v3379 = vunpack.c.l.b16 %v3076
    %v3380 = vunpack.c.h.b16 %v3076
    %v3381 = vunpack.c.l.b16 %v3077
    %v3382 = vunpack.c.h.b16 %v3077
    %v3383 = vunpack.c.l.b16 %v3078
    %v3384 = vunpack.c.h.b16 %v3078
    %v3385 = vunpack.c.l.b16 %v3079
    %v3386 = vunpack.c.h.b16 %v3079
    %v3387 = vunpack.c.l.b16 %v3080
    %v3388 = vunpack.c.h.b16 %v3080
    %v3389 = vunpack.c.l.b16 %v3081
    %v3390 = vunpack.c.h.b16 %v3081
    %v3391 = vunpack.c.l.b16 %v3082
    %v3392 = vunpack.c.h.b16 %v3082
    %v3393 = vunpack.c.l.b16 %v3083
    %v3394 = vunpack.c.h.b16 %v3083
    %v3395 = vunpack.c.l.b16 %v3084
    %v3396 = vunpack.c.h.b16 %v3084
    %v3397 = vunpack.c.l.b16 %v3085
    %v3398 = vunpack.c.h.b16 %v3085
    %v3399 = vunpack.c.l.b16 %v3086
    %v3400 = vunpack.c.h.b16 %v3086
    %v3401 = vunpack.c.l.b16 %v3087
    %v3402 = vunpack.c.h.b16 %v3087
    %v3403 = vunpack.c.l.b16 %v3088
    %v3404 = vunpack.c.h.b16 %v3088
    %v3405 = vunpack.c.l.b16 %v3089
    %v3406 = vunpack.c.h.b16 %v3089
    %v3407 = vunpack.c.l.b16 %v3090
    %v3408 = vunpack.c.h.b16 %v3090
    %v3409 = vunpack.c.l.b16 %v3091
    %v3410 = vunpack.c.h.b16 %v3091
    %v3411 = vunpack.c.l.b16 %v3092
    %v3412 = vunpack.c.h.b16 %v3092
    %v3413 = vunpack.c.l.b16 %v3093
    %v3414 = vunpack.c.h.b16 %v3093
    %v3415 = vunpack.c.l.b16 %v3094
    %v3416 = vunpack.c.h.b16 %v3094
    %v3417 = vunpack.c.l.b16 %v3095
    %v3418 = vunpack.c.h.b16 %v3095
    %v3419 = vunpack.c.l.b16 %v3096
    %v3420 = vunpack.c.h.b16 %v3096
    %v3421 = vunpack.c.l.b16 %v3097
    %v3422 = vunpack.c.h.b16 %v3097
    %v3423 = vunpack.c.l.b16 %v3098
    %v3424 = vunpack.c.h.b16 %v3098
    %v3425 = vunpack.c.l.b16 %v3099
    %v3426 = vunpack.c.h.b16 %v3099
    %v3427 = vunpack.c.l.b16 %v3100
    %v3428 = vunpack.c.h.b16 %v3100
    %v3429 = vunpack.c.l.b16 %v3101
    %v3430 = vunpack.c.h.b16 %v3101
    %v3431 = vunpack.c.l.b16 %v3102
    %v3432 = vunpack.c.h.b16 %v3102
    %v3433 = vunpack.c.l.b16 %v3103
    %v3434 = vunpack.c.h.b16 %v3103
    %v3435 = vunpack.c.l.b16 %v3104
    %v3436 = vunpack.c.h.b16 %v3104
    %v3437 = vunpack.c.l.b16 %v3105
    %v3438 = vunpack.c.h.b16 %v3105
    %v3439 = vunpack.c.l.b16 %v3106
    %v3440 = vunpack.c.h.b16 %v3106
    %v3441 = vunpack.c.l.b16 %v3107
    %v3442 = vunpack.c.h.b16 %v3107
    %v3443 = vunpack.c.l.b16 %v3108
    %v3444 = vunpack.c.h.b16 %v3108
    %v3445 = vunpack.c.l.b16 %v3109
    %v3446 = vunpack.c.h.b16 %v3109
    %v3447 = vunpack.c.l.b16 %v3110
    %v3448 = vunpack.c.h.b16 %v3110
    %v3449 = vunpack.c.l.b16 %v3111
    %v3450 = vunpack.c.h.b16 %v3111
    %v3451 = vunpack.c.l.b16 %v3112
    %v3452 = vunpack.c.h.b16 %v3112
    %v3453 = vunpack.c.l.b16 %v3113
    %v3454 = vunpack.c.h.b16 %v3113
    %v3455 = vunpack.c.l.b16 %v3114
    %v3456 = vunpack.c.h.b16 %v3114
    %v3457 = vunpack.c.l.b16 %v3115
    %v3458 = vunpack.c.h.b16 %v3115
    %v3459 = vunpack.c.l.b16 %v3116
    %v3460 = vunpack.c.h.b16 %v3116
    %v3461 = vunpack.c.l.b16 %v3117
    %v3462 = vunpack.c.h.b16 %v3117
    %v3463 = vunpack.c.l.b16 %v3118
    %v3464 = vunpack.c.h.b16 %v3118
    %v3465 = vunpack.c.l.b16 %v3119
    %v3466 = vunpack.c.h.b16 %v3119
    %v3467 = vunpack.c.l.b16 %v3120
    %v3468 = vunpack.c.h.b16 %v3120
    %v3469 = vunpack.c.l.b16 %v3121
    %v3470 = vunpack.c.h.b16 %v3121
    %v3471 = vunpack.c.l.b16 %v3122
    %v3472 = vunpack.c.h.b16 %v3122
    %v3473 = vunpack.c.l.b16 %v3123
    %v3474 = vunpack.c.h.b16 %v3123
    %v3475 = vunpack.c.l.b16 %v3124
    %v3476 = vunpack.c.h.b16 %v3124
    %v3477 = vunpack.c.l.b16 %v3125
    %v3478 = vunpack.c.h.b16 %v3125
    %v3479 = vunpack.c.l.b16 %v3126
    %v3480 = vunpack.c.h.b16 %v3126
    %v3481 = vunpack.c.l.b16 %v3127
    %v3482 = vunpack.c.h.b16 %v3127
    %v3483 = vunpack.c.l.b16 %v3128
    %v3484 = vunpack.c.h.b16 %v3128
    %v3485 = vunpack.c.l.b16 %v3129
    %v3486 = vunpack.c.h.b16 %v3129
    %v3487 = vunpack.c.l.b16 %v3130
    %v3488 = vunpack.c.h.b16 %v3130
    %v3489 = vunpack.c.l.b16 %v3131
    %v3490 = vunpack.c.h.b16 %v3131
    %v3491 = vunpack.c.l.b16 %v3132
    %v3492 = vunpack.c.h.b16 %v3132
    %v3493 = vunpack.c.l.b16 %v3133
    %v3494 = vunpack.c.h.b16 %v3133
    %v3495 = vunpack.c.l.b16 %v3134
    %v3496 = vunpack.c.h.b16 %v3134
    %v3497 = vunpack.c.l.b16 %v3135
    %v3498 = vunpack.c.h.b16 %v3135
    %v3499 = vunpack.c.l.b16 %v3136
    %v3500 = vunpack.c.h.b16 %v3136
    %v3501 = vunpack.c.l.b16 %v3137
    %v3502 = vunpack.c.h.b16 %v3137
    %v3503 = vunpack.c.l.b16 %v3138
    %v3504 = vunpack.c.h.b16 %v3138
    %v3505 = vunpack.c.l.b16 %v3139
    %v3506 = vunpack.c.h.b16 %v3139
    %v3507 = vunpack.c.l.b16 %v3140
    %v3508 = vunpack.c.h.b16 %v3140
    %v3509 = vunpack.c.l.b16 %v3141
    %v3510 = vunpack.c.h.b16 %v3141
    %v3511 = vunpack.c.l.b16 %v3142
    %v3512 = vunpack.c.h.b16 %v3142
    %v3513 = vunpack.c.l.b16 %v3143
    %v3514 = vunpack.c.h.b16 %v3143
    %v3515 = vunpack.c.l.b16 %v3144
    %v3516 = vunpack.c.h.b16 %v3144
    %v3517 = vunpack.c.l.b16 %v3145
    %v3518 = vunpack.c.h.b16 %v3145
    %v3519 = vunpack.c.l.b16 %v3146
    %v3520 = vunpack.c.h.b16 %v3146
    %v3521 = vunpack.c.l.b16 %v3147
    %v3522 = vunpack.c.h.b16 %v3147
    %v3523 = vunpack.c.l.b16 %v3148
    %v3524 = vunpack.c.h.b16 %v3148
    %v3525 = vunpack.c.l.b16 %v3149
    %v3526 = vunpack.c.h.b16 %v3149
    %v3527 = vunpack.c.l.b16 %v3150
    %v3528 = vunpack.c.h.b16 %v3150
    %v3529 = vunpack.c.l.b16 %v3151
    %v3530 = vunpack.c.h.b16 %v3151
    %v3531 = vunpack.c.l.b16 %v3152
    %v3532 = vunpack.c.h.b16 %v3152
    %v3533 = vunpack.c.l.b16 %v3153
    %v3534 = vunpack.c.h.b16 %v3153
    %v3535 = vunpack.c.l.b16 %v3154
    %v3536 = vunpack.c.h.b16 %v3154
    %v3537 = vunpack.c.l.b16 %v3155
    %v3538 = vunpack.c.h.b16 %v3155
    %v3539 = vunpack.c.l.b16 %v3156
    %v3540 = vunpack.c.h.b16 %v3156
    %v3541 = vunpack.c.l.b16 %v3157
    %v3542 = vunpack.c.h.b16 %v3157
    %v3543 = vunpack.c.l.b16 %v3158
    %v3544 = vunpack.c.h.b16 %v3158
    %v3545 = vunpack.c.l.b16 %v3159
    %v3546 = vunpack.c.h.b16 %v3159
    %v3547 = vunpack.c.l.b16 %v3160
    %v3548 = vunpack.c.h.b16 %v3160
    %v3549 = vunpack.c.l.b16 %v3161
    %v3550 = vunpack.c.h.b16 %v3161
    %v3551 = vunpack.c.l.b16 %v3162
    %v3552 = vunpack.c.h.b16 %v3162
    %v3553 = vunpack.c.l.b16 %v3163
    %v3554 = vunpack.c.h.b16 %v3163
    %v3555 = vunpack.c.l.b16 %v3164
    %v3556 = vunpack.c.h.b16 %v3164
    %v3557 = vunpack.c.l.b16 %v3165
    %v3558 = vunpack.c.h.b16 %v3165
    %v3559 = vunpack.c.l.b16 %v3166
    %v3560 = vunpack.c.h.b16 %v3166
    %v3561 = vunpack.c.l.b16 %v3167
    %v3562 = vunpack.c.h.b16 %v3167
    %v3563 = vunpack.c.l.b16 %v3168
    %v3564 = vunpack.c.h.b16 %v3168
    %v3565 = vunpack.c.l.b16 %v3169
    %v3566 = vunpack.c.h.b16 %v3169
    %v3567 = vunpack.c.l.b16 %v3170
    %v3568 = vunpack.c.h.b16 %v3170
    %v3569 = vunpack.c.l.b16 %v3171
    %v3570 = vunpack.c.h.b16 %v3171
    %v3571 = vunpack.c.l.b16 %v3172
    %v3572 = vunpack.c.h.b16 %v3172
    %v3573 = vunpack.c.l.b16 %v3173
    %v3574 = vunpack.c.h.b16 %v3173
    %v3575 = vunpack.c.l.b16 %v3174
    %v3576 = vunpack.c.h.b16 %v3174
    %v3577 = vunpack.c.l.b16 %v3175
    %v3578 = vunpack.c.h.b16 %v3175
    %v3579 = vunpack.c.l.b16 %v3176
    %v3580 = vunpack.c.h.b16 %v3176
    %v3581 = vunpack.c.l.b16 %v3177
    %v3582 = vunpack.c.h.b16 %v3177
    %v3583 = vunpack.c.l.b16 %v3178
    %v3584 = vunpack.c.h.b16 %v3178
    %v3585 = vpack.c.b16 %v3333, %v3329
    %v3586 = vpack.c.b16 %v3334, %v3330
    %v3587 = vpack.c.b16 %v3335, %v3331
    %v3588 = vpack.c.b16 %v3336, %v3332
    %v3589 = vpack.c.b16 %v3341, %v3337
    %v3590 = vpack.c.b16 %v3342, %v3338
    %v3591 = vpack.c.b16 %v3343, %v3339
    %v3592 = vpack.c.b16 %v3344, %v3340
    %v3593 = vpack.c.b16 %v3349, %v3345
    %v3594 = vpack.c.b16 %v3350, %v3346
    %v3595 = vpack.c.b16 %v3351, %v3347
    %v3596 = vpack.c.b16 %v3352, %v3348
    %v3597 = vpack.c.b16 %v3357, %v3353
    %v3598 = vpack.c.b16 %v3358, %v3354
    %v3599 = vpack.c.b16 %v3359, %v3355
    %v3600 = vpack.c.b16 %v3360, %v3356
    %v3601 = vpack.c.b16 %v3365, %v3361
    %v3602 = vpack.c.b16 %v3366, %v3362
    %v3603 = vpack.c.b16 %v3367, %v3363
    %v3604 = vpack.c.b16 %v3368, %v3364
    %v3605 = vpack.c.b16 %v3373, %v3369
    %v3606 = vpack.c.b16 %v3374, %v3370
    %v3607 = vpack.c.b16 %v3375, %v3371
    %v3608 = vpack.c.b16 %v3376, %v3372
    %v3609 = vpack.c.b16 %v3381, %v3377
    %v3610 = vpack.c.b16 %v3382, %v3378
    %v3611 = vpack.c.b16 %v3383, %v3379
    %v3612 = vpack.c.b16 %v3384, %v3380
    %v3613 = vpack.c.b16 %v3389, %v3385
    %v3614 = vpack.c.b16 %v3390, %v3386
    %v3615 = vpack.c.b16 %v3391, %v3387
    %v3616 = vpack.c.b16 %v3392, %v3388
    %v3617 = vpack.c.b16 %v3397, %v3393
    %v3618 = vpack.c.b16 %v3398, %v3394
    %v3619 = vpack.c.b16 %v3399, %v3395
    %v3620 = vpack.c.b16 %v3400, %v3396
    %v3621 = vpack.c.b16 %v3405, %v3401
    %v3622 = vpack.c.b16 %v3406, %v3402
    %v3623 = vpack.c.b16 %v3407, %v3403
    %v3624 = vpack.c.b16 %v3408, %v3404
    %v3625 = vpack.c.b16 %v3413, %v3409
    %v3626 = vpack.c.b16 %v3414, %v3410
    %v3627 = vpack.c.b16 %v3415, %v3411
    %v3628 = vpack.c.b16 %v3416, %v3412
    %v3629 = vpack.c.b16 %v3421, %v3417
    %v3630 = vpack.c.b16 %v3422, %v3418
    %v3631 = vpack.c.b16 %v3423, %v3419
    %v3632 = vpack.c.b16 %v3424, %v3420
    %v3633 = vpack.c.b16 %v3429, %v3425
    %v3634 = vpack.c.b16 %v3430, %v3426
    %v3635 = vpack.c.b16 %v3431, %v3427
    %v3636 = vpack.c.b16 %v3432, %v3428
    %v3637 = vpack.c.b16 %v3437, %v3433
    %v3638 = vpack.c.b16 %v3438, %v3434
    %v3639 = vpack.c.b16 %v3439, %v3435
    %v3640 = vpack.c.b16 %v3440, %v3436
    %v3641 = vpack.c.b16 %v3445, %v3441
    %v3642 = vpack.c.b16 %v3446, %v3442
    %v3643 = vpack.c.b16 %v3447, %v3443
    %v3644 = vpack.c.b16 %v3448, %v3444
    %v3645 = vpack.c.b16 %v3453, %v3449
    %v3646 = vpack.c.b16 %v3454, %v3450
    %v3647 = vpack.c.b16 %v3455, %v3451
    %v3648 = vpack.c.b16 %v3456, %v3452
    %v3649 = vpack.c.b16 %v3461, %v3457
    %v3650 = vpack.c.b16 %v3462, %v3458
    %v3651 = vpack.c.b16 %v3463, %v3459
    %v3652 = vpack.c.b16 %v3464, %v3460
    %v3653 = vpack.c.b16 %v3469, %v3465
    %v3654 = vpack.c.b16 %v3470, %v3466
    %v3655 = vpack.c.b16 %v3471, %v3467
    %v3656 = vpack.c.b16 %v3472, %v3468
    %v3657 = vpack.c.b16 %v3477, %v3473
    %v3658 = vpack.c.b16 %v3478, %v3474
    %v3659 = vpack.c.b16 %v3479, %v3475
    %v3660 = vpack.c.b16 %v3480, %v3476
    %v3661 = vpack.c.b16 %v3485, %v3481
    %v3662 = vpack.c.b16 %v3486, %v3482
    %v3663 = vpack.c.b16 %v3487, %v3483
    %v3664 = vpack.c.b16 %v3488, %v3484
    %v3665 = vpack.c.b16 %v3493, %v3489
    %v3666 = vpack.c.b16 %v3494, %v3490
    %v3667 = vpack.c.b16 %v3495, %v3491
    %v3668 = vpack.c.b16 %v3496, %v3492
    %v3669 = vpack.c.b16 %v3501, %v3497
    %v3670 = vpack.c.b16 %v3502, %v3498
    %v3671 = vpack.c.b16 %v3503, %v3499
    %v3672 = vpack.c.b16 %v3504, %v3500
    %v3673 = vpack.c.b16 %v3509, %v3505
    %v3674 = vpack.c.b16 %v3510, %v3506
    %v3675 = vpack.c.b16 %v3511, %v3507
    %v3676 = vpack.c.b16 %v3512, %v3508
    %v3677 = vpack.c.b16 %v3517, %v3513
    %v3678 = vpack.c.b16 %v3518, %v3514
    %v3679 = vpack.c.b16 %v3519, %v3515
    %v3680 = vpack.c.b16 %v3520, %v3516
    %v3681 = vpack.c.b16 %v3525, %v3521
    %v3682 = vpack.c.b16 %v3526, %v3522
    %v3683 = vpack.c.b16 %v3527, %v3523
    %v3684 = vpack.c.b16 %v3528, %v3524
    %v3685 = vpack.c.b16 %v3533, %v3529
    %v3686 = vpack.c.b16 %v3534, %v3530
    %v3687 = vpack.c.b16 %v3535, %v3531
    %v3688 = vpack.c.b16 %v3536, %v3532
    %v3689 = vpack.c.b16 %v3541, %v3537
    %v3690 = vpack.c.b16 %v3542, %v3538
    %v3691 = vpack.c.b16 %v3543, %v3539
    %v3692 = vpack.c.b16 %v3544, %v3540
    %v3693 = vpack.c.b16 %v3549, %v3545
    %v3694 = vpack.c.b16 %v3550, %v3546
    %v3695 = vpack.c.b16 %v3551, %v3547
    %v3696 = vpack.c.b16 %v3552, %v3548
    %v3697 = vpack.c.b16 %v3557, %v3553
    %v3698 = vpack.c.b16 %v3558, %v3554
    %v3699 = vpack.c.b16 %v3559, %v3555
    %v3700 = vpack.c.b16 %v3560, %v3556
    %v3701 = vpack.c.b16 %v3565, %v3561
    %v3702 = vpack.c.b16 %v3566, %v3562
    %v3703 = vpack.c.b16 %v3567, %v3563
    %v3704 = vpack.c.b16 %v3568, %v3564
    %v3705 = vpack.c.b16 %v3573, %v3569
    %v3706 = vpack.c.b16 %v3574, %v3570
    %v3707 = vpack.c.b16 %v3575, %v3571
    %v3708 = vpack.c.b16 %v3576, %v3572
    %v3709 = vpack.c.b16 %v3581, %v3577
    %v3710 = vpack.c.b16 %v3582, %v3578
    %v3711 = vpack.c.b16 %v3583, %v3579
    %v3712 = vpack.c.b16 %v3584, %v3580
    %3841 = vmatprep.subr.bf16.mxu0 %v3586
    %3842 = vmatpush1.bf16.msra.mxu0 %v3585
    %3843 = vmatprep.subr.bf16.mxu0 %v3590
    %3844 = vmatpush1.bf16.msra.mxu0 %v3589
    %3845 = vmatprep.subr.bf16.mxu0 %v3594
    %3846 = vmatpush1.bf16.msra.mxu0 %v3593
    %3847 = vmatprep.subr.bf16.mxu0 %v3598
    %3848 = vmatpush1.bf16.msra.mxu0 %v3597
    %3849 = vmatprep.subr.bf16.mxu0 %v3602
    %3850 = vmatpush1.bf16.msra.mxu0 %v3601
    %3851 = vmatprep.subr.bf16.mxu0 %v3606
    %3852 = vmatpush1.bf16.msra.mxu0 %v3605
    %3853 = vmatprep.subr.bf16.mxu0 %v3610
    %3854 = vmatpush1.bf16.msra.mxu0 %v3609
    %3855 = vmatprep.subr.bf16.mxu0 %v3614
    %3856 = vmatpush1.bf16.msra.mxu0 %v3613
    %3857 = vmatprep.subr.bf16.mxu0 %v3618
    %3858 = vmatpush1.bf16.msra.mxu0 %v3617
    %3859 = vmatprep.subr.bf16.mxu0 %v3622
    %3860 = vmatpush1.bf16.msra.mxu0 %v3621
    %3861 = vmatprep.subr.bf16.mxu0 %v3626
    %3862 = vmatpush1.bf16.msra.mxu0 %v3625
    %3863 = vmatprep.subr.bf16.mxu0 %v3630
    %3864 = vmatpush1.bf16.msra.mxu0 %v3629
    %3865 = vmatprep.subr.bf16.mxu0 %v3634
    %3866 = vmatpush1.bf16.msra.mxu0 %v3633
    %3867 = vmatprep.subr.bf16.mxu0 %v3638
    %3868 = vmatpush1.bf16.msra.mxu0 %v3637
    %3869 = vmatprep.subr.bf16.mxu0 %v3642
    %3870 = vmatpush1.bf16.msra.mxu0 %v3641
    %3871 = vmatprep.subr.bf16.mxu0 %v3646
    %3872 = vmatpush1.bf16.msra.mxu0 %v3645
    %3873 = vmatprep.mubr.bf16.mxu0 %v3048
    %3874 = vmatmul.mubr.bf16.gmra.mrb[0].mxu0 %v3047
    %v3875 = vpop.f32.mrb[0].mxu0
    %v3876 = vadd.f32 %v3184, %v3875
    %v3877 = vpop.f32.mrb[0].mxu0
    %v3878 = vadd.f32 %v3188, %v3877
    %v3879 = vpop.f32.mrb[0].mxu0
    %v3880 = vpop.f32.mrb[0].mxu0
    %3881 = vdwg.mxu0
    %3882 = vmatprep.subr.bf16.mxu0 %v3650
    %3883 = vmatpush1.bf16.msra.mxu0 %v3649
    %3884 = vmatprep.subr.bf16.mxu0 %v3654
    %3885 = vmatpush1.bf16.msra.mxu0 %v3653
    %3886 = vmatprep.subr.bf16.mxu0 %v3658
    %3887 = vmatpush1.bf16.msra.mxu0 %v3657
    %3888 = vmatprep.subr.bf16.mxu0 %v3662
    %3889 = vmatpush1.bf16.msra.mxu0 %v3661
    %3890 = vmatprep.subr.bf16.mxu0 %v3666
    %3891 = vmatpush1.bf16.msra.mxu0 %v3665
    %3892 = vmatprep.subr.bf16.mxu0 %v3670
    %3893 = vmatpush1.bf16.msra.mxu0 %v3669
    %3894 = vmatprep.subr.bf16.mxu0 %v3674
    %3895 = vmatpush1.bf16.msra.mxu0 %v3673
    %3896 = vmatprep.subr.bf16.mxu0 %v3678
    %3897 = vmatpush1.bf16.msra.mxu0 %v3677
    %3898 = vmatprep.subr.bf16.mxu0 %v3682
    %3899 = vmatpush1.bf16.msra.mxu0 %v3681
    %3900 = vmatprep.subr.bf16.mxu0 %v3686
    %3901 = vmatpush1.bf16.msra.mxu0 %v3685
    %3902 = vmatprep.subr.bf16.mxu0 %v3690
    %3903 = vmatpush1.bf16.msra.mxu0 %v3689
    %3904 = vmatprep.subr.bf16.mxu0 %v3694
    %3905 = vmatpush1.bf16.msra.mxu0 %v3693
    %3906 = vmatprep.subr.bf16.mxu0 %v3698
    %3907 = vmatpush1.bf16.msra.mxu0 %v3697
    %3908 = vmatprep.subr.bf16.mxu0 %v3702
    %3909 = vmatpush1.bf16.msra.mxu0 %v3701
    %3910 = vmatprep.subr.bf16.mxu0 %v3706
    %3911 = vmatpush1.bf16.msra.mxu0 %v3705
    %3912 = vmatprep.subr.bf16.mxu0 %v3710
    %3913 = vmatpush1.bf16.msra.mxu0 %v3709
    %3914 = vmatprep.mubr.bf16.mxu0 %v3050
    %3915 = vmatmul.mubr.bf16.gmra.mrb[0].mxu0 %v3049
    %v3916 = vpop.f32.mrb[0].mxu0
    %v3917 = vadd.f32 %v3876, %v3916
    %v3918 = vpop.f32.mrb[0].mxu0
    %v3919 = vadd.f32 %v3878, %v3918
    %v3920 = vpop.f32.mrb[0].mxu0
    %v3921 = vpop.f32.mrb[0].mxu0
    %3922 = vdwg.mxu0
    %3923 = vmatprep.subr.bf16.mxu0 %v3588
    %3924 = vmatpush1.bf16.msra.mxu0 %v3587
    %3925 = vmatprep.subr.bf16.mxu0 %v3592
    %3926 = vmatpush1.bf16.msra.mxu0 %v3591
    %3927 = vmatprep.subr.bf16.mxu0 %v3596
    %3928 = vmatpush1.bf16.msra.mxu0 %v3595
    %3929 = vmatprep.subr.bf16.mxu0 %v3600
    %3930 = vmatpush1.bf16.msra.mxu0 %v3599
    %3931 = vmatprep.subr.bf16.mxu0 %v3604
    %3932 = vmatpush1.bf16.msra.mxu0 %v3603
    %3933 = vmatprep.subr.bf16.mxu0 %v3608
    %3934 = vmatpush1.bf16.msra.mxu0 %v3607
    %3935 = vmatprep.subr.bf16.mxu0 %v3612
    %3936 = vmatpush1.bf16.msra.mxu0 %v3611
    %3937 = vmatprep.subr.bf16.mxu0 %v3616
    %3938 = vmatpush1.bf16.msra.mxu0 %v3615
    %3939 = vmatprep.subr.bf16.mxu0 %v3620
    %3940 = vmatpush1.bf16.msra.mxu0 %v3619
    %3941 = vmatprep.subr.bf16.mxu0 %v3624
    %3942 = vmatpush1.bf16.msra.mxu0 %v3623
    %3943 = vmatprep.subr.bf16.mxu0 %v3628
    %3944 = vmatpush1.bf16.msra.mxu0 %v3627
    %3945 = vmatprep.subr.bf16.mxu0 %v3632
    %3946 = vmatpush1.bf16.msra.mxu0 %v3631
    %3947 = vmatprep.subr.bf16.mxu0 %v3636
    %3948 = vmatpush1.bf16.msra.mxu0 %v3635
    %3949 = vmatprep.subr.bf16.mxu0 %v3640
    %3950 = vmatpush1.bf16.msra.mxu0 %v3639
    %3951 = vmatprep.subr.bf16.mxu0 %v3644
    %3952 = vmatpush1.bf16.msra.mxu0 %v3643
    %3953 = vmatprep.subr.bf16.mxu0 %v3648
    %3954 = vmatpush1.bf16.msra.mxu0 %v3647
    %3955 = vmatprep.mubr.bf16.mxu0 %v3048
    %3956 = vmatmul.mubr.bf16.gmra.mrb[0].mxu0 %v3047
    %v3957 = vpop.f32.mrb[0].mxu0
    %v3958 = vadd.f32 %v3192, %v3957
    %v3959 = vpop.f32.mrb[0].mxu0
    %v3960 = vadd.f32 %v3196, %v3959
    %v3961 = vpop.f32.mrb[0].mxu0
    %v3962 = vpop.f32.mrb[0].mxu0
    %3963 = vdwg.mxu0
    %3964 = vmatprep.subr.bf16.mxu0 %v3652
    %3965 = vmatpush1.bf16.msra.mxu0 %v3651
    %3966 = vmatprep.subr.bf16.mxu0 %v3656
    %3967 = vmatpush1.bf16.msra.mxu0 %v3655
    %3968 = vmatprep.subr.bf16.mxu0 %v3660
    %3969 = vmatpush1.bf16.msra.mxu0 %v3659
    %3970 = vmatprep.subr.bf16.mxu0 %v3664
    %3971 = vmatpush1.bf16.msra.mxu0 %v3663
    %3972 = vmatprep.subr.bf16.mxu0 %v3668
    %3973 = vmatpush1.bf16.msra.mxu0 %v3667
    %3974 = vmatprep.subr.bf16.mxu0 %v3672
    %3975 = vmatpush1.bf16.msra.mxu0 %v3671
    %3976 = vmatprep.subr.bf16.mxu0 %v3676
    %3977 = vmatpush1.bf16.msra.mxu0 %v3675
    %3978 = vmatprep.subr.bf16.mxu0 %v3680
    %3979 = vmatpush1.bf16.msra.mxu0 %v3679
    %3980 = vmatprep.subr.bf16.mxu0 %v3684
    %3981 = vmatpush1.bf16.msra.mxu0 %v3683
    %3982 = vmatprep.subr.bf16.mxu0 %v3688
    %3983 = vmatpush1.bf16.msra.mxu0 %v3687
    %3984 = vmatprep.subr.bf16.mxu0 %v3692
    %3985 = vmatpush1.bf16.msra.mxu0 %v3691
    %3986 = vmatprep.subr.bf16.mxu0 %v3696
    %3987 = vmatpush1.bf16.msra.mxu0 %v3695
    %3988 = vmatprep.subr.bf16.mxu0 %v3700
    %3989 = vmatpush1.bf16.msra.mxu0 %v3699
    %3990 = vmatprep.subr.bf16.mxu0 %v3704
    %3991 = vmatpush1.bf16.msra.mxu0 %v3703
    %3992 = vmatprep.subr.bf16.mxu0 %v3708
    %3993 = vmatpush1.bf16.msra.mxu0 %v3707
    %3994 = vmatprep.subr.bf16.mxu0 %v3712
    %3995 = vmatpush1.bf16.msra.mxu0 %v3711
    %3996 = vmatprep.mubr.bf16.mxu0 %v3050
    %3997 = vmatmul.mubr.bf16.gmra.mrb[0].mxu0 %v3049
    %v3998 = vpop.f32.mrb[0].mxu0
    %v3999 = vadd.f32 %v3958, %v3998
    %v4000 = vpop.f32.mrb[0].mxu0
    %v4001 = vadd.f32 %v3960, %v4000
    %v4002 = vpop.f32.mrb[0].mxu0
    %v4003 = vpop.f32.mrb[0].mxu0
    %4004 = vdwg.mxu0
    %v4005 = vpack.c.bf16 %v3917, %v3917
    %v4006 = vpack.c.bf16 %v3919, %v3919
    %v4007 = vpack.c.bf16 %v3999, %v3999
    %v4008 = vpack.c.bf16 %v4001, %v4001
    %v4009 = vmax.bf16 %v4005, 0
    %v4010 = vmax.bf16 %v4006, 0
    %v4011 = vmax.bf16 %v4007, 0
    %v4012 = vmax.bf16 %v4008, 0
    %v4013 = vld [vmem:[#allocation10] sm:$0xff]
    %v4014 = vld [vmem:[#allocation10 + $0x8] sm:$0xff]
    %v4015 = vld [vmem:[#allocation10 + $0x10] sm:$0xff]
    %v4016 = vld [vmem:[#allocation10 + $0x18] sm:$0xff]
    %v4017 = vld [vmem:[#allocation10 + $0x20] sm:$0xff]
    %v4018 = vld [vmem:[#allocation10 + $0x28] sm:$0xff]
    %v4019 = vld [vmem:[#allocation10 + $0x30] sm:$0xff]
    %v4020 = vld [vmem:[#allocation10 + $0x38] sm:$0xff]
    %v4021 = vld [vmem:[#allocation10 + $0x40] sm:$0xff]
    %v4022 = vld [vmem:[#allocation10 + $0x48] sm:$0xff]
    %v4023 = vld [vmem:[#allocation10 + $0x50] sm:$0xff]
    %v4024 = vld [vmem:[#allocation10 + $0x58] sm:$0xff]
    %v4025 = vld [vmem:[#allocation10 + $0x60] sm:$0xff]
    %v4026 = vld [vmem:[#allocation10 + $0x68] sm:$0xff]
    %v4027 = vld [vmem:[#allocation10 + $0x70] sm:$0xff]
    %v4028 = vld [vmem:[#allocation10 + $0x78] sm:$0xff]
    %v4029 = vld [vmem:[#allocation10 + $0x80] sm:$0xff]
    %v4030 = vld [vmem:[#allocation10 + $0x88] sm:$0xff]
    %v4031 = vld [vmem:[#allocation10 + $0x90] sm:$0xff]
    %v4032 = vld [vmem:[#allocation10 + $0x98] sm:$0xff]
    %v4033 = vld [vmem:[#allocation10 + $0xa0] sm:$0xff]
    %v4034 = vld [vmem:[#allocation10 + $0xa8] sm:$0xff]
    %v4035 = vld [vmem:[#allocation10 + $0xb0] sm:$0xff]
    %v4036 = vld [vmem:[#allocation10 + $0xb8] sm:$0xff]
    %v4037 = vld [vmem:[#allocation10 + $0xc0] sm:$0xff]
    %v4038 = vld [vmem:[#allocation10 + $0xc8] sm:$0xff]
    %v4039 = vld [vmem:[#allocation10 + $0xd0] sm:$0xff]
    %v4040 = vld [vmem:[#allocation10 + $0xd8] sm:$0xff]
    %v4041 = vld [vmem:[#allocation10 + $0xe0] sm:$0xff]
    %v4042 = vld [vmem:[#allocation10 + $0xe8] sm:$0xff]
    %v4043 = vld [vmem:[#allocation10 + $0xf0] sm:$0xff]
    %v4044 = vld [vmem:[#allocation10 + $0xf8] sm:$0xff]
    %v4045 = vld [vmem:[#allocation10 + $0x100] sm:$0xff]
    %v4046 = vld [vmem:[#allocation10 + $0x108] sm:$0xff]
    %v4047 = vld [vmem:[#allocation10 + $0x110] sm:$0xff]
    %v4048 = vld [vmem:[#allocation10 + $0x118] sm:$0xff]
    %v4049 = vld [vmem:[#allocation10 + $0x120] sm:$0xff]
    %v4050 = vld [vmem:[#allocation10 + $0x128] sm:$0xff]
    %v4051 = vld [vmem:[#allocation10 + $0x130] sm:$0xff]
    %v4052 = vld [vmem:[#allocation10 + $0x138] sm:$0xff]
    %v4053 = vld [vmem:[#allocation10 + $0x140] sm:$0xff]
    %v4054 = vld [vmem:[#allocation10 + $0x148] sm:$0xff]
    %v4055 = vld [vmem:[#allocation10 + $0x150] sm:$0xff]
    %v4056 = vld [vmem:[#allocation10 + $0x158] sm:$0xff]
    %v4057 = vld [vmem:[#allocation10 + $0x160] sm:$0xff]
    %v4058 = vld [vmem:[#allocation10 + $0x168] sm:$0xff]
    %v4059 = vld [vmem:[#allocation10 + $0x170] sm:$0xff]
    %v4060 = vld [vmem:[#allocation10 + $0x178] sm:$0xff]
    %v4061 = vld [vmem:[#allocation10 + $0x180] sm:$0xff]
    %v4062 = vld [vmem:[#allocation10 + $0x188] sm:$0xff]
    %v4063 = vld [vmem:[#allocation10 + $0x190] sm:$0xff]
    %v4064 = vld [vmem:[#allocation10 + $0x198] sm:$0xff]
    %v4065 = vld [vmem:[#allocation10 + $0x1a0] sm:$0xff]
    %v4066 = vld [vmem:[#allocation10 + $0x1a8] sm:$0xff]
    %v4067 = vld [vmem:[#allocation10 + $0x1b0] sm:$0xff]
    %v4068 = vld [vmem:[#allocation10 + $0x1b8] sm:$0xff]
    %v4069 = vld [vmem:[#allocation10 + $0x1c0] sm:$0xff]
    %v4070 = vld [vmem:[#allocation10 + $0x1c8] sm:$0xff]
    %v4071 = vld [vmem:[#allocation10 + $0x1d0] sm:$0xff]
    %v4072 = vld [vmem:[#allocation10 + $0x1d8] sm:$0xff]
    %v4073 = vld [vmem:[#allocation10 + $0x1e0] sm:$0xff]
    %v4074 = vld [vmem:[#allocation10 + $0x1e8] sm:$0xff]
    %v4075 = vld [vmem:[#allocation10 + $0x1f0] sm:$0xff]
    %v4076 = vld [vmem:[#allocation10 + $0x1f8] sm:$0xff]
    %v4077 = vld [vmem:[%s15] sm:$0x3]
    %v4079 = vlaneseq
    %v4080 = vshrl.u32 %v4079, 7
    %v4081 = vsub.s32 0, %v4080
    %v4082 = vrot.slane %v4077, %v4081
    %v4083 = vlaneseq
    %v4084 = vshrl.u32 %v4083, 7
    %v4085 = vsub.s32 1, %v4084
    %v4086 = vrot.slane %v4077, %v4085
    %v4153 = vunpack.c.l.b16 %v4013
    %v4154 = vunpack.c.h.b16 %v4013
    %v4155 = vunpack.c.l.b16 %v4014
    %v4156 = vunpack.c.h.b16 %v4014
    %v4157 = vunpack.c.l.b16 %v4015
    %v4158 = vunpack.c.h.b16 %v4015
    %v4159 = vunpack.c.l.b16 %v4016
    %v4160 = vunpack.c.h.b16 %v4016
    %v4161 = vunpack.c.l.b16 %v4017
    %v4162 = vunpack.c.h.b16 %v4017
    %v4163 = vunpack.c.l.b16 %v4018
    %v4164 = vunpack.c.h.b16 %v4018
    %v4165 = vunpack.c.l.b16 %v4019
    %v4166 = vunpack.c.h.b16 %v4019
    %v4167 = vunpack.c.l.b16 %v4020
    %v4168 = vunpack.c.h.b16 %v4020
    %v4169 = vunpack.c.l.b16 %v4021
    %v4170 = vunpack.c.h.b16 %v4021
    %v4171 = vunpack.c.l.b16 %v4022
    %v4172 = vunpack.c.h.b16 %v4022
    %v4173 = vunpack.c.l.b16 %v4023
    %v4174 = vunpack.c.h.b16 %v4023
    %v4175 = vunpack.c.l.b16 %v4024
    %v4176 = vunpack.c.h.b16 %v4024
    %v4177 = vunpack.c.l.b16 %v4025
    %v4178 = vunpack.c.h.b16 %v4025
    %v4179 = vunpack.c.l.b16 %v4026
    %v4180 = vunpack.c.h.b16 %v4026
    %v4181 = vunpack.c.l.b16 %v4027
    %v4182 = vunpack.c.h.b16 %v4027
    %v4183 = vunpack.c.l.b16 %v4028
    %v4184 = vunpack.c.h.b16 %v4028
    %v4185 = vunpack.c.l.b16 %v4029
    %v4186 = vunpack.c.h.b16 %v4029
    %v4187 = vunpack.c.l.b16 %v4030
    %v4188 = vunpack.c.h.b16 %v4030
    %v4189 = vunpack.c.l.b16 %v4031
    %v4190 = vunpack.c.h.b16 %v4031
    %v4191 = vunpack.c.l.b16 %v4032
    %v4192 = vunpack.c.h.b16 %v4032
    %v4193 = vunpack.c.l.b16 %v4033
    %v4194 = vunpack.c.h.b16 %v4033
    %v4195 = vunpack.c.l.b16 %v4034
    %v4196 = vunpack.c.h.b16 %v4034
    %v4197 = vunpack.c.l.b16 %v4035
    %v4198 = vunpack.c.h.b16 %v4035
    %v4199 = vunpack.c.l.b16 %v4036
    %v4200 = vunpack.c.h.b16 %v4036
    %v4201 = vunpack.c.l.b16 %v4037
    %v4202 = vunpack.c.h.b16 %v4037
    %v4203 = vunpack.c.l.b16 %v4038
    %v4204 = vunpack.c.h.b16 %v4038
    %v4205 = vunpack.c.l.b16 %v4039
    %v4206 = vunpack.c.h.b16 %v4039
    %v4207 = vunpack.c.l.b16 %v4040
    %v4208 = vunpack.c.h.b16 %v4040
    %v4209 = vunpack.c.l.b16 %v4041
    %v4210 = vunpack.c.h.b16 %v4041
    %v4211 = vunpack.c.l.b16 %v4042
    %v4212 = vunpack.c.h.b16 %v4042
    %v4213 = vunpack.c.l.b16 %v4043
    %v4214 = vunpack.c.h.b16 %v4043
    %v4215 = vunpack.c.l.b16 %v4044
    %v4216 = vunpack.c.h.b16 %v4044
    %v4217 = vunpack.c.l.b16 %v4045
    %v4218 = vunpack.c.h.b16 %v4045
    %v4219 = vunpack.c.l.b16 %v4046
    %v4220 = vunpack.c.h.b16 %v4046
    %v4221 = vunpack.c.l.b16 %v4047
    %v4222 = vunpack.c.h.b16 %v4047
    %v4223 = vunpack.c.l.b16 %v4048
    %v4224 = vunpack.c.h.b16 %v4048
    %v4225 = vunpack.c.l.b16 %v4049
    %v4226 = vunpack.c.h.b16 %v4049
    %v4227 = vunpack.c.l.b16 %v4050
    %v4228 = vunpack.c.h.b16 %v4050
    %v4229 = vunpack.c.l.b16 %v4051
    %v4230 = vunpack.c.h.b16 %v4051
    %v4231 = vunpack.c.l.b16 %v4052
    %v4232 = vunpack.c.h.b16 %v4052
    %v4233 = vunpack.c.l.b16 %v4053
    %v4234 = vunpack.c.h.b16 %v4053
    %v4235 = vunpack.c.l.b16 %v4054
    %v4236 = vunpack.c.h.b16 %v4054
    %v4237 = vunpack.c.l.b16 %v4055
    %v4238 = vunpack.c.h.b16 %v4055
    %v4239 = vunpack.c.l.b16 %v4056
    %v4240 = vunpack.c.h.b16 %v4056
    %v4241 = vunpack.c.l.b16 %v4057
    %v4242 = vunpack.c.h.b16 %v4057
    %v4243 = vunpack.c.l.b16 %v4058
    %v4244 = vunpack.c.h.b16 %v4058
    %v4245 = vunpack.c.l.b16 %v4059
    %v4246 = vunpack.c.h.b16 %v4059
    %v4247 = vunpack.c.l.b16 %v4060
    %v4248 = vunpack.c.h.b16 %v4060
    %v4249 = vunpack.c.l.b16 %v4061
    %v4250 = vunpack.c.h.b16 %v4061
    %v4251 = vunpack.c.l.b16 %v4062
    %v4252 = vunpack.c.h.b16 %v4062
    %v4253 = vunpack.c.l.b16 %v4063
    %v4254 = vunpack.c.h.b16 %v4063
    %v4255 = vunpack.c.l.b16 %v4064
    %v4256 = vunpack.c.h.b16 %v4064
    %v4257 = vunpack.c.l.b16 %v4065
    %v4258 = vunpack.c.h.b16 %v4065
    %v4259 = vunpack.c.l.b16 %v4066
    %v4260 = vunpack.c.h.b16 %v4066
    %v4261 = vunpack.c.l.b16 %v4067
    %v4262 = vunpack.c.h.b16 %v4067
    %v4263 = vunpack.c.l.b16 %v4068
    %v4264 = vunpack.c.h.b16 %v4068
    %v4265 = vunpack.c.l.b16 %v4069
    %v4266 = vunpack.c.h.b16 %v4069
    %v4267 = vunpack.c.l.b16 %v4070
    %v4268 = vunpack.c.h.b16 %v4070
    %v4269 = vunpack.c.l.b16 %v4071
    %v4270 = vunpack.c.h.b16 %v4071
    %v4271 = vunpack.c.l.b16 %v4072
    %v4272 = vunpack.c.h.b16 %v4072
    %v4273 = vunpack.c.l.b16 %v4073
    %v4274 = vunpack.c.h.b16 %v4073
    %v4275 = vunpack.c.l.b16 %v4074
    %v4276 = vunpack.c.h.b16 %v4074
    %v4277 = vunpack.c.l.b16 %v4075
    %v4278 = vunpack.c.h.b16 %v4075
    %v4279 = vunpack.c.l.b16 %v4076
    %v4280 = vunpack.c.h.b16 %v4076
    %v4281 = vpack.c.b16 %v4155, %v4153
    %v4282 = vpack.c.b16 %v4156, %v4154
    %v4283 = vpack.c.b16 %v4159, %v4157
    %v4284 = vpack.c.b16 %v4160, %v4158
    %v4285 = vpack.c.b16 %v4163, %v4161
    %v4286 = vpack.c.b16 %v4164, %v4162
    %v4287 = vpack.c.b16 %v4167, %v4165
    %v4288 = vpack.c.b16 %v4168, %v4166
    %v4289 = vpack.c.b16 %v4171, %v4169
    %v4290 = vpack.c.b16 %v4172, %v4170
    %v4291 = vpack.c.b16 %v4175, %v4173
    %v4292 = vpack.c.b16 %v4176, %v4174
    %v4293 = vpack.c.b16 %v4179, %v4177
    %v4294 = vpack.c.b16 %v4180, %v4178
    %v4295 = vpack.c.b16 %v4183, %v4181
    %v4296 = vpack.c.b16 %v4184, %v4182
    %v4297 = vpack.c.b16 %v4187, %v4185
    %v4298 = vpack.c.b16 %v4188, %v4186
    %v4299 = vpack.c.b16 %v4191, %v4189
    %v4300 = vpack.c.b16 %v4192, %v4190
    %v4301 = vpack.c.b16 %v4195, %v4193
    %v4302 = vpack.c.b16 %v4196, %v4194
    %v4303 = vpack.c.b16 %v4199, %v4197
    %v4304 = vpack.c.b16 %v4200, %v4198
    %v4305 = vpack.c.b16 %v4203, %v4201
    %v4306 = vpack.c.b16 %v4204, %v4202
    %v4307 = vpack.c.b16 %v4207, %v4205
    %v4308 = vpack.c.b16 %v4208, %v4206
    %v4309 = vpack.c.b16 %v4211, %v4209
    %v4310 = vpack.c.b16 %v4212, %v4210
    %v4311 = vpack.c.b16 %v4215, %v4213
    %v4312 = vpack.c.b16 %v4216, %v4214
    %v4313 = vpack.c.b16 %v4219, %v4217
    %v4314 = vpack.c.b16 %v4220, %v4218
    %v4315 = vpack.c.b16 %v4223, %v4221
    %v4316 = vpack.c.b16 %v4224, %v4222
    %v4317 = vpack.c.b16 %v4227, %v4225
    %v4318 = vpack.c.b16 %v4228, %v4226
    %v4319 = vpack.c.b16 %v4231, %v4229
    %v4320 = vpack.c.b16 %v4232, %v4230
    %v4321 = vpack.c.b16 %v4235, %v4233
    %v4322 = vpack.c.b16 %v4236, %v4234
    %v4323 = vpack.c.b16 %v4239, %v4237
    %v4324 = vpack.c.b16 %v4240, %v4238
    %v4325 = vpack.c.b16 %v4243, %v4241
    %v4326 = vpack.c.b16 %v4244, %v4242
    %v4327 = vpack.c.b16 %v4247, %v4245
    %v4328 = vpack.c.b16 %v4248, %v4246
    %v4329 = vpack.c.b16 %v4251, %v4249
    %v4330 = vpack.c.b16 %v4252, %v4250
    %v4331 = vpack.c.b16 %v4255, %v4253
    %v4332 = vpack.c.b16 %v4256, %v4254
    %v4333 = vpack.c.b16 %v4259, %v4257
    %v4334 = vpack.c.b16 %v4260, %v4258
    %v4335 = vpack.c.b16 %v4263, %v4261
    %v4336 = vpack.c.b16 %v4264, %v4262
    %v4337 = vpack.c.b16 %v4267, %v4265
    %v4338 = vpack.c.b16 %v4268, %v4266
    %v4339 = vpack.c.b16 %v4271, %v4269
    %v4340 = vpack.c.b16 %v4272, %v4270
    %v4341 = vpack.c.b16 %v4275, %v4273
    %v4342 = vpack.c.b16 %v4276, %v4274
    %v4343 = vpack.c.b16 %v4279, %v4277
    %v4344 = vpack.c.b16 %v4280, %v4278
    %4409 = vmatprep.subr.bf16.mxu0 %v4282
    %4410 = vmatpush1.bf16.msra.mxu0 %v4281
    %4411 = vmatprep.subr.bf16.mxu0 %v4284
    %4412 = vmatpush1.bf16.msra.mxu0 %v4283
    %4413 = vmatprep.subr.bf16.mxu0 %v4286
    %4414 = vmatpush1.bf16.msra.mxu0 %v4285
    %4415 = vmatprep.subr.bf16.mxu0 %v4288
    %4416 = vmatpush1.bf16.msra.mxu0 %v4287
    %4417 = vmatprep.subr.bf16.mxu0 %v4290
    %4418 = vmatpush1.bf16.msra.mxu0 %v4289
    %4419 = vmatprep.subr.bf16.mxu0 %v4292
    %4420 = vmatpush1.bf16.msra.mxu0 %v4291
    %4421 = vmatprep.subr.bf16.mxu0 %v4294
    %4422 = vmatpush1.bf16.msra.mxu0 %v4293
    %4423 = vmatprep.subr.bf16.mxu0 %v4296
    %4424 = vmatpush1.bf16.msra.mxu0 %v4295
    %4425 = vmatprep.subr.bf16.mxu0 %v4298
    %4426 = vmatpush1.bf16.msra.mxu0 %v4297
    %4427 = vmatprep.subr.bf16.mxu0 %v4300
    %4428 = vmatpush1.bf16.msra.mxu0 %v4299
    %4429 = vmatprep.subr.bf16.mxu0 %v4302
    %4430 = vmatpush1.bf16.msra.mxu0 %v4301
    %4431 = vmatprep.subr.bf16.mxu0 %v4304
    %4432 = vmatpush1.bf16.msra.mxu0 %v4303
    %4433 = vmatprep.subr.bf16.mxu0 %v4306
    %4434 = vmatpush1.bf16.msra.mxu0 %v4305
    %4435 = vmatprep.subr.bf16.mxu0 %v4308
    %4436 = vmatpush1.bf16.msra.mxu0 %v4307
    %4437 = vmatprep.subr.bf16.mxu0 %v4310
    %4438 = vmatpush1.bf16.msra.mxu0 %v4309
    %4439 = vmatprep.subr.bf16.mxu0 %v4312
    %4440 = vmatpush1.bf16.msra.mxu0 %v4311
    %4441 = vmatprep.mubr.bf16.mxu0 %v4010
    %4442 = vmatmul.mubr.bf16.gmra.mrb[0].mxu0 %v4009
    %v4443 = vpop.f32.mrb[0].mxu0
    %v4444 = vadd.f32 %v4082, %v4443
    %v4445 = vpop.f32.mrb[0].mxu0
    %v4446 = vadd.f32 %v4086, %v4445
    %v4447 = vpop.f32.mrb[0].mxu0
    %v4448 = vpop.f32.mrb[0].mxu0
    %4449 = vdwg.mxu0
    %4450 = vmatprep.subr.bf16.mxu0 %v4314
    %4451 = vmatpush1.bf16.msra.mxu0 %v4313
    %4452 = vmatprep.subr.bf16.mxu0 %v4316
    %4453 = vmatpush1.bf16.msra.mxu0 %v4315
    %4454 = vmatprep.subr.bf16.mxu0 %v4318
    %4455 = vmatpush1.bf16.msra.mxu0 %v4317
    %4456 = vmatprep.subr.bf16.mxu0 %v4320
    %4457 = vmatpush1.bf16.msra.mxu0 %v4319
    %4458 = vmatprep.subr.bf16.mxu0 %v4322
    %4459 = vmatpush1.bf16.msra.mxu0 %v4321
    %4460 = vmatprep.subr.bf16.mxu0 %v4324
    %4461 = vmatpush1.bf16.msra.mxu0 %v4323
    %4462 = vmatprep.subr.bf16.mxu0 %v4326
    %4463 = vmatpush1.bf16.msra.mxu0 %v4325
    %4464 = vmatprep.subr.bf16.mxu0 %v4328
    %4465 = vmatpush1.bf16.msra.mxu0 %v4327
    %4466 = vmatprep.subr.bf16.mxu0 %v4330
    %4467 = vmatpush1.bf16.msra.mxu0 %v4329
    %4468 = vmatprep.subr.bf16.mxu0 %v4332
    %4469 = vmatpush1.bf16.msra.mxu0 %v4331
    %4470 = vmatprep.subr.bf16.mxu0 %v4334
    %4471 = vmatpush1.bf16.msra.mxu0 %v4333
    %4472 = vmatprep.subr.bf16.mxu0 %v4336
    %4473 = vmatpush1.bf16.msra.mxu0 %v4335
    %4474 = vmatprep.subr.bf16.mxu0 %v4338
    %4475 = vmatpush1.bf16.msra.mxu0 %v4337
    %4476 = vmatprep.subr.bf16.mxu0 %v4340
    %4477 = vmatpush1.bf16.msra.mxu0 %v4339
    %4478 = vmatprep.subr.bf16.mxu0 %v4342
    %4479 = vmatpush1.bf16.msra.mxu0 %v4341
    %4480 = vmatprep.subr.bf16.mxu0 %v4344
    %4481 = vmatpush1.bf16.msra.mxu0 %v4343
    %4482 = vmatprep.mubr.bf16.mxu0 %v4012
    %4483 = vmatmul.mubr.bf16.gmra.mrb[0].mxu0 %v4011
    %v4484 = vpop.f32.mrb[0].mxu0
    %v4485 = vadd.f32 %v4444, %v4484
    %v4486 = vpop.f32.mrb[0].mxu0
    %v4487 = vadd.f32 %v4446, %v4486
    %v4488 = vpop.f32.mrb[0].mxu0
    %v4489 = vpop.f32.mrb[0].mxu0
    %4490 = vdwg.mxu0
    %v4491 = vsub.f32 0.0, %v4485
    %v4492 = vsub.f32 0.0, %v4487
    %v4493 = vmul.f32 %v4491, 1.442695
    %v4494 = vpow.pop %v4493
    %v4495 = vmul.f32 %v4492, 1.442695
    %v4496 = vpow.pop %v4495
    %v4497 = vadd.f32 %v4494, 1.0
    %v4498 = vadd.f32 %v4496, 1.0
    %v4499 = vrcp.pop %v4497
    %v4500 = vrcp.pop %v4498
    %4501 = vst [vmem:[#allocation11] sm:$0xff] %v4499
    %4502 = vst [vmem:[#allocation11 + $0x8] sm:$0xff] %v4500
    // Predicated region
    $region86: #{tpu_custom_call.1} parent=1 // pred_check
      _
    $region87: #{tpu_custom_call.1} parent=1 // pred_check_branch
      %4504 = sbr.rel (0) target = $region89
    $region88: #{tpu_custom_call.1} parent=1 // pred_region
      %s4506 = ssub.s32 256, 256
      %4507 = vsyncadd [#allocation4], %s4506
      %s4509 = sshll.u32 [#allocation11], 4
      %s4510 = int_to_ptr.vmem [resolvable:$true] %s4509
      %4512 = dma.vmem_to_hbm [thread:$0]  %s4510, 256, %s16, [#allocation4]
    $region89: #{tpu_custom_call.1} parent=1 // pred_fallthru
      _
    // Predicated region
    $region90: #{tpu_custom_call.1} parent=1 // pred_check
      _
    $region91: #{tpu_custom_call.1} parent=1 // pred_check_branch
      %4514 = sbr.rel (0) target = $region93
    $region92: #{tpu_custom_call.1} parent=1 // pred_region
      %s4516 = ssub.s32 128, 128
      %4517 = vsyncadd [#allocation13], %s4516
      %s4519 = sshll.u32 [#allocation12], 4
      %s4520 = int_to_ptr.vmem [resolvable:$true] %s4519
      %4522 = dma.vmem_to_hbm [thread:$0]  %s4520, 128, %s17, [#allocation13]
    $region93: #{tpu_custom_call.1} parent=1 // pred_fallthru
      _
    // Predicated region
    $region94: #{tpu_custom_call.1} parent=1 // pred_check
      _
    $region95: #{tpu_custom_call.1} parent=1 // pred_check_branch
      %4524 = sbr.rel (0) target = $region97
    $region96: #{tpu_custom_call.1} parent=1 // pred_region
      %4525 = dma.done [#allocation4], 256
    $region97: #{tpu_custom_call.1} parent=1 // pred_fallthru
      _
    // Predicated region
    $region98: #{tpu_custom_call.1} parent=1 // pred_check
      _
    $region99: #{tpu_custom_call.1} parent=1 // pred_check_branch
      %4527 = sbr.rel (0) target = $region101
    $region100: #{tpu_custom_call.1} parent=1 // pred_region
      %4528 = dma.done [#allocation13], 128
    $region101: #{tpu_custom_call.1} parent=1 // pred_fallthru
      _
    %4529 = vsyncpa [#allocation3], 1
    %4530 = vsyncpa [#allocation6], 1
    %4531 = vsyncpa [#allocation9], 1
    %4532 = vsyncpa [#allocation4], 1
    %4533 = vsyncpa [#allocation13], 1

</llo_original>
